<compile_context>
chip_gen: v7x
topology: tpu7x:2x2x1
jax: 0.10.0
libtpu: 0.0.40
codegen_flags: <defaults>
</compile_context>

<pallas_src>
import functools

import jax
import jax.numpy as jnp
from jax.experimental import pallas as pl
from jax.experimental.pallas import tpu as pltpu


def _round_up(x, m):
    return (x + m - 1) // m * m


def _rnn_fused_kernel(x_ref, wx_ref, wh_ref, b_ref, h0_ref, o_ref, h_ref):
    """Fused input-projection + recurrence over one (Bb, Tc) chunk.

    x_ref : (Bb, Tc, D)   raw input chunk
    wx_ref: (D, LP)       input->hidden weight (resident)
    wh_ref: (LP, LP)      hidden->hidden weight (resident)
    b_ref : (1, LP)       bias (resident)
    h0_ref: (Bb, LP)      initial hidden state for this batch shard
    o_ref : (Bb, Tc, LP)  output chunk
    h_ref : (Bb, LP) f32  hidden carry across time chunks (VMEM scratch)
    """
    # Reset the carry at the first time-chunk of every batch shard.
    @pl.when(pl.program_id(1) == 0)
    def _():
        h_ref[...] = h0_ref[...].astype(jnp.float32)

    wx = wx_ref[...]                          # resident, native dtype (bf16 ok)
    wh = wh_ref[...]
    bias = b_ref[...].astype(jnp.float32)     # (1, LP), broadcasts over Bb
    h = h_ref[...]                            # (Bb, LP) f32 carry
    tc = x_ref.shape[1]

    # Fully unrolled static loop (LLO-visible).  The x @ Wx projection has no time
    # dependence, so the scheduler issues it under / ahead of the serial h @ Wh chain;
    # only the (Bb, LP) @ (LP, LP) matmul sits on the latency-critical path.
    # TODO(synk): for large D hoist the chunk projection into one (Bb*Tc, D) @ (D, LP)
    # matmul; for large LP keep Wh weight-stationary in the MXU via
    # pltpu.matmul_push_rhs / matmul_acc_lhs / matmul_pop.
    for i in range(tc):
        xb_i = jnp.dot(x_ref[:, i, :], wx, preferred_element_type=jnp.float32) + bias
        z = xb_i + jnp.dot(h.astype(wh.dtype), wh, preferred_element_type=jnp.float32)
        h = jnp.maximum(z, 0.0)               # ReLU
        o_ref[:, i, :] = h.astype(o_ref.dtype)

    h_ref[...] = h                            # carry hidden state to next time chunk


def _vmem_capacity_bytes():
    """Physical VMEM per core (generation-aware), with a conservative fallback."""
    try:
        return int(pltpu.get_tpu_info().vmem_capacity_bytes)
    except Exception:
        return 64 * 1024 * 1024   # v7x-sized fallback; safe on v5e/v6e as well


@functools.partial(jax.jit, static_argnames=("chunk",))
def rnn_layer(x, w, b, h0=None, *, chunk=32):
    """RNNLayer forward.

    x: (B, T, D) batch-first; w: (L, D+L) nn.Linear weight; b: (L,) bias;
    h0: optional (B, L) initial hidden state (defaults to zeros).
    Returns (B, T, L) stacked hidden states (batch_first).
    """
    B, T, D = x.shape
    L = w.shape[0]
    LP = _round_up(max(L, 128), 128)          # lane-dense / MXU-aligned hidden width
    Bp = _round_up(max(B, 8), 8)              # sublane-aligned batch

    # Batch sharding: leading "parallel" grid axis so v7x's 2 TensorCores can split
    # large batches; single shard for small B (no effect on v5e/v6e single-core).
    if Bp > 32:
        Bb = 32
        Bp = _round_up(Bp, Bb)
    else:
        Bb = Bp

    # Time chunk: big enough to amortize per-grid-step overhead and tiny DMAs, capped
    # to the (sublane-rounded) sequence length so short sequences do no wasted steps.
    Tc = min(_round_up(max(chunk, 8), 8), _round_up(T, 8))

    x_isz = jnp.dtype(x.dtype).itemsize
    w_isz = jnp.dtype(w.dtype).itemsize

    def _needed_bytes(tc):
        # BlockSpec inputs/outputs are double-buffered, including the constant
        # index-map residents (Wx / Wh / bias / h0).
        # TODO(synk): mark the resident specs pipeline_mode=pl.Buffered(1) (or stage Wh
        # once into scratch) to reclaim the duplicate copy when LP is large.
        x_blk = Bb * tc * D * x_isz
        o_blk = Bb * tc * LP * x_isz
        res = D * LP * w_isz + LP * LP * w_isz + LP * w_isz + Bb * LP * 4
        carry = Bb * LP * 4
        return 2 * (x_blk + o_blk + res) + carry

    vmem_cap = int(0.75 * _vmem_capacity_bytes())      # leave headroom under physical
    while Tc > 8 and _needed_bytes(Tc) > vmem_cap:
        Tc = _round_up(Tc // 2, 8)
    Tp = _round_up(T, Tc)
    vmem_limit = int(min(vmem_cap, max(2 * _needed_bytes(Tc), 32 * 1024 * 1024)))

    # Split the concat-linear weight: [x, h] @ W.T == x @ Wx + h @ Wh, zero-padding the
    # hidden dim to LP. Padded lanes provably stay exactly 0 through the recurrence
    # (zero Wx/Wh columns, zero bias, relu(0) = 0), so results are unchanged.
    wx = jnp.zeros((D, LP), w.dtype).at[:, :L].set(jnp.transpose(w[:, :D]))
    wh = jnp.zeros((LP, LP), w.dtype).at[:L, :L].set(jnp.transpose(w[:, D:]))
    bp = jnp.zeros((1, LP), b.dtype).at[0, :L].set(b)
    if h0 is None:
        h0p = jnp.zeros((Bp, LP), jnp.float32)
    else:
        h0p = jnp.zeros((Bp, LP), jnp.float32).at[:B, :L].set(h0.astype(jnp.float32))

    xp = x
    if (Bp, Tp) != (B, T):
        xp = jnp.pad(x, ((0, Bp - B), (0, Tp - T), (0, 0)))

    out = pl.pallas_call(
        _rnn_fused_kernel,
        out_shape=jax.ShapeDtypeStruct((Bp, Tp, LP), x.dtype),
        grid_spec=pltpu.PrefetchScalarGridSpec(
            num_scalar_prefetch=0,
            grid=(Bp // Bb, Tp // Tc),
            in_specs=[
                pl.BlockSpec((Bb, Tc, D), lambda bi, ci: (bi, ci, 0)),   # x chunk
                pl.BlockSpec((D, LP), lambda bi, ci: (0, 0)),            # Wx resident
                pl.BlockSpec((LP, LP), lambda bi, ci: (0, 0)),           # Wh resident
                pl.BlockSpec((1, LP), lambda bi, ci: (0, 0)),            # bias resident
                pl.BlockSpec((Bb, LP), lambda bi, ci: (bi, 0)),          # h0 shard
            ],
            out_specs=pl.BlockSpec((Bb, Tc, LP), lambda bi, ci: (bi, ci, 0)),
            scratch_shapes=[pltpu.VMEM((Bb, LP), jnp.float32)],          # hidden carry
        ),
        compiler_params=pltpu.CompilerParams(
            # Batch shards are independent (megacore-shardable); time chunks are a
            # true recurrence -> "arbitrary".
            dimension_semantics=("parallel", "arbitrary"),
            vmem_limit_bytes=vmem_limit,
        ),
    )(xp, wx, wh, bp, h0p)

    # Strip batch/time/lane padding (no-op copy when nothing was padded).
    return out[:B, :T, :L]


def _reference(x, w, b, h0):
    """Pure-JAX reference mirroring the PyTorch loop."""
    D = x.shape[-1]
    wx = jnp.transpose(w[:, :D])
    wh = jnp.transpose(w[:, D:])

    def step(h, x_t):
        h_new = jax.nn.relu(x_t @ wx + h @ wh + b)
        return h_new, h_new

    _, hs = jax.lax.scan(step, h0, jnp.transpose(x, (1, 0, 2)))
    return jnp.transpose(hs, (1, 0, 2))


if __name__ == "__main__":
    B, T, D_IN, L = 4, 16, 16, 32

    key = jax.random.PRNGKey(0)
    kx, kw, kb = jax.random.split(key, 3)

    # Deterministic init matching nn.Linear(D_IN + L, L):
    # weight (L, D_IN+L), bias (L,), uniform(-1/sqrt(fan_in), 1/sqrt(fan_in)).
    fan_in = D_IN + L
    bound = 1.0 / (fan_in ** 0.5)
    w = jax.random.uniform(kw, (L, fan_in), jnp.float32, -bound, bound)
    b = jax.random.uniform(kb, (L,), jnp.float32, -bound, bound)
    x = jax.random.normal(kx, (B, T, D_IN), jnp.float32)

    out = rnn_layer(x, w, b)            # zero initial hidden state
    jax.block_until_ready(out)

    ref = _reference(x, w, b, jnp.zeros((B, L), jnp.float32))
    assert out.shape == (B, T, L)
    assert jnp.allclose(out, ref, atol=1e-4, rtol=1e-4), "mismatch vs reference"

    print("KERNEL_OK")
</pallas_src>

<mosaic_0001>
module attributes {stable_mosaic.version = 11 : i64} {
  func.func @_rnn_fused_kernel(%arg0: i32, %arg1: i32, %arg2: memref<8x16x16xf32, #tpu.memory_space<vmem>>, %arg3: memref<16x128xf32, #tpu.memory_space<vmem>>, %arg4: memref<128x128xf32, #tpu.memory_space<vmem>>, %arg5: memref<1x128xf32, #tpu.memory_space<vmem>>, %arg6: memref<8x128xf32, #tpu.memory_space<vmem>>, %arg7: memref<8x16x128xf32, #tpu.memory_space<vmem>>, %arg8: memref<8x128xf32, #tpu.memory_space<vmem>>) attributes {dimension_semantics = [#tpu.dimension_semantics<parallel>, #tpu.dimension_semantics<arbitrary>], iteration_bounds = array<i64: 1, 1>, scalar_prefetch = 0 : i64, scratch_operands = 1 : i64, tpu.core_type = #tpu.core_type<tc>, window_params = [{transform_indices = @transform_0, window_bounds = array<i64: 8, 16, 16>}, {pipeline_mode = #tpu.pipeline_mode<synchronous>, transform_indices = @transform_1, window_bounds = array<i64: 16, 128>}, {pipeline_mode = #tpu.pipeline_mode<synchronous>, transform_indices = @transform_2, window_bounds = array<i64: 128, 128>}, {pipeline_mode = #tpu.pipeline_mode<synchronous>, transform_indices = @transform_3, window_bounds = array<i64: 1, 128>}, {transform_indices = @transform_4, window_bounds = array<i64: 8, 128>}, {transform_indices = @transform_5, window_bounds = array<i64: 8, 16, 128>}]} {
    %c0_i32 = arith.constant 0 : i32
    %0 = arith.cmpi eq, %arg1, %c0_i32 : i32
    %1 = arith.extui %0 : i1 to i32
    %c0_i32_0 = arith.constant 0 : i32
    %2 = arith.cmpi ne, %1, %c0_i32_0 : i32
    scf.if %2 {
      %c0_138 = arith.constant 0 : index
      %c0_139 = arith.constant 0 : index
      %200 = vector.load %arg6[%c0_138, %c0_139] : memref<8x128xf32, #tpu.memory_space<vmem>>, vector<8x128xf32>
      %c0_140 = arith.constant 0 : index
      %c0_141 = arith.constant 0 : index
      %201 = vector.load %arg8[%c0_140, %c0_141] : memref<8x128xf32, #tpu.memory_space<vmem>>, vector<8x128xf32>
      tpu.vector_store %arg8[%c0_140, %c0_141], %200 {strides = array<i32>} : memref<8x128xf32, #tpu.memory_space<vmem>>, vector<8x128xf32>,
    } else {
    }
    %c0 = arith.constant 0 : index
    %c0_1 = arith.constant 0 : index
    %3 = vector.load %arg3[%c0, %c0_1] : memref<16x128xf32, #tpu.memory_space<vmem>>, vector<16x128xf32>
    %c0_2 = arith.constant 0 : index
    %c0_3 = arith.constant 0 : index
    %4 = vector.load %arg4[%c0_2, %c0_3] : memref<128x128xf32, #tpu.memory_space<vmem>>, vector<128x128xf32>
    %c0_4 = arith.constant 0 : index
    %c0_5 = arith.constant 0 : index
    %5 = vector.load %arg5[%c0_4, %c0_5] : memref<1x128xf32, #tpu.memory_space<vmem>>, vector<1x128xf32>
    %c0_6 = arith.constant 0 : index
    %c0_7 = arith.constant 0 : index
    %6 = vector.load %arg8[%c0_6, %c0_7] : memref<8x128xf32, #tpu.memory_space<vmem>>, vector<8x128xf32>
    %c0_8 = arith.constant 0 : index
    %c0_9 = arith.constant 0 : index
    %c0_10 = arith.constant 0 : index
    %7 = vector.load %arg2[%c0_8, %c0_9, %c0_10] : memref<8x16x16xf32, #tpu.memory_space<vmem>>, vector<8x1x16xf32>
    %8 = vector.shape_cast %7 : vector<8x1x16xf32> to vector<8x16xf32>
    %cst = arith.constant dense<0.000000e+00> : vector<8x128xf32>
    %9 = tpu.matmul %8, %3, %cst {dimension_numbers = #tpu.dot_dimension_numbers<[1], [0], [0], [1], [0, 0, 1, 1], [], []>} : vector<8x16xf32>, vector<16x128xf32>, vector<8x128xf32> -> vector<8x128xf32>
    %10 = vector.broadcast %5 : vector<1x128xf32> to vector<8x128xf32>
    %11 = arith.addf %9, %10 : vector<8x128xf32>
    %cst_11 = arith.constant dense<0.000000e+00> : vector<8x128xf32>
    %12 = tpu.matmul %6, %4, %cst_11 {dimension_numbers = #tpu.dot_dimension_numbers<[1], [0], [0], [1], [0, 0, 1, 1], [], []>} : vector<8x128xf32>, vector<128x128xf32>, vector<8x128xf32> -> vector<8x128xf32>
    %13 = arith.addf %11, %12 : vector<8x128xf32>
    %cst_12 = arith.constant 0.000000e+00 : f32
    %14 = vector.broadcast %cst_12 : f32 to vector<8x128xf32>
    %15 = arith.maximumf %13, %14 : vector<8x128xf32>
    %c0_13 = arith.constant 0 : index
    %c0_14 = arith.constant 0 : index
    %c0_15 = arith.constant 0 : index
    %16 = vector.load %arg7[%c0_13, %c0_14, %c0_15] : memref<8x16x128xf32, #tpu.memory_space<vmem>>, vector<8x1x128xf32>
    %17 = vector.shape_cast %16 : vector<8x1x128xf32> to vector<8x128xf32>
    %18 = vector.shape_cast %15 : vector<8x128xf32> to vector<8x1x128xf32>
    tpu.vector_store %arg7[%c0_13, %c0_14, %c0_15], %18 {strides = array<i32>} : memref<8x16x128xf32, #tpu.memory_space<vmem>>, vector<8x1x128xf32>,
    %c0_16 = arith.constant 0 : index
    %c1 = arith.constant 1 : index
    %c0_17 = arith.constant 0 : index
    %19 = vector.load %arg2[%c0_16, %c1, %c0_17] : memref<8x16x16xf32, #tpu.memory_space<vmem>>, vector<8x1x16xf32>
    %20 = vector.shape_cast %19 : vector<8x1x16xf32> to vector<8x16xf32>
    %cst_18 = arith.constant dense<0.000000e+00> : vector<8x128xf32>
    %21 = tpu.matmul %20, %3, %cst_18 {dimension_numbers = #tpu.dot_dimension_numbers<[1], [0], [0], [1], [0, 0, 1, 1], [], []>} : vector<8x16xf32>, vector<16x128xf32>, vector<8x128xf32> -> vector<8x128xf32>
    %22 = vector.broadcast %5 : vector<1x128xf32> to vector<8x128xf32>
    %23 = arith.addf %21, %22 : vector<8x128xf32>
    %cst_19 = arith.constant dense<0.000000e+00> : vector<8x128xf32>
    %24 = tpu.matmul %15, %4, %cst_19 {dimension_numbers = #tpu.dot_dimension_numbers<[1], [0], [0], [1], [0, 0, 1, 1], [], []>} : vector<8x128xf32>, vector<128x128xf32>, vector<8x128xf32> -> vector<8x128xf32>
    %25 = arith.addf %23, %24 : vector<8x128xf32>
    %cst_20 = arith.constant 0.000000e+00 : f32
    %26 = vector.broadcast %cst_20 : f32 to vector<8x128xf32>
    %27 = arith.maximumf %25, %26 : vector<8x128xf32>
    %c0_21 = arith.constant 0 : index
    %c1_22 = arith.constant 1 : index
    %c0_23 = arith.constant 0 : index
    %28 = vector.load %arg7[%c0_21, %c1_22, %c0_23] : memref<8x16x128xf32, #tpu.memory_space<vmem>>, vector<8x1x128xf32>
    %29 = vector.shape_cast %28 : vector<8x1x128xf32> to vector<8x128xf32>
    %30 = vector.shape_cast %27 : vector<8x128xf32> to vector<8x1x128xf32>
    tpu.vector_store %arg7[%c0_21, %c1_22, %c0_23], %30 {strides = array<i32>} : memref<8x16x128xf32, #tpu.memory_space<vmem>>, vector<8x1x128xf32>,
    %c0_24 = arith.constant 0 : index
    %c2 = arith.constant 2 : index
    %c0_25 = arith.constant 0 : index
    %31 = vector.load %arg2[%c0_24, %c2, %c0_25] : memref<8x16x16xf32, #tpu.memory_space<vmem>>, vector<8x1x16xf32>
    %32 = vector.shape_cast %31 : vector<8x1x16xf32> to vector<8x16xf32>
    %cst_26 = arith.constant dense<0.000000e+00> : vector<8x128xf32>
    %33 = tpu.matmul %32, %3, %cst_26 {dimension_numbers = #tpu.dot_dimension_numbers<[1], [0], [0], [1], [0, 0, 1, 1], [], []>} : vector<8x16xf32>, vector<16x128xf32>, vector<8x128xf32> -> vector<8x128xf32>
    %34 = vector.broadcast %5 : vector<1x128xf32> to vector<8x128xf32>
    %35 = arith.addf %33, %34 : vector<8x128xf32>
    %cst_27 = arith.constant dense<0.000000e+00> : vector<8x128xf32>
    %36 = tpu.matmul %27, %4, %cst_27 {dimension_numbers = #tpu.dot_dimension_numbers<[1], [0], [0], [1], [0, 0, 1, 1], [], []>} : vector<8x128xf32>, vector<128x128xf32>, vector<8x128xf32> -> vector<8x128xf32>
    %37 = arith.addf %35, %36 : vector<8x128xf32>
    %cst_28 = arith.constant 0.000000e+00 : f32
    %38 = vector.broadcast %cst_28 : f32 to vector<8x128xf32>
    %39 = arith.maximumf %37, %38 : vector<8x128xf32>
    %c0_29 = arith.constant 0 : index
    %c2_30 = arith.constant 2 : index
    %c0_31 = arith.constant 0 : index
    %40 = vector.load %arg7[%c0_29, %c2_30, %c0_31] : memref<8x16x128xf32, #tpu.memory_space<vmem>>, vector<8x1x128xf32>
    %41 = vector.shape_cast %40 : vector<8x1x128xf32> to vector<8x128xf32>
    %42 = vector.shape_cast %39 : vector<8x128xf32> to vector<8x1x128xf32>
    tpu.vector_store %arg7[%c0_29, %c2_30, %c0_31], %42 {strides = array<i32>} : memref<8x16x128xf32, #tpu.memory_space<vmem>>, vector<8x1x128xf32>,
    %c0_32 = arith.constant 0 : index
    %c3 = arith.constant 3 : index
    %c0_33 = arith.constant 0 : index
    %43 = vector.load %arg2[%c0_32, %c3, %c0_33] : memref<8x16x16xf32, #tpu.memory_space<vmem>>, vector<8x1x16xf32>
    %44 = vector.shape_cast %43 : vector<8x1x16xf32> to vector<8x16xf32>
    %cst_34 = arith.constant dense<0.000000e+00> : vector<8x128xf32>
    %45 = tpu.matmul %44, %3, %cst_34 {dimension_numbers = #tpu.dot_dimension_numbers<[1], [0], [0], [1], [0, 0, 1, 1], [], []>} : vector<8x16xf32>, vector<16x128xf32>, vector<8x128xf32> -> vector<8x128xf32>
    %46 = vector.broadcast %5 : vector<1x128xf32> to vector<8x128xf32>
    %47 = arith.addf %45, %46 : vector<8x128xf32>
    %cst_35 = arith.constant dense<0.000000e+00> : vector<8x128xf32>
    %48 = tpu.matmul %39, %4, %cst_35 {dimension_numbers = #tpu.dot_dimension_numbers<[1], [0], [0], [1], [0, 0, 1, 1], [], []>} : vector<8x128xf32>, vector<128x128xf32>, vector<8x128xf32> -> vector<8x128xf32>
    %49 = arith.addf %47, %48 : vector<8x128xf32>
    %cst_36 = arith.constant 0.000000e+00 : f32
    %50 = vector.broadcast %cst_36 : f32 to vector<8x128xf32>
    %51 = arith.maximumf %49, %50 : vector<8x128xf32>
    %c0_37 = arith.constant 0 : index
    %c3_38 = arith.constant 3 : index
    %c0_39 = arith.constant 0 : index
    %52 = vector.load %arg7[%c0_37, %c3_38, %c0_39] : memref<8x16x128xf32, #tpu.memory_space<vmem>>, vector<8x1x128xf32>
    %53 = vector.shape_cast %52 : vector<8x1x128xf32> to vector<8x128xf32>
    %54 = vector.shape_cast %51 : vector<8x128xf32> to vector<8x1x128xf32>
    tpu.vector_store %arg7[%c0_37, %c3_38, %c0_39], %54 {strides = array<i32>} : memref<8x16x128xf32, #tpu.memory_space<vmem>>, vector<8x1x128xf32>,
    %c0_40 = arith.constant 0 : index
    %c4 = arith.constant 4 : index
    %c0_41 = arith.constant 0 : index
    %55 = vector.load %arg2[%c0_40, %c4, %c0_41] : memref<8x16x16xf32, #tpu.memory_space<vmem>>, vector<8x1x16xf32>
    %56 = vector.shape_cast %55 : vector<8x1x16xf32> to vector<8x16xf32>
    %cst_42 = arith.constant dense<0.000000e+00> : vector<8x128xf32>
    %57 = tpu.matmul %56, %3, %cst_42 {dimension_numbers = #tpu.dot_dimension_numbers<[1], [0], [0], [1], [0, 0, 1, 1], [], []>} : vector<8x16xf32>, vector<16x128xf32>, vector<8x128xf32> -> vector<8x128xf32>
    %58 = vector.broadcast %5 : vector<1x128xf32> to vector<8x128xf32>
    %59 = arith.addf %57, %58 : vector<8x128xf32>
    %cst_43 = arith.constant dense<0.000000e+00> : vector<8x128xf32>
    %60 = tpu.matmul %51, %4, %cst_43 {dimension_numbers = #tpu.dot_dimension_numbers<[1], [0], [0], [1], [0, 0, 1, 1], [], []>} : vector<8x128xf32>, vector<128x128xf32>, vector<8x128xf32> -> vector<8x128xf32>
    %61 = arith.addf %59, %60 : vector<8x128xf32>
    %cst_44 = arith.constant 0.000000e+00 : f32
    %62 = vector.broadcast %cst_44 : f32 to vector<8x128xf32>
    %63 = arith.maximumf %61, %62 : vector<8x128xf32>
    %c0_45 = arith.constant 0 : index
    %c4_46 = arith.constant 4 : index
    %c0_47 = arith.constant 0 : index
    %64 = vector.load %arg7[%c0_45, %c4_46, %c0_47] : memref<8x16x128xf32, #tpu.memory_space<vmem>>, vector<8x1x128xf32>
    %65 = vector.shape_cast %64 : vector<8x1x128xf32> to vector<8x128xf32>
    %66 = vector.shape_cast %63 : vector<8x128xf32> to vector<8x1x128xf32>
    tpu.vector_store %arg7[%c0_45, %c4_46, %c0_47], %66 {strides = array<i32>} : memref<8x16x128xf32, #tpu.memory_space<vmem>>, vector<8x1x128xf32>,
    %c0_48 = arith.constant 0 : index
    %c5 = arith.constant 5 : index
    %c0_49 = arith.constant 0 : index
    %67 = vector.load %arg2[%c0_48, %c5, %c0_49] : memref<8x16x16xf32, #tpu.memory_space<vmem>>, vector<8x1x16xf32>
    %68 = vector.shape_cast %67 : vector<8x1x16xf32> to vector<8x16xf32>
    %cst_50 = arith.constant dense<0.000000e+00> : vector<8x128xf32>
    %69 = tpu.matmul %68, %3, %cst_50 {dimension_numbers = #tpu.dot_dimension_numbers<[1], [0], [0], [1], [0, 0, 1, 1], [], []>} : vector<8x16xf32>, vector<16x128xf32>, vector<8x128xf32> -> vector<8x128xf32>
    %70 = vector.broadcast %5 : vector<1x128xf32> to vector<8x128xf32>
    %71 = arith.addf %69, %70 : vector<8x128xf32>
    %cst_51 = arith.constant dense<0.000000e+00> : vector<8x128xf32>
    %72 = tpu.matmul %63, %4, %cst_51 {dimension_numbers = #tpu.dot_dimension_numbers<[1], [0], [0], [1], [0, 0, 1, 1], [], []>} : vector<8x128xf32>, vector<128x128xf32>, vector<8x128xf32> -> vector<8x128xf32>
    %73 = arith.addf %71, %72 : vector<8x128xf32>
    %cst_52 = arith.constant 0.000000e+00 : f32
    %74 = vector.broadcast %cst_52 : f32 to vector<8x128xf32>
    %75 = arith.maximumf %73, %74 : vector<8x128xf32>
    %c0_53 = arith.constant 0 : index
    %c5_54 = arith.constant 5 : index
    %c0_55 = arith.constant 0 : index
    %76 = vector.load %arg7[%c0_53, %c5_54, %c0_55] : memref<8x16x128xf32, #tpu.memory_space<vmem>>, vector<8x1x128xf32>
    %77 = vector.shape_cast %76 : vector<8x1x128xf32> to vector<8x128xf32>
    %78 = vector.shape_cast %75 : vector<8x128xf32> to vector<8x1x128xf32>
    tpu.vector_store %arg7[%c0_53, %c5_54, %c0_55], %78 {strides = array<i32>} : memref<8x16x128xf32, #tpu.memory_space<vmem>>, vector<8x1x128xf32>,
    %c0_56 = arith.constant 0 : index
    %c6 = arith.constant 6 : index
    %c0_57 = arith.constant 0 : index
    %79 = vector.load %arg2[%c0_56, %c6, %c0_57] : memref<8x16x16xf32, #tpu.memory_space<vmem>>, vector<8x1x16xf32>
    %80 = vector.shape_cast %79 : vector<8x1x16xf32> to vector<8x16xf32>
    %cst_58 = arith.constant dense<0.000000e+00> : vector<8x128xf32>
    %81 = tpu.matmul %80, %3, %cst_58 {dimension_numbers = #tpu.dot_dimension_numbers<[1], [0], [0], [1], [0, 0, 1, 1], [], []>} : vector<8x16xf32>, vector<16x128xf32>, vector<8x128xf32> -> vector<8x128xf32>
    %82 = vector.broadcast %5 : vector<1x128xf32> to vector<8x128xf32>
    %83 = arith.addf %81, %82 : vector<8x128xf32>
    %cst_59 = arith.constant dense<0.000000e+00> : vector<8x128xf32>
    %84 = tpu.matmul %75, %4, %cst_59 {dimension_numbers = #tpu.dot_dimension_numbers<[1], [0], [0], [1], [0, 0, 1, 1], [], []>} : vector<8x128xf32>, vector<128x128xf32>, vector<8x128xf32> -> vector<8x128xf32>
    %85 = arith.addf %83, %84 : vector<8x128xf32>
    %cst_60 = arith.constant 0.000000e+00 : f32
    %86 = vector.broadcast %cst_60 : f32 to vector<8x128xf32>
    %87 = arith.maximumf %85, %86 : vector<8x128xf32>
    %c0_61 = arith.constant 0 : index
    %c6_62 = arith.constant 6 : index
    %c0_63 = arith.constant 0 : index
    %88 = vector.load %arg7[%c0_61, %c6_62, %c0_63] : memref<8x16x128xf32, #tpu.memory_space<vmem>>, vector<8x1x128xf32>
    %89 = vector.shape_cast %88 : vector<8x1x128xf32> to vector<8x128xf32>
    %90 = vector.shape_cast %87 : vector<8x128xf32> to vector<8x1x128xf32>
    tpu.vector_store %arg7[%c0_61, %c6_62, %c0_63], %90 {strides = array<i32>} : memref<8x16x128xf32, #tpu.memory_space<vmem>>, vector<8x1x128xf32>,
    %c0_64 = arith.constant 0 : index
    %c7 = arith.constant 7 : index
    %c0_65 = arith.constant 0 : index
    %91 = vector.load %arg2[%c0_64, %c7, %c0_65] : memref<8x16x16xf32, #tpu.memory_space<vmem>>, vector<8x1x16xf32>
    %92 = vector.shape_cast %91 : vector<8x1x16xf32> to vector<8x16xf32>
    %cst_66 = arith.constant dense<0.000000e+00> : vector<8x128xf32>
    %93 = tpu.matmul %92, %3, %cst_66 {dimension_numbers = #tpu.dot_dimension_numbers<[1], [0], [0], [1], [0, 0, 1, 1], [], []>} : vector<8x16xf32>, vector<16x128xf32>, vector<8x128xf32> -> vector<8x128xf32>
    %94 = vector.broadcast %5 : vector<1x128xf32> to vector<8x128xf32>
    %95 = arith.addf %93, %94 : vector<8x128xf32>
    %cst_67 = arith.constant dense<0.000000e+00> : vector<8x128xf32>
    %96 = tpu.matmul %87, %4, %cst_67 {dimension_numbers = #tpu.dot_dimension_numbers<[1], [0], [0], [1], [0, 0, 1, 1], [], []>} : vector<8x128xf32>, vector<128x128xf32>, vector<8x128xf32> -> vector<8x128xf32>
    %97 = arith.addf %95, %96 : vector<8x128xf32>
    %cst_68 = arith.constant 0.000000e+00 : f32
    %98 = vector.broadcast %cst_68 : f32 to vector<8x128xf32>
    %99 = arith.maximumf %97, %98 : vector<8x128xf32>
    %c0_69 = arith.constant 0 : index
    %c7_70 = arith.constant 7 : index
    %c0_71 = arith.constant 0 : index
    %100 = vector.load %arg7[%c0_69, %c7_70, %c0_71] : memref<8x16x128xf32, #tpu.memory_space<vmem>>, vector<8x1x128xf32>
    %101 = vector.shape_cast %100 : vector<8x1x128xf32> to vector<8x128xf32>
    %102 = vector.shape_cast %99 : vector<8x128xf32> to vector<8x1x128xf32>
    tpu.vector_store %arg7[%c0_69, %c7_70, %c0_71], %102 {strides = array<i32>} : memref<8x16x128xf32, #tpu.memory_space<vmem>>, vector<8x1x128xf32>,
    %c0_72 = arith.constant 0 : index
    %c8 = arith.constant 8 : index
    %c0_73 = arith.constant 0 : index
    %103 = vector.load %arg2[%c0_72, %c8, %c0_73] : memref<8x16x16xf32, #tpu.memory_space<vmem>>, vector<8x1x16xf32>
    %104 = vector.shape_cast %103 : vector<8x1x16xf32> to vector<8x16xf32>
    %cst_74 = arith.constant dense<0.000000e+00> : vector<8x128xf32>
    %105 = tpu.matmul %104, %3, %cst_74 {dimension_numbers = #tpu.dot_dimension_numbers<[1], [0], [0], [1], [0, 0, 1, 1], [], []>} : vector<8x16xf32>, vector<16x128xf32>, vector<8x128xf32> -> vector<8x128xf32>
    %106 = vector.broadcast %5 : vector<1x128xf32> to vector<8x128xf32>
    %107 = arith.addf %105, %106 : vector<8x128xf32>
    %cst_75 = arith.constant dense<0.000000e+00> : vector<8x128xf32>
    %108 = tpu.matmul %99, %4, %cst_75 {dimension_numbers = #tpu.dot_dimension_numbers<[1], [0], [0], [1], [0, 0, 1, 1], [], []>} : vector<8x128xf32>, vector<128x128xf32>, vector<8x128xf32> -> vector<8x128xf32>
    %109 = arith.addf %107, %108 : vector<8x128xf32>
    %cst_76 = arith.constant 0.000000e+00 : f32
    %110 = vector.broadcast %cst_76 : f32 to vector<8x128xf32>
    %111 = arith.maximumf %109, %110 : vector<8x128xf32>
    %c0_77 = arith.constant 0 : index
    %c8_78 = arith.constant 8 : index
    %c0_79 = arith.constant 0 : index
    %112 = vector.load %arg7[%c0_77, %c8_78, %c0_79] : memref<8x16x128xf32, #tpu.memory_space<vmem>>, vector<8x1x128xf32>
    %113 = vector.shape_cast %112 : vector<8x1x128xf32> to vector<8x128xf32>
    %114 = vector.shape_cast %111 : vector<8x128xf32> to vector<8x1x128xf32>
    tpu.vector_store %arg7[%c0_77, %c8_78, %c0_79], %114 {strides = array<i32>} : memref<8x16x128xf32, #tpu.memory_space<vmem>>, vector<8x1x128xf32>,
    %c0_80 = arith.constant 0 : index
    %c9 = arith.constant 9 : index
    %c0_81 = arith.constant 0 : index
    %115 = vector.load %arg2[%c0_80, %c9, %c0_81] : memref<8x16x16xf32, #tpu.memory_space<vmem>>, vector<8x1x16xf32>
    %116 = vector.shape_cast %115 : vector<8x1x16xf32> to vector<8x16xf32>
    %cst_82 = arith.constant dense<0.000000e+00> : vector<8x128xf32>
    %117 = tpu.matmul %116, %3, %cst_82 {dimension_numbers = #tpu.dot_dimension_numbers<[1], [0], [0], [1], [0, 0, 1, 1], [], []>} : vector<8x16xf32>, vector<16x128xf32>, vector<8x128xf32> -> vector<8x128xf32>
    %118 = vector.broadcast %5 : vector<1x128xf32> to vector<8x128xf32>
    %119 = arith.addf %117, %118 : vector<8x128xf32>
    %cst_83 = arith.constant dense<0.000000e+00> : vector<8x128xf32>
    %120 = tpu.matmul %111, %4, %cst_83 {dimension_numbers = #tpu.dot_dimension_numbers<[1], [0], [0], [1], [0, 0, 1, 1], [], []>} : vector<8x128xf32>, vector<128x128xf32>, vector<8x128xf32> -> vector<8x128xf32>
    %121 = arith.addf %119, %120 : vector<8x128xf32>
    %cst_84 = arith.constant 0.000000e+00 : f32
    %122 = vector.broadcast %cst_84 : f32 to vector<8x128xf32>
    %123 = arith.maximumf %121, %122 : vector<8x128xf32>
    %c0_85 = arith.constant 0 : index
    %c9_86 = arith.constant 9 : index
    %c0_87 = arith.constant 0 : index
    %124 = vector.load %arg7[%c0_85, %c9_86, %c0_87] : memref<8x16x128xf32, #tpu.memory_space<vmem>>, vector<8x1x128xf32>
    %125 = vector.shape_cast %124 : vector<8x1x128xf32> to vector<8x128xf32>
    %126 = vector.shape_cast %123 : vector<8x128xf32> to vector<8x1x128xf32>
    tpu.vector_store %arg7[%c0_85, %c9_86, %c0_87], %126 {strides = array<i32>} : memref<8x16x128xf32, #tpu.memory_space<vmem>>, vector<8x1x128xf32>,
    %c0_88 = arith.constant 0 : index
    %c10 = arith.constant 10 : index
    %c0_89 = arith.constant 0 : index
    %127 = vector.load %arg2[%c0_88, %c10, %c0_89] : memref<8x16x16xf32, #tpu.memory_space<vmem>>, vector<8x1x16xf32>
    %128 = vector.shape_cast %127 : vector<8x1x16xf32> to vector<8x16xf32>
    %cst_90 = arith.constant dense<0.000000e+00> : vector<8x128xf32>
    %129 = tpu.matmul %128, %3, %cst_90 {dimension_numbers = #tpu.dot_dimension_numbers<[1], [0], [0], [1], [0, 0, 1, 1], [], []>} : vector<8x16xf32>, vector<16x128xf32>, vector<8x128xf32> -> vector<8x128xf32>
    %130 = vector.broadcast %5 : vector<1x128xf32> to vector<8x128xf32>
    %131 = arith.addf %129, %130 : vector<8x128xf32>
    %cst_91 = arith.constant dense<0.000000e+00> : vector<8x128xf32>
    %132 = tpu.matmul %123, %4, %cst_91 {dimension_numbers = #tpu.dot_dimension_numbers<[1], [0], [0], [1], [0, 0, 1, 1], [], []>} : vector<8x128xf32>, vector<128x128xf32>, vector<8x128xf32> -> vector<8x128xf32>
    %133 = arith.addf %131, %132 : vector<8x128xf32>
    %cst_92 = arith.constant 0.000000e+00 : f32
    %134 = vector.broadcast %cst_92 : f32 to vector<8x128xf32>
    %135 = arith.maximumf %133, %134 : vector<8x128xf32>
    %c0_93 = arith.constant 0 : index
    %c10_94 = arith.constant 10 : index
    %c0_95 = arith.constant 0 : index
    %136 = vector.load %arg7[%c0_93, %c10_94, %c0_95] : memref<8x16x128xf32, #tpu.memory_space<vmem>>, vector<8x1x128xf32>
    %137 = vector.shape_cast %136 : vector<8x1x128xf32> to vector<8x128xf32>
    %138 = vector.shape_cast %135 : vector<8x128xf32> to vector<8x1x128xf32>
    tpu.vector_store %arg7[%c0_93, %c10_94, %c0_95], %138 {strides = array<i32>} : memref<8x16x128xf32, #tpu.memory_space<vmem>>, vector<8x1x128xf32>,
    %c0_96 = arith.constant 0 : index
    %c11 = arith.constant 11 : index
    %c0_97 = arith.constant 0 : index
    %139 = vector.load %arg2[%c0_96, %c11, %c0_97] : memref<8x16x16xf32, #tpu.memory_space<vmem>>, vector<8x1x16xf32>
    %140 = vector.shape_cast %139 : vector<8x1x16xf32> to vector<8x16xf32>
    %cst_98 = arith.constant dense<0.000000e+00> : vector<8x128xf32>
    %141 = tpu.matmul %140, %3, %cst_98 {dimension_numbers = #tpu.dot_dimension_numbers<[1], [0], [0], [1], [0, 0, 1, 1], [], []>} : vector<8x16xf32>, vector<16x128xf32>, vector<8x128xf32> -> vector<8x128xf32>
    %142 = vector.broadcast %5 : vector<1x128xf32> to vector<8x128xf32>
    %143 = arith.addf %141, %142 : vector<8x128xf32>
    %cst_99 = arith.constant dense<0.000000e+00> : vector<8x128xf32>
    %144 = tpu.matmul %135, %4, %cst_99 {dimension_numbers = #tpu.dot_dimension_numbers<[1], [0], [0], [1], [0, 0, 1, 1], [], []>} : vector<8x128xf32>, vector<128x128xf32>, vector<8x128xf32> -> vector<8x128xf32>
    %145 = arith.addf %143, %144 : vector<8x128xf32>
    %cst_100 = arith.constant 0.000000e+00 : f32
    %146 = vector.broadcast %cst_100 : f32 to vector<8x128xf32>
    %147 = arith.maximumf %145, %146 : vector<8x128xf32>
    %c0_101 = arith.constant 0 : index
    %c11_102 = arith.constant 11 : index
    %c0_103 = arith.constant 0 : index
    %148 = vector.load %arg7[%c0_101, %c11_102, %c0_103] : memref<8x16x128xf32, #tpu.memory_space<vmem>>, vector<8x1x128xf32>
    %149 = vector.shape_cast %148 : vector<8x1x128xf32> to vector<8x128xf32>
    %150 = vector.shape_cast %147 : vector<8x128xf32> to vector<8x1x128xf32>
    tpu.vector_store %arg7[%c0_101, %c11_102, %c0_103], %150 {strides = array<i32>} : memref<8x16x128xf32, #tpu.memory_space<vmem>>, vector<8x1x128xf32>,
    %c0_104 = arith.constant 0 : index
    %c12 = arith.constant 12 : index
    %c0_105 = arith.constant 0 : index
    %151 = vector.load %arg2[%c0_104, %c12, %c0_105] : memref<8x16x16xf32, #tpu.memory_space<vmem>>, vector<8x1x16xf32>
    %152 = vector.shape_cast %151 : vector<8x1x16xf32> to vector<8x16xf32>
    %cst_106 = arith.constant dense<0.000000e+00> : vector<8x128xf32>
    %153 = tpu.matmul %152, %3, %cst_106 {dimension_numbers = #tpu.dot_dimension_numbers<[1], [0], [0], [1], [0, 0, 1, 1], [], []>} : vector<8x16xf32>, vector<16x128xf32>, vector<8x128xf32> -> vector<8x128xf32>
    %154 = vector.broadcast %5 : vector<1x128xf32> to vector<8x128xf32>
    %155 = arith.addf %153, %154 : vector<8x128xf32>
    %cst_107 = arith.constant dense<0.000000e+00> : vector<8x128xf32>
    %156 = tpu.matmul %147, %4, %cst_107 {dimension_numbers = #tpu.dot_dimension_numbers<[1], [0], [0], [1], [0, 0, 1, 1], [], []>} : vector<8x128xf32>, vector<128x128xf32>, vector<8x128xf32> -> vector<8x128xf32>
    %157 = arith.addf %155, %156 : vector<8x128xf32>
    %cst_108 = arith.constant 0.000000e+00 : f32
    %158 = vector.broadcast %cst_108 : f32 to vector<8x128xf32>
    %159 = arith.maximumf %157, %158 : vector<8x128xf32>
    %c0_109 = arith.constant 0 : index
    %c12_110 = arith.constant 12 : index
    %c0_111 = arith.constant 0 : index
    %160 = vector.load %arg7[%c0_109, %c12_110, %c0_111] : memref<8x16x128xf32, #tpu.memory_space<vmem>>, vector<8x1x128xf32>
    %161 = vector.shape_cast %160 : vector<8x1x128xf32> to vector<8x128xf32>
    %162 = vector.shape_cast %159 : vector<8x128xf32> to vector<8x1x128xf32>
    tpu.vector_store %arg7[%c0_109, %c12_110, %c0_111], %162 {strides = array<i32>} : memref<8x16x128xf32, #tpu.memory_space<vmem>>, vector<8x1x128xf32>,
    %c0_112 = arith.constant 0 : index
    %c13 = arith.constant 13 : index
    %c0_113 = arith.constant 0 : index
    %163 = vector.load %arg2[%c0_112, %c13, %c0_113] : memref<8x16x16xf32, #tpu.memory_space<vmem>>, vector<8x1x16xf32>
    %164 = vector.shape_cast %163 : vector<8x1x16xf32> to vector<8x16xf32>
    %cst_114 = arith.constant dense<0.000000e+00> : vector<8x128xf32>
    %165 = tpu.matmul %164, %3, %cst_114 {dimension_numbers = #tpu.dot_dimension_numbers<[1], [0], [0], [1], [0, 0, 1, 1], [], []>} : vector<8x16xf32>, vector<16x128xf32>, vector<8x128xf32> -> vector<8x128xf32>
    %166 = vector.broadcast %5 : vector<1x128xf32> to vector<8x128xf32>
    %167 = arith.addf %165, %166 : vector<8x128xf32>
    %cst_115 = arith.constant dense<0.000000e+00> : vector<8x128xf32>
    %168 = tpu.matmul %159, %4, %cst_115 {dimension_numbers = #tpu.dot_dimension_numbers<[1], [0], [0], [1], [0, 0, 1, 1], [], []>} : vector<8x128xf32>, vector<128x128xf32>, vector<8x128xf32> -> vector<8x128xf32>
    %169 = arith.addf %167, %168 : vector<8x128xf32>
    %cst_116 = arith.constant 0.000000e+00 : f32
    %170 = vector.broadcast %cst_116 : f32 to vector<8x128xf32>
    %171 = arith.maximumf %169, %170 : vector<8x128xf32>
    %c0_117 = arith.constant 0 : index
    %c13_118 = arith.constant 13 : index
    %c0_119 = arith.constant 0 : index
    %172 = vector.load %arg7[%c0_117, %c13_118, %c0_119] : memref<8x16x128xf32, #tpu.memory_space<vmem>>, vector<8x1x128xf32>
    %173 = vector.shape_cast %172 : vector<8x1x128xf32> to vector<8x128xf32>
    %174 = vector.shape_cast %171 : vector<8x128xf32> to vector<8x1x128xf32>
    tpu.vector_store %arg7[%c0_117, %c13_118, %c0_119], %174 {strides = array<i32>} : memref<8x16x128xf32, #tpu.memory_space<vmem>>, vector<8x1x128xf32>,
    %c0_120 = arith.constant 0 : index
    %c14 = arith.constant 14 : index
    %c0_121 = arith.constant 0 : index
    %175 = vector.load %arg2[%c0_120, %c14, %c0_121] : memref<8x16x16xf32, #tpu.memory_space<vmem>>, vector<8x1x16xf32>
    %176 = vector.shape_cast %175 : vector<8x1x16xf32> to vector<8x16xf32>
    %cst_122 = arith.constant dense<0.000000e+00> : vector<8x128xf32>
    %177 = tpu.matmul %176, %3, %cst_122 {dimension_numbers = #tpu.dot_dimension_numbers<[1], [0], [0], [1], [0, 0, 1, 1], [], []>} : vector<8x16xf32>, vector<16x128xf32>, vector<8x128xf32> -> vector<8x128xf32>
    %178 = vector.broadcast %5 : vector<1x128xf32> to vector<8x128xf32>
    %179 = arith.addf %177, %178 : vector<8x128xf32>
    %cst_123 = arith.constant dense<0.000000e+00> : vector<8x128xf32>
    %180 = tpu.matmul %171, %4, %cst_123 {dimension_numbers = #tpu.dot_dimension_numbers<[1], [0], [0], [1], [0, 0, 1, 1], [], []>} : vector<8x128xf32>, vector<128x128xf32>, vector<8x128xf32> -> vector<8x128xf32>
    %181 = arith.addf %179, %180 : vector<8x128xf32>
    %cst_124 = arith.constant 0.000000e+00 : f32
    %182 = vector.broadcast %cst_124 : f32 to vector<8x128xf32>
    %183 = arith.maximumf %181, %182 : vector<8x128xf32>
    %c0_125 = arith.constant 0 : index
    %c14_126 = arith.constant 14 : index
    %c0_127 = arith.constant 0 : index
    %184 = vector.load %arg7[%c0_125, %c14_126, %c0_127] : memref<8x16x128xf32, #tpu.memory_space<vmem>>, vector<8x1x128xf32>
    %185 = vector.shape_cast %184 : vector<8x1x128xf32> to vector<8x128xf32>
    %186 = vector.shape_cast %183 : vector<8x128xf32> to vector<8x1x128xf32>
    tpu.vector_store %arg7[%c0_125, %c14_126, %c0_127], %186 {strides = array<i32>} : memref<8x16x128xf32, #tpu.memory_space<vmem>>, vector<8x1x128xf32>,
    %c0_128 = arith.constant 0 : index
    %c15 = arith.constant 15 : index
    %c0_129 = arith.constant 0 : index
    %187 = vector.load %arg2[%c0_128, %c15, %c0_129] : memref<8x16x16xf32, #tpu.memory_space<vmem>>, vector<8x1x16xf32>
    %188 = vector.shape_cast %187 : vector<8x1x16xf32> to vector<8x16xf32>
    %cst_130 = arith.constant dense<0.000000e+00> : vector<8x128xf32>
    %189 = tpu.matmul %188, %3, %cst_130 {dimension_numbers = #tpu.dot_dimension_numbers<[1], [0], [0], [1], [0, 0, 1, 1], [], []>} : vector<8x16xf32>, vector<16x128xf32>, vector<8x128xf32> -> vector<8x128xf32>
    %190 = vector.broadcast %5 : vector<1x128xf32> to vector<8x128xf32>
    %191 = arith.addf %189, %190 : vector<8x128xf32>
    %cst_131 = arith.constant dense<0.000000e+00> : vector<8x128xf32>
    %192 = tpu.matmul %183, %4, %cst_131 {dimension_numbers = #tpu.dot_dimension_numbers<[1], [0], [0], [1], [0, 0, 1, 1], [], []>} : vector<8x128xf32>, vector<128x128xf32>, vector<8x128xf32> -> vector<8x128xf32>
    %193 = arith.addf %191, %192 : vector<8x128xf32>
    %cst_132 = arith.constant 0.000000e+00 : f32
    %194 = vector.broadcast %cst_132 : f32 to vector<8x128xf32>
    %195 = arith.maximumf %193, %194 : vector<8x128xf32>
    %c0_133 = arith.constant 0 : index
    %c15_134 = arith.constant 15 : index
    %c0_135 = arith.constant 0 : index
    %196 = vector.load %arg7[%c0_133, %c15_134, %c0_135] : memref<8x16x128xf32, #tpu.memory_space<vmem>>, vector<8x1x128xf32>
    %197 = vector.shape_cast %196 : vector<8x1x128xf32> to vector<8x128xf32>
    %198 = vector.shape_cast %195 : vector<8x128xf32> to vector<8x1x128xf32>
    tpu.vector_store %arg7[%c0_133, %c15_134, %c0_135], %198 {strides = array<i32>} : memref<8x16x128xf32, #tpu.memory_space<vmem>>, vector<8x1x128xf32>,
    %c0_136 = arith.constant 0 : index
    %c0_137 = arith.constant 0 : index
    %199 = vector.load %arg8[%c0_136, %c0_137] : memref<8x128xf32, #tpu.memory_space<vmem>>, vector<8x128xf32>
    tpu.vector_store %arg8[%c0_136, %c0_137], %195 {strides = array<i32>} : memref<8x128xf32, #tpu.memory_space<vmem>>, vector<8x128xf32>,
    return
  }
  func.func @transform_0(%arg0: i32, %arg1: i32) -> (i32, i32, i32) {
    %c0_i32 = arith.constant 0 : i32
    %c0_i32_0 = arith.constant 0 : i32
    return %arg0, %arg1, %c0_i32 : i32, i32, i32
  }
  func.func @transform_1(%arg0: i32, %arg1: i32) -> (i32, i32) {
    %c0_i32 = arith.constant 0 : i32
    %c0_i32_0 = arith.constant 0 : i32
    %c0_i32_1 = arith.constant 0 : i32
    return %c0_i32, %c0_i32_0 : i32, i32
  }
  func.func @transform_2(%arg0: i32, %arg1: i32) -> (i32, i32) {
    %c0_i32 = arith.constant 0 : i32
    %c0_i32_0 = arith.constant 0 : i32
    %c0_i32_1 = arith.constant 0 : i32
    return %c0_i32, %c0_i32_0 : i32, i32
  }
  func.func @transform_3(%arg0: i32, %arg1: i32) -> (i32, i32) {
    %c0_i32 = arith.constant 0 : i32
    %c0_i32_0 = arith.constant 0 : i32
    %c0_i32_1 = arith.constant 0 : i32
    return %c0_i32, %c0_i32_0 : i32, i32
  }
  func.func @transform_4(%arg0: i32, %arg1: i32) -> (i32, i32) {
    %c0_i32 = arith.constant 0 : i32
    %c0_i32_0 = arith.constant 0 : i32
    return %arg0, %c0_i32 : i32, i32
  }
  func.func @transform_5(%arg0: i32, %arg1: i32) -> (i32, i32, i32) {
    %c0_i32 = arith.constant 0 : i32
    %c0_i32_0 = arith.constant 0 : i32
    return %arg0, %arg1, %c0_i32 : i32, i32, i32
  }
}

</mosaic_0001>

<llo_original>
// kernel: rnn_layer.1
$region0: #{rnn_layer.1}
  #allocation0 [shape = 'u32[]', space=smem, size = 0x4, offset = 0x4, fixed_abs, tag = 'smem constant byte address 0x4 - core index']
  #allocation1 [shape = 'u32[144,128]{1,0:T(1,128)}', space=vmem, size = 0x12000, scoped, tag = 'internal scratch']
  #allocation2 [shape = 'f32[8,128]{1,0:T(8,128)}', space=vmem, size = 0x1000, scoped, tag = 'scratch operand']
  %s0 = inlined_call_operand.vmem [shape: f32[8,16,16], index: 0, kind: input, shape index: {}]
  %s1 = inlined_call_operand.vmem [shape: f32[16,128], index: 1, kind: input, shape index: {}]
  %s2 = inlined_call_operand.vmem [shape: f32[128,128], index: 2, kind: input, shape index: {}]
  %s3 = inlined_call_operand.vmem [shape: f32[1,128], index: 3, kind: input, shape index: {}]
  %s4 = inlined_call_operand.vmem [shape: f32[8,128], index: 4, kind: input, shape index: {}]
  %s5 = inlined_call_operand.vmem [shape: f32[8,16,128], index: 5, kind: output, shape index: {}]
  %s6 = sld [smem:[#allocation0]]
  $region34: #{rnn_layer.1} parent=0
    _
  %s8 = ssub.s32 1, %s6
  %s9 = scalar_select 0, %s8, %s6
  // Predicated region
  $region2: #{rnn_layer.1} parent=0 // pred_check
    _
  $region3: #{rnn_layer.1} parent=0 // pred_check_branch
    %11 = sbr.rel (0) target = $region5
  $region4: #{rnn_layer.1} parent=0 // pred_region
    _
  $region5: #{rnn_layer.1} parent=0 // pred_fallthru
    _
  // Predicated region
  $region6: #{rnn_layer.1} parent=0 // pred_check
    _
  $region7: #{rnn_layer.1} parent=0 // pred_check_branch
    %13 = sbr.rel (0) target = $region9
  $region8: #{rnn_layer.1} parent=0 // pred_region
    _
  $region9: #{rnn_layer.1} parent=0 // pred_fallthru
    _
  // Predicated region
  $region10: #{rnn_layer.1} parent=0 // pred_check
    _
  $region11: #{rnn_layer.1} parent=0 // pred_check_branch
    %15 = sbr.rel (0) target = $region13
  $region12: #{rnn_layer.1} parent=0 // pred_region
    _
  $region13: #{rnn_layer.1} parent=0 // pred_fallthru
    _
  // Predicated region
  $region14: #{rnn_layer.1} parent=0 // pred_check
    _
  $region15: #{rnn_layer.1} parent=0 // pred_check_branch
    %17 = sbr.rel (0) target = $region17
  $region16: #{rnn_layer.1} parent=0 // pred_region
    _
  $region17: #{rnn_layer.1} parent=0 // pred_fallthru
    _
  // Predicated region
  $region18: #{rnn_layer.1} parent=0 // pred_check
    _
  $region19: #{rnn_layer.1} parent=0 // pred_check_branch
    %19 = sbr.rel (0) target = $region21
  $region20: #{rnn_layer.1} parent=0 // pred_region
    _
  $region21: #{rnn_layer.1} parent=0 // pred_fallthru
    _
  %p20 = scmp.eq.s32.totalorder 0, 0
  // Predicated region
  $region22: #{rnn_layer.1} parent=0 // pred_check
    %p21 = pneg %p20
  $region23: #{rnn_layer.1} parent=0 // pred_check_branch
    %23 = sbr.rel (%p21) target = $region25
  $region24: #{rnn_layer.1} parent=0 // pred_region
    %v24 = vld [vmem:[%s4] sm:$0xff]
    %25 = vst [vmem:[#allocation2] sm:$0xff] %v24
  $region25: #{rnn_layer.1} parent=0 // pred_fallthru
    _
  %v26 = vld [vmem:[%s1] sm:$0xff]
  %v27 = vld [vmem:[%s1 + $0x8] sm:$0xff]
  %v28 = vld [vmem:[%s2] sm:$0xff]
  %v29 = vld [vmem:[%s2 + $0x8] sm:$0xff]
  %v30 = vld [vmem:[%s2 + $0x10] sm:$0xff]
  %v31 = vld [vmem:[%s2 + $0x18] sm:$0xff]
  %v32 = vld [vmem:[%s2 + $0x20] sm:$0xff]
  %v33 = vld [vmem:[%s2 + $0x28] sm:$0xff]
  %v34 = vld [vmem:[%s2 + $0x30] sm:$0xff]
  %v35 = vld [vmem:[%s2 + $0x38] sm:$0xff]
  %v36 = vld [vmem:[%s2 + $0x40] sm:$0xff]
  %v37 = vld [vmem:[%s2 + $0x48] sm:$0xff]
  %v38 = vld [vmem:[%s2 + $0x50] sm:$0xff]
  %v39 = vld [vmem:[%s2 + $0x58] sm:$0xff]
  %v40 = vld [vmem:[%s2 + $0x60] sm:$0xff]
  %v41 = vld [vmem:[%s2 + $0x68] sm:$0xff]
  %v42 = vld [vmem:[%s2 + $0x70] sm:$0xff]
  %v43 = vld [vmem:[%s2 + $0x78] sm:$0xff]
  %v44 = vld [vmem:[%s3] sm:$0x1]
  %v45 = vld [vmem:[#allocation2] sm:$0xff]
  %v46 = vld [vmem:[%s0] sm:$0x1]
  %v47 = vld [vmem:[%s0 + $0x10] sm:$0x1]
  %v48 = vld [vmem:[%s0 + $0x20] sm:$0x1]
  %v49 = vld [vmem:[%s0 + $0x30] sm:$0x1]
  %v50 = vld [vmem:[%s0 + $0x40] sm:$0x1]
  %v51 = vld [vmem:[%s0 + $0x50] sm:$0x1]
  %v52 = vld [vmem:[%s0 + $0x60] sm:$0x1]
  %v53 = vld [vmem:[%s0 + $0x70] sm:$0x1]
  %v55 = vlaneseq
  %v56 = vshrl.u32 %v55, 7
  %v57 = vsub.s32 0, %v56
  %v58 = vrot.slane %v44, %v57
  %v68 = vrot.slane %v47, 7
  %vm69 = vcmask 1041409
  %v70 = vsel %vm69, %v68, %v46
  %v71 = vrot.slane %v48, 6
  %vm72 = vcmask 1042434
  %v73 = vsel %vm72, %v71, %v70
  %v74 = vrot.slane %v49, 5
  %vm75 = vcmask 1043459
  %v76 = vsel %vm75, %v74, %v73
  %v77 = vrot.slane %v50, 4
  %vm78 = vcmask 1044484
  %v79 = vsel %vm78, %v77, %v76
  %v80 = vrot.slane %v51, 3
  %vm81 = vcmask 1045509
  %v82 = vsel %vm81, %v80, %v79
  %v83 = vrot.slane %v52, 2
  %vm84 = vcmask 1046534
  %v85 = vsel %vm84, %v83, %v82
  %v86 = vrot.slane %v53, 1
  %vm87 = vcmask 1047559
  %v88 = vsel %vm87, %v86, %v85
  %vm89 = vcmask 130048
  %v90 = vsel %vm89, %v88, 0
  %92 = vmatprep.subr.mxu0 0.0
  %93 = vmatpush1.msra.mxu0 %v26
  %94 = vmatprep.subr.mxu0 0.0
  %95 = vmatpush1.msra.mxu0 %v27
  %96 = vmatprep.subr.mxu0 0.0
  %97 = vmatpush1.msra.mxu0 0.0
  %98 = vmatprep.subr.mxu0 0.0
  %99 = vmatpush1.msra.mxu0 0.0
  %100 = vmatprep.subr.mxu0 0.0
  %101 = vmatpush1.msra.mxu0 0.0
  %102 = vmatprep.subr.mxu0 0.0
  %103 = vmatpush1.msra.mxu0 0.0
  %104 = vmatprep.subr.mxu0 0.0
  %105 = vmatpush1.msra.mxu0 0.0
  %106 = vmatprep.subr.mxu0 0.0
  %107 = vmatpush1.msra.mxu0 0.0
  %108 = vmatprep.subr.mxu0 0.0
  %109 = vmatpush1.msra.mxu0 0.0
  %110 = vmatprep.subr.mxu0 0.0
  %111 = vmatpush1.msra.mxu0 0.0
  %112 = vmatprep.subr.mxu0 0.0
  %113 = vmatpush1.msra.mxu0 0.0
  %114 = vmatprep.subr.mxu0 0.0
  %115 = vmatpush1.msra.mxu0 0.0
  %116 = vmatprep.subr.mxu0 0.0
  %117 = vmatpush1.msra.mxu0 0.0
  %118 = vmatprep.subr.mxu0 0.0
  %119 = vmatpush1.msra.mxu0 0.0
  %120 = vmatprep.subr.mxu0 0.0
  %121 = vmatpush1.msra.mxu0 0.0
  %122 = vmatprep.subr.mxu0 0.0
  %123 = vmatpush1.msra.mxu0 0.0
  %124 = vmatprep.subr.mxu0 0.0
  %125 = vmatpush1.msra.mxu0 0.0
  %126 = vmatprep.subr.mxu0 0.0
  %127 = vmatpush1.msra.mxu0 0.0
  %128 = vmatprep.subr.mxu0 0.0
  %129 = vmatpush1.msra.mxu0 0.0
  %130 = vmatprep.subr.mxu0 0.0
  %131 = vmatpush1.msra.mxu0 0.0
  %132 = vmatprep.subr.mxu0 0.0
  %133 = vmatpush1.msra.mxu0 0.0
  %134 = vmatprep.subr.mxu0 0.0
  %135 = vmatpush1.msra.mxu0 0.0
  %136 = vmatprep.subr.mxu0 0.0
  %137 = vmatpush1.msra.mxu0 0.0
  %138 = vmatprep.subr.mxu0 0.0
  %139 = vmatpush1.msra.mxu0 0.0
  %140 = vmatprep.subr.mxu0 0.0
  %141 = vmatpush1.msra.mxu0 0.0
  %142 = vmatprep.subr.mxu0 0.0
  %143 = vmatpush1.msra.mxu0 0.0
  %144 = vmatprep.subr.mxu0 0.0
  %145 = vmatpush1.msra.mxu0 0.0
  %146 = vmatprep.subr.mxu0 0.0
  %147 = vmatpush1.msra.mxu0 0.0
  %148 = vmatprep.subr.mxu0 0.0
  %149 = vmatpush1.msra.mxu0 0.0
  %150 = vmatprep.subr.mxu0 0.0
  %151 = vmatpush1.msra.mxu0 0.0
  %152 = vmatprep.subr.mxu0 0.0
  %153 = vmatpush1.msra.mxu0 0.0
  %154 = vmatprep.subr.mxu0 0.0
  %155 = vmatpush1.msra.mxu0 0.0
  %156 = vmatprep.mubr.f32.mxu0 0.0
  %157 = vmatmul.mubr.f32.gmra.mrb[0].mxu0 %v90
  %v158 = vpop.f32.mrb[0].mxu0
  %v159 = vadd.f32 %v58, %v158
  %v160 = vpop.f32.mrb[0].mxu0
  %161 = vdwg.mxu0
  %162 = vmatprep.subr.mxu0 0.0
  %163 = vmatpush1.msra.mxu0 %v28
  %164 = vmatprep.subr.mxu0 0.0
  %165 = vmatpush1.msra.mxu0 %v29
  %166 = vmatprep.subr.mxu0 0.0
  %167 = vmatpush1.msra.mxu0 %v30
  %168 = vmatprep.subr.mxu0 0.0
  %169 = vmatpush1.msra.mxu0 %v31
  %170 = vmatprep.subr.mxu0 0.0
  %171 = vmatpush1.msra.mxu0 %v32
  %172 = vmatprep.subr.mxu0 0.0
  %173 = vmatpush1.msra.mxu0 %v33
  %174 = vmatprep.subr.mxu0 0.0
  %175 = vmatpush1.msra.mxu0 %v34
  %176 = vmatprep.subr.mxu0 0.0
  %177 = vmatpush1.msra.mxu0 %v35
  %178 = vmatprep.subr.mxu0 0.0
  %179 = vmatpush1.msra.mxu0 %v36
  %180 = vmatprep.subr.mxu0 0.0
  %181 = vmatpush1.msra.mxu0 %v37
  %182 = vmatprep.subr.mxu0 0.0
  %183 = vmatpush1.msra.mxu0 %v38
  %184 = vmatprep.subr.mxu0 0.0
  %185 = vmatpush1.msra.mxu0 %v39
  %186 = vmatprep.subr.mxu0 0.0
  %187 = vmatpush1.msra.mxu0 %v40
  %188 = vmatprep.subr.mxu0 0.0
  %189 = vmatpush1.msra.mxu0 %v41
  %190 = vmatprep.subr.mxu0 0.0
  %191 = vmatpush1.msra.mxu0 %v42
  %192 = vmatprep.subr.mxu0 0.0
  %193 = vmatpush1.msra.mxu0 %v43
  %194 = vmatprep.subr.mxu0 0.0
  %195 = vmatpush1.msra.mxu0 0.0
  %196 = vmatprep.subr.mxu0 0.0
  %197 = vmatpush1.msra.mxu0 0.0
  %198 = vmatprep.subr.mxu0 0.0
  %199 = vmatpush1.msra.mxu0 0.0
  %200 = vmatprep.subr.mxu0 0.0
  %201 = vmatpush1.msra.mxu0 0.0
  %202 = vmatprep.subr.mxu0 0.0
  %203 = vmatpush1.msra.mxu0 0.0
  %204 = vmatprep.subr.mxu0 0.0
  %205 = vmatpush1.msra.mxu0 0.0
  %206 = vmatprep.subr.mxu0 0.0
  %207 = vmatpush1.msra.mxu0 0.0
  %208 = vmatprep.subr.mxu0 0.0
  %209 = vmatpush1.msra.mxu0 0.0
  %210 = vmatprep.subr.mxu0 0.0
  %211 = vmatpush1.msra.mxu0 0.0
  %212 = vmatprep.subr.mxu0 0.0
  %213 = vmatpush1.msra.mxu0 0.0
  %214 = vmatprep.subr.mxu0 0.0
  %215 = vmatpush1.msra.mxu0 0.0
  %216 = vmatprep.subr.mxu0 0.0
  %217 = vmatpush1.msra.mxu0 0.0
  %218 = vmatprep.subr.mxu0 0.0
  %219 = vmatpush1.msra.mxu0 0.0
  %220 = vmatprep.subr.mxu0 0.0
  %221 = vmatpush1.msra.mxu0 0.0
  %222 = vmatprep.subr.mxu0 0.0
  %223 = vmatpush1.msra.mxu0 0.0
  %224 = vmatprep.subr.mxu0 0.0
  %225 = vmatpush1.msra.mxu0 0.0
  %226 = vmatprep.mubr.f32.mxu0 0.0
  %227 = vmatmul.mubr.f32.gmra.mrb[0].mxu0 %v45
  %v228 = vpop.f32.mrb[0].mxu0
  %v229 = vadd.f32 0.0, %v228
  %v230 = vpop.f32.mrb[0].mxu0
  %231 = vdwg.mxu0
  %v232 = vadd.f32 %v159, %v229
  %v233 = vmax.f32 %v232, 0.0
  %v235 = vcombine.high %v233, %v233
  %v237 = vunpack.c.l.s4 1966171168
  %v238 = vunpack.c.0.s8 %v237
  %v239 = vlaneseq
  %v240 = vshrl.u32 %v239, 7
  %v241 = vsub.s32 %v238, %v240
  %v242 = vrot.slane %v233, %v241
  %v244 = vunpack.c.l.s4 1966171168
  %v245 = vunpack.c.0.s8 %v244
  %v246 = vlaneseq
  %v247 = vshrl.u32 %v246, 7
  %v248 = vsub.s32 %v245, %v247
  %v249 = vrot.slane %v235, %v248
  %v250 = vcombine.high %v242, %v242
  %v251 = vcombine.high %v249, %v249
  %v253 = vunpack.c.l.s4 1966171168
  %v254 = vunpack.c.0.s8 %v253
  %v255 = vlaneseq
  %v256 = vshrl.u32 %v255, 7
  %v257 = vsub.s32 %v254, %v256
  %v258 = vrot.slane %v242, %v257
  %v260 = vunpack.c.l.s4 1966171168
  %v261 = vunpack.c.0.s8 %v260
  %v262 = vlaneseq
  %v263 = vshrl.u32 %v262, 7
  %v264 = vsub.s32 %v261, %v263
  %v265 = vrot.slane %v249, %v264
  %v267 = vunpack.c.l.s4 1966171168
  %v268 = vunpack.c.0.s8 %v267
  %v269 = vlaneseq
  %v270 = vshrl.u32 %v269, 7
  %v271 = vsub.s32 %v268, %v270
  %v272 = vrot.slane %v250, %v271
  %v274 = vunpack.c.l.s4 1966171168
  %v275 = vunpack.c.0.s8 %v274
  %v276 = vlaneseq
  %v277 = vshrl.u32 %v276, 7
  %v278 = vsub.s32 %v275, %v277
  %v279 = vrot.slane %v251, %v278
  %v280 = vcombine.high %v258, %v258
  %v281 = vcombine.high %v265, %v265
  %v282 = vcombine.high %v272, %v272
  %v283 = vcombine.high %v279, %v279
  %292 = vst [vmem:[%s5] sm:$0x1] %v258
  %293 = vst [vmem:[%s5 + $0x10] sm:$0x1] %v272
  %294 = vst [vmem:[%s5 + $0x20] sm:$0x1] %v280
  %295 = vst [vmem:[%s5 + $0x30] sm:$0x1] %v282
  %296 = vst [vmem:[%s5 + $0x40] sm:$0x1] %v265
  %297 = vst [vmem:[%s5 + $0x50] sm:$0x1] %v279
  %298 = vst [vmem:[%s5 + $0x60] sm:$0x1] %v281
  %299 = vst [vmem:[%s5 + $0x70] sm:$0x1] %v283
  %v300 = vld [vmem:[%s0 + $0x1] sm:$0x1]
  %v301 = vld [vmem:[%s0 + $0x11] sm:$0x1]
  %v302 = vld [vmem:[%s0 + $0x21] sm:$0x1]
  %v303 = vld [vmem:[%s0 + $0x31] sm:$0x1]
  %v304 = vld [vmem:[%s0 + $0x41] sm:$0x1]
  %v305 = vld [vmem:[%s0 + $0x51] sm:$0x1]
  %v306 = vld [vmem:[%s0 + $0x61] sm:$0x1]
  %v307 = vld [vmem:[%s0 + $0x71] sm:$0x1]
  %v316 = vrot.slane %v301, 7
  %v317 = vsel %vm69, %v316, %v300
  %v318 = vrot.slane %v302, 6
  %v319 = vsel %vm72, %v318, %v317
  %v320 = vrot.slane %v303, 5
  %v321 = vsel %vm75, %v320, %v319
  %v322 = vrot.slane %v304, 4
  %v323 = vsel %vm78, %v322, %v321
  %v324 = vrot.slane %v305, 3
  %v325 = vsel %vm81, %v324, %v323
  %v326 = vrot.slane %v306, 2
  %v327 = vsel %vm84, %v326, %v325
  %v328 = vrot.slane %v307, 1
  %v329 = vsel %vm87, %v328, %v327
  %v330 = vsel %vm89, %v329, 0
  %332 = vmatprep.subr.mxu0 0.0
  %333 = vmatpush1.msra.mxu0 %v26
  %334 = vmatprep.subr.mxu0 0.0
  %335 = vmatpush1.msra.mxu0 %v27
  %336 = vmatprep.subr.mxu0 0.0
  %337 = vmatpush1.msra.mxu0 0.0
  %338 = vmatprep.subr.mxu0 0.0
  %339 = vmatpush1.msra.mxu0 0.0
  %340 = vmatprep.subr.mxu0 0.0
  %341 = vmatpush1.msra.mxu0 0.0
  %342 = vmatprep.subr.mxu0 0.0
  %343 = vmatpush1.msra.mxu0 0.0
  %344 = vmatprep.subr.mxu0 0.0
  %345 = vmatpush1.msra.mxu0 0.0
  %346 = vmatprep.subr.mxu0 0.0
  %347 = vmatpush1.msra.mxu0 0.0
  %348 = vmatprep.subr.mxu0 0.0
  %349 = vmatpush1.msra.mxu0 0.0
  %350 = vmatprep.subr.mxu0 0.0
  %351 = vmatpush1.msra.mxu0 0.0
  %352 = vmatprep.subr.mxu0 0.0
  %353 = vmatpush1.msra.mxu0 0.0
  %354 = vmatprep.subr.mxu0 0.0
  %355 = vmatpush1.msra.mxu0 0.0
  %356 = vmatprep.subr.mxu0 0.0
  %357 = vmatpush1.msra.mxu0 0.0
  %358 = vmatprep.subr.mxu0 0.0
  %359 = vmatpush1.msra.mxu0 0.0
  %360 = vmatprep.subr.mxu0 0.0
  %361 = vmatpush1.msra.mxu0 0.0
  %362 = vmatprep.subr.mxu0 0.0
  %363 = vmatpush1.msra.mxu0 0.0
  %364 = vmatprep.subr.mxu0 0.0
  %365 = vmatpush1.msra.mxu0 0.0
  %366 = vmatprep.subr.mxu0 0.0
  %367 = vmatpush1.msra.mxu0 0.0
  %368 = vmatprep.subr.mxu0 0.0
  %369 = vmatpush1.msra.mxu0 0.0
  %370 = vmatprep.subr.mxu0 0.0
  %371 = vmatpush1.msra.mxu0 0.0
  %372 = vmatprep.subr.mxu0 0.0
  %373 = vmatpush1.msra.mxu0 0.0
  %374 = vmatprep.subr.mxu0 0.0
  %375 = vmatpush1.msra.mxu0 0.0
  %376 = vmatprep.subr.mxu0 0.0
  %377 = vmatpush1.msra.mxu0 0.0
  %378 = vmatprep.subr.mxu0 0.0
  %379 = vmatpush1.msra.mxu0 0.0
  %380 = vmatprep.subr.mxu0 0.0
  %381 = vmatpush1.msra.mxu0 0.0
  %382 = vmatprep.subr.mxu0 0.0
  %383 = vmatpush1.msra.mxu0 0.0
  %384 = vmatprep.subr.mxu0 0.0
  %385 = vmatpush1.msra.mxu0 0.0
  %386 = vmatprep.subr.mxu0 0.0
  %387 = vmatpush1.msra.mxu0 0.0
  %388 = vmatprep.subr.mxu0 0.0
  %389 = vmatpush1.msra.mxu0 0.0
  %390 = vmatprep.subr.mxu0 0.0
  %391 = vmatpush1.msra.mxu0 0.0
  %392 = vmatprep.subr.mxu0 0.0
  %393 = vmatpush1.msra.mxu0 0.0
  %394 = vmatprep.subr.mxu0 0.0
  %395 = vmatpush1.msra.mxu0 0.0
  %396 = vmatprep.mubr.f32.mxu0 0.0
  %397 = vmatmul.mubr.f32.gmra.mrb[0].mxu0 %v330
  %v398 = vpop.f32.mrb[0].mxu0
  %v399 = vadd.f32 %v58, %v398
  %v400 = vpop.f32.mrb[0].mxu0
  %401 = vdwg.mxu0
  %402 = vmatprep.subr.mxu0 0.0
  %403 = vmatpush1.msra.mxu0 %v28
  %404 = vmatprep.subr.mxu0 0.0
  %405 = vmatpush1.msra.mxu0 %v29
  %406 = vmatprep.subr.mxu0 0.0
  %407 = vmatpush1.msra.mxu0 %v30
  %408 = vmatprep.subr.mxu0 0.0
  %409 = vmatpush1.msra.mxu0 %v31
  %410 = vmatprep.subr.mxu0 0.0
  %411 = vmatpush1.msra.mxu0 %v32
  %412 = vmatprep.subr.mxu0 0.0
  %413 = vmatpush1.msra.mxu0 %v33
  %414 = vmatprep.subr.mxu0 0.0
  %415 = vmatpush1.msra.mxu0 %v34
  %416 = vmatprep.subr.mxu0 0.0
  %417 = vmatpush1.msra.mxu0 %v35
  %418 = vmatprep.subr.mxu0 0.0
  %419 = vmatpush1.msra.mxu0 %v36
  %420 = vmatprep.subr.mxu0 0.0
  %421 = vmatpush1.msra.mxu0 %v37
  %422 = vmatprep.subr.mxu0 0.0
  %423 = vmatpush1.msra.mxu0 %v38
  %424 = vmatprep.subr.mxu0 0.0
  %425 = vmatpush1.msra.mxu0 %v39
  %426 = vmatprep.subr.mxu0 0.0
  %427 = vmatpush1.msra.mxu0 %v40
  %428 = vmatprep.subr.mxu0 0.0
  %429 = vmatpush1.msra.mxu0 %v41
  %430 = vmatprep.subr.mxu0 0.0
  %431 = vmatpush1.msra.mxu0 %v42
  %432 = vmatprep.subr.mxu0 0.0
  %433 = vmatpush1.msra.mxu0 %v43
  %434 = vmatprep.subr.mxu0 0.0
  %435 = vmatpush1.msra.mxu0 0.0
  %436 = vmatprep.subr.mxu0 0.0
  %437 = vmatpush1.msra.mxu0 0.0
  %438 = vmatprep.subr.mxu0 0.0
  %439 = vmatpush1.msra.mxu0 0.0
  %440 = vmatprep.subr.mxu0 0.0
  %441 = vmatpush1.msra.mxu0 0.0
  %442 = vmatprep.subr.mxu0 0.0
  %443 = vmatpush1.msra.mxu0 0.0
  %444 = vmatprep.subr.mxu0 0.0
  %445 = vmatpush1.msra.mxu0 0.0
  %446 = vmatprep.subr.mxu0 0.0
  %447 = vmatpush1.msra.mxu0 0.0
  %448 = vmatprep.subr.mxu0 0.0
  %449 = vmatpush1.msra.mxu0 0.0
  %450 = vmatprep.subr.mxu0 0.0
  %451 = vmatpush1.msra.mxu0 0.0
  %452 = vmatprep.subr.mxu0 0.0
  %453 = vmatpush1.msra.mxu0 0.0
  %454 = vmatprep.subr.mxu0 0.0
  %455 = vmatpush1.msra.mxu0 0.0
  %456 = vmatprep.subr.mxu0 0.0
  %457 = vmatpush1.msra.mxu0 0.0
  %458 = vmatprep.subr.mxu0 0.0
  %459 = vmatpush1.msra.mxu0 0.0
  %460 = vmatprep.subr.mxu0 0.0
  %461 = vmatpush1.msra.mxu0 0.0
  %462 = vmatprep.subr.mxu0 0.0
  %463 = vmatpush1.msra.mxu0 0.0
  %464 = vmatprep.subr.mxu0 0.0
  %465 = vmatpush1.msra.mxu0 0.0
  %466 = vmatprep.mubr.f32.mxu0 0.0
  %467 = vmatmul.mubr.f32.gmra.mrb[0].mxu0 %v233
  %v468 = vpop.f32.mrb[0].mxu0
  %v469 = vadd.f32 0.0, %v468
  %v470 = vpop.f32.mrb[0].mxu0
  %471 = vdwg.mxu0
  %v472 = vadd.f32 %v399, %v469
  %v473 = vmax.f32 %v472, 0.0
  %v475 = vcombine.high %v473, %v473
  %v477 = vunpack.c.l.s4 1966171168
  %v478 = vunpack.c.0.s8 %v477
  %v479 = vlaneseq
  %v480 = vshrl.u32 %v479, 7
  %v481 = vsub.s32 %v478, %v480
  %v482 = vrot.slane %v473, %v481
  %v484 = vunpack.c.l.s4 1966171168
  %v485 = vunpack.c.0.s8 %v484
  %v486 = vlaneseq
  %v487 = vshrl.u32 %v486, 7
  %v488 = vsub.s32 %v485, %v487
  %v489 = vrot.slane %v475, %v488
  %v490 = vcombine.high %v482, %v482
  %v491 = vcombine.high %v489, %v489
  %v493 = vunpack.c.l.s4 1966171168
  %v494 = vunpack.c.0.s8 %v493
  %v495 = vlaneseq
  %v496 = vshrl.u32 %v495, 7
  %v497 = vsub.s32 %v494, %v496
  %v498 = vrot.slane %v482, %v497
  %v500 = vunpack.c.l.s4 1966171168
  %v501 = vunpack.c.0.s8 %v500
  %v502 = vlaneseq
  %v503 = vshrl.u32 %v502, 7
  %v504 = vsub.s32 %v501, %v503
  %v505 = vrot.slane %v489, %v504
  %v507 = vunpack.c.l.s4 1966171168
  %v508 = vunpack.c.0.s8 %v507
  %v509 = vlaneseq
  %v510 = vshrl.u32 %v509, 7
  %v511 = vsub.s32 %v508, %v510
  %v512 = vrot.slane %v490, %v511
  %v514 = vunpack.c.l.s4 1966171168
  %v515 = vunpack.c.0.s8 %v514
  %v516 = vlaneseq
  %v517 = vshrl.u32 %v516, 7
  %v518 = vsub.s32 %v515, %v517
  %v519 = vrot.slane %v491, %v518
  %v520 = vcombine.high %v498, %v498
  %v521 = vcombine.high %v505, %v505
  %v522 = vcombine.high %v512, %v512
  %v523 = vcombine.high %v519, %v519
  %532 = vst [vmem:[%s5 + $0x1] sm:$0x1] %v498
  %533 = vst [vmem:[%s5 + $0x11] sm:$0x1] %v512
  %534 = vst [vmem:[%s5 + $0x21] sm:$0x1] %v520
  %535 = vst [vmem:[%s5 + $0x31] sm:$0x1] %v522
  %536 = vst [vmem:[%s5 + $0x41] sm:$0x1] %v505
  %537 = vst [vmem:[%s5 + $0x51] sm:$0x1] %v519
  %538 = vst [vmem:[%s5 + $0x61] sm:$0x1] %v521
  %539 = vst [vmem:[%s5 + $0x71] sm:$0x1] %v523
  %v540 = vld [vmem:[%s0 + $0x2] sm:$0x1]
  %v541 = vld [vmem:[%s0 + $0x12] sm:$0x1]
  %v542 = vld [vmem:[%s0 + $0x22] sm:$0x1]
  %v543 = vld [vmem:[%s0 + $0x32] sm:$0x1]
  %v544 = vld [vmem:[%s0 + $0x42] sm:$0x1]
  %v545 = vld [vmem:[%s0 + $0x52] sm:$0x1]
  %v546 = vld [vmem:[%s0 + $0x62] sm:$0x1]
  %v547 = vld [vmem:[%s0 + $0x72] sm:$0x1]
  %v556 = vrot.slane %v541, 7
  %v557 = vsel %vm69, %v556, %v540
  %v558 = vrot.slane %v542, 6
  %v559 = vsel %vm72, %v558, %v557
  %v560 = vrot.slane %v543, 5
  %v561 = vsel %vm75, %v560, %v559
  %v562 = vrot.slane %v544, 4
  %v563 = vsel %vm78, %v562, %v561
  %v564 = vrot.slane %v545, 3
  %v565 = vsel %vm81, %v564, %v563
  %v566 = vrot.slane %v546, 2
  %v567 = vsel %vm84, %v566, %v565
  %v568 = vrot.slane %v547, 1
  %v569 = vsel %vm87, %v568, %v567
  %v570 = vsel %vm89, %v569, 0
  %572 = vmatprep.subr.mxu0 0.0
  %573 = vmatpush1.msra.mxu0 %v26
  %574 = vmatprep.subr.mxu0 0.0
  %575 = vmatpush1.msra.mxu0 %v27
  %576 = vmatprep.subr.mxu0 0.0
  %577 = vmatpush1.msra.mxu0 0.0
  %578 = vmatprep.subr.mxu0 0.0
  %579 = vmatpush1.msra.mxu0 0.0
  %580 = vmatprep.subr.mxu0 0.0
  %581 = vmatpush1.msra.mxu0 0.0
  %582 = vmatprep.subr.mxu0 0.0
  %583 = vmatpush1.msra.mxu0 0.0
  %584 = vmatprep.subr.mxu0 0.0
  %585 = vmatpush1.msra.mxu0 0.0
  %586 = vmatprep.subr.mxu0 0.0
  %587 = vmatpush1.msra.mxu0 0.0
  %588 = vmatprep.subr.mxu0 0.0
  %589 = vmatpush1.msra.mxu0 0.0
  %590 = vmatprep.subr.mxu0 0.0
  %591 = vmatpush1.msra.mxu0 0.0
  %592 = vmatprep.subr.mxu0 0.0
  %593 = vmatpush1.msra.mxu0 0.0
  %594 = vmatprep.subr.mxu0 0.0
  %595 = vmatpush1.msra.mxu0 0.0
  %596 = vmatprep.subr.mxu0 0.0
  %597 = vmatpush1.msra.mxu0 0.0
  %598 = vmatprep.subr.mxu0 0.0
  %599 = vmatpush1.msra.mxu0 0.0
  %600 = vmatprep.subr.mxu0 0.0
  %601 = vmatpush1.msra.mxu0 0.0
  %602 = vmatprep.subr.mxu0 0.0
  %603 = vmatpush1.msra.mxu0 0.0
  %604 = vmatprep.subr.mxu0 0.0
  %605 = vmatpush1.msra.mxu0 0.0
  %606 = vmatprep.subr.mxu0 0.0
  %607 = vmatpush1.msra.mxu0 0.0
  %608 = vmatprep.subr.mxu0 0.0
  %609 = vmatpush1.msra.mxu0 0.0
  %610 = vmatprep.subr.mxu0 0.0
  %611 = vmatpush1.msra.mxu0 0.0
  %612 = vmatprep.subr.mxu0 0.0
  %613 = vmatpush1.msra.mxu0 0.0
  %614 = vmatprep.subr.mxu0 0.0
  %615 = vmatpush1.msra.mxu0 0.0
  %616 = vmatprep.subr.mxu0 0.0
  %617 = vmatpush1.msra.mxu0 0.0
  %618 = vmatprep.subr.mxu0 0.0
  %619 = vmatpush1.msra.mxu0 0.0
  %620 = vmatprep.subr.mxu0 0.0
  %621 = vmatpush1.msra.mxu0 0.0
  %622 = vmatprep.subr.mxu0 0.0
  %623 = vmatpush1.msra.mxu0 0.0
  %624 = vmatprep.subr.mxu0 0.0
  %625 = vmatpush1.msra.mxu0 0.0
  %626 = vmatprep.subr.mxu0 0.0
  %627 = vmatpush1.msra.mxu0 0.0
  %628 = vmatprep.subr.mxu0 0.0
  %629 = vmatpush1.msra.mxu0 0.0
  %630 = vmatprep.subr.mxu0 0.0
  %631 = vmatpush1.msra.mxu0 0.0
  %632 = vmatprep.subr.mxu0 0.0
  %633 = vmatpush1.msra.mxu0 0.0
  %634 = vmatprep.subr.mxu0 0.0
  %635 = vmatpush1.msra.mxu0 0.0
  %636 = vmatprep.mubr.f32.mxu0 0.0
  %637 = vmatmul.mubr.f32.gmra.mrb[0].mxu0 %v570
  %v638 = vpop.f32.mrb[0].mxu0
  %v639 = vadd.f32 %v58, %v638
  %v640 = vpop.f32.mrb[0].mxu0
  %641 = vdwg.mxu0
  %642 = vmatprep.subr.mxu0 0.0
  %643 = vmatpush1.msra.mxu0 %v28
  %644 = vmatprep.subr.mxu0 0.0
  %645 = vmatpush1.msra.mxu0 %v29
  %646 = vmatprep.subr.mxu0 0.0
  %647 = vmatpush1.msra.mxu0 %v30
  %648 = vmatprep.subr.mxu0 0.0
  %649 = vmatpush1.msra.mxu0 %v31
  %650 = vmatprep.subr.mxu0 0.0
  %651 = vmatpush1.msra.mxu0 %v32
  %652 = vmatprep.subr.mxu0 0.0
  %653 = vmatpush1.msra.mxu0 %v33
  %654 = vmatprep.subr.mxu0 0.0
  %655 = vmatpush1.msra.mxu0 %v34
  %656 = vmatprep.subr.mxu0 0.0
  %657 = vmatpush1.msra.mxu0 %v35
  %658 = vmatprep.subr.mxu0 0.0
  %659 = vmatpush1.msra.mxu0 %v36
  %660 = vmatprep.subr.mxu0 0.0
  %661 = vmatpush1.msra.mxu0 %v37
  %662 = vmatprep.subr.mxu0 0.0
  %663 = vmatpush1.msra.mxu0 %v38
  %664 = vmatprep.subr.mxu0 0.0
  %665 = vmatpush1.msra.mxu0 %v39
  %666 = vmatprep.subr.mxu0 0.0
  %667 = vmatpush1.msra.mxu0 %v40
  %668 = vmatprep.subr.mxu0 0.0
  %669 = vmatpush1.msra.mxu0 %v41
  %670 = vmatprep.subr.mxu0 0.0
  %671 = vmatpush1.msra.mxu0 %v42
  %672 = vmatprep.subr.mxu0 0.0
  %673 = vmatpush1.msra.mxu0 %v43
  %674 = vmatprep.subr.mxu0 0.0
  %675 = vmatpush1.msra.mxu0 0.0
  %676 = vmatprep.subr.mxu0 0.0
  %677 = vmatpush1.msra.mxu0 0.0
  %678 = vmatprep.subr.mxu0 0.0
  %679 = vmatpush1.msra.mxu0 0.0
  %680 = vmatprep.subr.mxu0 0.0
  %681 = vmatpush1.msra.mxu0 0.0
  %682 = vmatprep.subr.mxu0 0.0
  %683 = vmatpush1.msra.mxu0 0.0
  %684 = vmatprep.subr.mxu0 0.0
  %685 = vmatpush1.msra.mxu0 0.0
  %686 = vmatprep.subr.mxu0 0.0
  %687 = vmatpush1.msra.mxu0 0.0
  %688 = vmatprep.subr.mxu0 0.0
  %689 = vmatpush1.msra.mxu0 0.0
  %690 = vmatprep.subr.mxu0 0.0
  %691 = vmatpush1.msra.mxu0 0.0
  %692 = vmatprep.subr.mxu0 0.0
  %693 = vmatpush1.msra.mxu0 0.0
  %694 = vmatprep.subr.mxu0 0.0
  %695 = vmatpush1.msra.mxu0 0.0
  %696 = vmatprep.subr.mxu0 0.0
  %697 = vmatpush1.msra.mxu0 0.0
  %698 = vmatprep.subr.mxu0 0.0
  %699 = vmatpush1.msra.mxu0 0.0
  %700 = vmatprep.subr.mxu0 0.0
  %701 = vmatpush1.msra.mxu0 0.0
  %702 = vmatprep.subr.mxu0 0.0
  %703 = vmatpush1.msra.mxu0 0.0
  %704 = vmatprep.subr.mxu0 0.0
  %705 = vmatpush1.msra.mxu0 0.0
  %706 = vmatprep.mubr.f32.mxu0 0.0
  %707 = vmatmul.mubr.f32.gmra.mrb[0].mxu0 %v473
  %v708 = vpop.f32.mrb[0].mxu0
  %v709 = vadd.f32 0.0, %v708
  %v710 = vpop.f32.mrb[0].mxu0
  %711 = vdwg.mxu0
  %v712 = vadd.f32 %v639, %v709
  %v713 = vmax.f32 %v712, 0.0
  %v715 = vcombine.high %v713, %v713
  %v717 = vunpack.c.l.s4 1966171168
  %v718 = vunpack.c.0.s8 %v717
  %v719 = vlaneseq
  %v720 = vshrl.u32 %v719, 7
  %v721 = vsub.s32 %v718, %v720
  %v722 = vrot.slane %v713, %v721
  %v724 = vunpack.c.l.s4 1966171168
  %v725 = vunpack.c.0.s8 %v724
  %v726 = vlaneseq
  %v727 = vshrl.u32 %v726, 7
  %v728 = vsub.s32 %v725, %v727
  %v729 = vrot.slane %v715, %v728
  %v730 = vcombine.high %v722, %v722
  %v731 = vcombine.high %v729, %v729
  %v733 = vunpack.c.l.s4 1966171168
  %v734 = vunpack.c.0.s8 %v733
  %v735 = vlaneseq
  %v736 = vshrl.u32 %v735, 7
  %v737 = vsub.s32 %v734, %v736
  %v738 = vrot.slane %v722, %v737
  %v740 = vunpack.c.l.s4 1966171168
  %v741 = vunpack.c.0.s8 %v740
  %v742 = vlaneseq
  %v743 = vshrl.u32 %v742, 7
  %v744 = vsub.s32 %v741, %v743
  %v745 = vrot.slane %v729, %v744
  %v747 = vunpack.c.l.s4 1966171168
  %v748 = vunpack.c.0.s8 %v747
  %v749 = vlaneseq
  %v750 = vshrl.u32 %v749, 7
  %v751 = vsub.s32 %v748, %v750
  %v752 = vrot.slane %v730, %v751
  %v754 = vunpack.c.l.s4 1966171168
  %v755 = vunpack.c.0.s8 %v754
  %v756 = vlaneseq
  %v757 = vshrl.u32 %v756, 7
  %v758 = vsub.s32 %v755, %v757
  %v759 = vrot.slane %v731, %v758
  %v760 = vcombine.high %v738, %v738
  %v761 = vcombine.high %v745, %v745
  %v762 = vcombine.high %v752, %v752
  %v763 = vcombine.high %v759, %v759
  %772 = vst [vmem:[%s5 + $0x2] sm:$0x1] %v738
  %773 = vst [vmem:[%s5 + $0x12] sm:$0x1] %v752
  %774 = vst [vmem:[%s5 + $0x22] sm:$0x1] %v760
  %775 = vst [vmem:[%s5 + $0x32] sm:$0x1] %v762
  %776 = vst [vmem:[%s5 + $0x42] sm:$0x1] %v745
  %777 = vst [vmem:[%s5 + $0x52] sm:$0x1] %v759
  %778 = vst [vmem:[%s5 + $0x62] sm:$0x1] %v761
  %779 = vst [vmem:[%s5 + $0x72] sm:$0x1] %v763
  %v780 = vld [vmem:[%s0 + $0x3] sm:$0x1]
  %v781 = vld [vmem:[%s0 + $0x13] sm:$0x1]
  %v782 = vld [vmem:[%s0 + $0x23] sm:$0x1]
  %v783 = vld [vmem:[%s0 + $0x33] sm:$0x1]
  %v784 = vld [vmem:[%s0 + $0x43] sm:$0x1]
  %v785 = vld [vmem:[%s0 + $0x53] sm:$0x1]
  %v786 = vld [vmem:[%s0 + $0x63] sm:$0x1]
  %v787 = vld [vmem:[%s0 + $0x73] sm:$0x1]
  %v796 = vrot.slane %v781, 7
  %v797 = vsel %vm69, %v796, %v780
  %v798 = vrot.slane %v782, 6
  %v799 = vsel %vm72, %v798, %v797
  %v800 = vrot.slane %v783, 5
  %v801 = vsel %vm75, %v800, %v799
  %v802 = vrot.slane %v784, 4
  %v803 = vsel %vm78, %v802, %v801
  %v804 = vrot.slane %v785, 3
  %v805 = vsel %vm81, %v804, %v803
  %v806 = vrot.slane %v786, 2
  %v807 = vsel %vm84, %v806, %v805
  %v808 = vrot.slane %v787, 1
  %v809 = vsel %vm87, %v808, %v807
  %v810 = vsel %vm89, %v809, 0
  %812 = vmatprep.subr.mxu0 0.0
  %813 = vmatpush1.msra.mxu0 %v26
  %814 = vmatprep.subr.mxu0 0.0
  %815 = vmatpush1.msra.mxu0 %v27
  %816 = vmatprep.subr.mxu0 0.0
  %817 = vmatpush1.msra.mxu0 0.0
  %818 = vmatprep.subr.mxu0 0.0
  %819 = vmatpush1.msra.mxu0 0.0
  %820 = vmatprep.subr.mxu0 0.0
  %821 = vmatpush1.msra.mxu0 0.0
  %822 = vmatprep.subr.mxu0 0.0
  %823 = vmatpush1.msra.mxu0 0.0
  %824 = vmatprep.subr.mxu0 0.0
  %825 = vmatpush1.msra.mxu0 0.0
  %826 = vmatprep.subr.mxu0 0.0
  %827 = vmatpush1.msra.mxu0 0.0
  %828 = vmatprep.subr.mxu0 0.0
  %829 = vmatpush1.msra.mxu0 0.0
  %830 = vmatprep.subr.mxu0 0.0
  %831 = vmatpush1.msra.mxu0 0.0
  %832 = vmatprep.subr.mxu0 0.0
  %833 = vmatpush1.msra.mxu0 0.0
  %834 = vmatprep.subr.mxu0 0.0
  %835 = vmatpush1.msra.mxu0 0.0
  %836 = vmatprep.subr.mxu0 0.0
  %837 = vmatpush1.msra.mxu0 0.0
  %838 = vmatprep.subr.mxu0 0.0
  %839 = vmatpush1.msra.mxu0 0.0
  %840 = vmatprep.subr.mxu0 0.0
  %841 = vmatpush1.msra.mxu0 0.0
  %842 = vmatprep.subr.mxu0 0.0
  %843 = vmatpush1.msra.mxu0 0.0
  %844 = vmatprep.subr.mxu0 0.0
  %845 = vmatpush1.msra.mxu0 0.0
  %846 = vmatprep.subr.mxu0 0.0
  %847 = vmatpush1.msra.mxu0 0.0
  %848 = vmatprep.subr.mxu0 0.0
  %849 = vmatpush1.msra.mxu0 0.0
  %850 = vmatprep.subr.mxu0 0.0
  %851 = vmatpush1.msra.mxu0 0.0
  %852 = vmatprep.subr.mxu0 0.0
  %853 = vmatpush1.msra.mxu0 0.0
  %854 = vmatprep.subr.mxu0 0.0
  %855 = vmatpush1.msra.mxu0 0.0
  %856 = vmatprep.subr.mxu0 0.0
  %857 = vmatpush1.msra.mxu0 0.0
  %858 = vmatprep.subr.mxu0 0.0
  %859 = vmatpush1.msra.mxu0 0.0
  %860 = vmatprep.subr.mxu0 0.0
  %861 = vmatpush1.msra.mxu0 0.0
  %862 = vmatprep.subr.mxu0 0.0
  %863 = vmatpush1.msra.mxu0 0.0
  %864 = vmatprep.subr.mxu0 0.0
  %865 = vmatpush1.msra.mxu0 0.0
  %866 = vmatprep.subr.mxu0 0.0
  %867 = vmatpush1.msra.mxu0 0.0
  %868 = vmatprep.subr.mxu0 0.0
  %869 = vmatpush1.msra.mxu0 0.0
  %870 = vmatprep.subr.mxu0 0.0
  %871 = vmatpush1.msra.mxu0 0.0
  %872 = vmatprep.subr.mxu0 0.0
  %873 = vmatpush1.msra.mxu0 0.0
  %874 = vmatprep.subr.mxu0 0.0
  %875 = vmatpush1.msra.mxu0 0.0
  %876 = vmatprep.mubr.f32.mxu0 0.0
  %877 = vmatmul.mubr.f32.gmra.mrb[0].mxu0 %v810
  %v878 = vpop.f32.mrb[0].mxu0
  %v879 = vadd.f32 %v58, %v878
  %v880 = vpop.f32.mrb[0].mxu0
  %881 = vdwg.mxu0
  %882 = vmatprep.subr.mxu0 0.0
  %883 = vmatpush1.msra.mxu0 %v28
  %884 = vmatprep.subr.mxu0 0.0
  %885 = vmatpush1.msra.mxu0 %v29
  %886 = vmatprep.subr.mxu0 0.0
  %887 = vmatpush1.msra.mxu0 %v30
  %888 = vmatprep.subr.mxu0 0.0
  %889 = vmatpush1.msra.mxu0 %v31
  %890 = vmatprep.subr.mxu0 0.0
  %891 = vmatpush1.msra.mxu0 %v32
  %892 = vmatprep.subr.mxu0 0.0
  %893 = vmatpush1.msra.mxu0 %v33
  %894 = vmatprep.subr.mxu0 0.0
  %895 = vmatpush1.msra.mxu0 %v34
  %896 = vmatprep.subr.mxu0 0.0
  %897 = vmatpush1.msra.mxu0 %v35
  %898 = vmatprep.subr.mxu0 0.0
  %899 = vmatpush1.msra.mxu0 %v36
  %900 = vmatprep.subr.mxu0 0.0
  %901 = vmatpush1.msra.mxu0 %v37
  %902 = vmatprep.subr.mxu0 0.0
  %903 = vmatpush1.msra.mxu0 %v38
  %904 = vmatprep.subr.mxu0 0.0
  %905 = vmatpush1.msra.mxu0 %v39
  %906 = vmatprep.subr.mxu0 0.0
  %907 = vmatpush1.msra.mxu0 %v40
  %908 = vmatprep.subr.mxu0 0.0
  %909 = vmatpush1.msra.mxu0 %v41
  %910 = vmatprep.subr.mxu0 0.0
  %911 = vmatpush1.msra.mxu0 %v42
  %912 = vmatprep.subr.mxu0 0.0
  %913 = vmatpush1.msra.mxu0 %v43
  %914 = vmatprep.subr.mxu0 0.0
  %915 = vmatpush1.msra.mxu0 0.0
  %916 = vmatprep.subr.mxu0 0.0
  %917 = vmatpush1.msra.mxu0 0.0
  %918 = vmatprep.subr.mxu0 0.0
  %919 = vmatpush1.msra.mxu0 0.0
  %920 = vmatprep.subr.mxu0 0.0
  %921 = vmatpush1.msra.mxu0 0.0
  %922 = vmatprep.subr.mxu0 0.0
  %923 = vmatpush1.msra.mxu0 0.0
  %924 = vmatprep.subr.mxu0 0.0
  %925 = vmatpush1.msra.mxu0 0.0
  %926 = vmatprep.subr.mxu0 0.0
  %927 = vmatpush1.msra.mxu0 0.0
  %928 = vmatprep.subr.mxu0 0.0
  %929 = vmatpush1.msra.mxu0 0.0
  %930 = vmatprep.subr.mxu0 0.0
  %931 = vmatpush1.msra.mxu0 0.0
  %932 = vmatprep.subr.mxu0 0.0
  %933 = vmatpush1.msra.mxu0 0.0
  %934 = vmatprep.subr.mxu0 0.0
  %935 = vmatpush1.msra.mxu0 0.0
  %936 = vmatprep.subr.mxu0 0.0
  %937 = vmatpush1.msra.mxu0 0.0
  %938 = vmatprep.subr.mxu0 0.0
  %939 = vmatpush1.msra.mxu0 0.0
  %940 = vmatprep.subr.mxu0 0.0
  %941 = vmatpush1.msra.mxu0 0.0
  %942 = vmatprep.subr.mxu0 0.0
  %943 = vmatpush1.msra.mxu0 0.0
  %944 = vmatprep.subr.mxu0 0.0
  %945 = vmatpush1.msra.mxu0 0.0
  %946 = vmatprep.mubr.f32.mxu0 0.0
  %947 = vmatmul.mubr.f32.gmra.mrb[0].mxu0 %v713
  %v948 = vpop.f32.mrb[0].mxu0
  %v949 = vadd.f32 0.0, %v948
  %v950 = vpop.f32.mrb[0].mxu0
  %951 = vdwg.mxu0
  %v952 = vadd.f32 %v879, %v949
  %v953 = vmax.f32 %v952, 0.0
  %v955 = vcombine.high %v953, %v953
  %v957 = vunpack.c.l.s4 1966171168
  %v958 = vunpack.c.0.s8 %v957
  %v959 = vlaneseq
  %v960 = vshrl.u32 %v959, 7
  %v961 = vsub.s32 %v958, %v960
  %v962 = vrot.slane %v953, %v961
  %v964 = vunpack.c.l.s4 1966171168
  %v965 = vunpack.c.0.s8 %v964
  %v966 = vlaneseq
  %v967 = vshrl.u32 %v966, 7
  %v968 = vsub.s32 %v965, %v967
  %v969 = vrot.slane %v955, %v968
  %v970 = vcombine.high %v962, %v962
  %v971 = vcombine.high %v969, %v969
  %v973 = vunpack.c.l.s4 1966171168
  %v974 = vunpack.c.0.s8 %v973
  %v975 = vlaneseq
  %v976 = vshrl.u32 %v975, 7
  %v977 = vsub.s32 %v974, %v976
  %v978 = vrot.slane %v962, %v977
  %v980 = vunpack.c.l.s4 1966171168
  %v981 = vunpack.c.0.s8 %v980
  %v982 = vlaneseq
  %v983 = vshrl.u32 %v982, 7
  %v984 = vsub.s32 %v981, %v983
  %v985 = vrot.slane %v969, %v984
  %v987 = vunpack.c.l.s4 1966171168
  %v988 = vunpack.c.0.s8 %v987
  %v989 = vlaneseq
  %v990 = vshrl.u32 %v989, 7
  %v991 = vsub.s32 %v988, %v990
  %v992 = vrot.slane %v970, %v991
  %v994 = vunpack.c.l.s4 1966171168
  %v995 = vunpack.c.0.s8 %v994
  %v996 = vlaneseq
  %v997 = vshrl.u32 %v996, 7
  %v998 = vsub.s32 %v995, %v997
  %v999 = vrot.slane %v971, %v998
  %v1000 = vcombine.high %v978, %v978
  %v1001 = vcombine.high %v985, %v985
  %v1002 = vcombine.high %v992, %v992
  %v1003 = vcombine.high %v999, %v999
  %1012 = vst [vmem:[%s5 + $0x3] sm:$0x1] %v978
  %1013 = vst [vmem:[%s5 + $0x13] sm:$0x1] %v992
  %1014 = vst [vmem:[%s5 + $0x23] sm:$0x1] %v1000
  %1015 = vst [vmem:[%s5 + $0x33] sm:$0x1] %v1002
  %1016 = vst [vmem:[%s5 + $0x43] sm:$0x1] %v985
  %1017 = vst [vmem:[%s5 + $0x53] sm:$0x1] %v999
  %1018 = vst [vmem:[%s5 + $0x63] sm:$0x1] %v1001
  %1019 = vst [vmem:[%s5 + $0x73] sm:$0x1] %v1003
  %v1020 = vld [vmem:[%s0 + $0x4] sm:$0x1]
  %v1021 = vld [vmem:[%s0 + $0x14] sm:$0x1]
  %v1022 = vld [vmem:[%s0 + $0x24] sm:$0x1]
  %v1023 = vld [vmem:[%s0 + $0x34] sm:$0x1]
  %v1024 = vld [vmem:[%s0 + $0x44] sm:$0x1]
  %v1025 = vld [vmem:[%s0 + $0x54] sm:$0x1]
  %v1026 = vld [vmem:[%s0 + $0x64] sm:$0x1]
  %v1027 = vld [vmem:[%s0 + $0x74] sm:$0x1]
  %v1036 = vrot.slane %v1021, 7
  %v1037 = vsel %vm69, %v1036, %v1020
  %v1038 = vrot.slane %v1022, 6
  %v1039 = vsel %vm72, %v1038, %v1037
  %v1040 = vrot.slane %v1023, 5
  %v1041 = vsel %vm75, %v1040, %v1039
  %v1042 = vrot.slane %v1024, 4
  %v1043 = vsel %vm78, %v1042, %v1041
  %v1044 = vrot.slane %v1025, 3
  %v1045 = vsel %vm81, %v1044, %v1043
  %v1046 = vrot.slane %v1026, 2
  %v1047 = vsel %vm84, %v1046, %v1045
  %v1048 = vrot.slane %v1027, 1
  %v1049 = vsel %vm87, %v1048, %v1047
  %v1050 = vsel %vm89, %v1049, 0
  %1052 = vmatprep.subr.mxu0 0.0
  %1053 = vmatpush1.msra.mxu0 %v26
  %1054 = vmatprep.subr.mxu0 0.0
  %1055 = vmatpush1.msra.mxu0 %v27
  %1056 = vmatprep.subr.mxu0 0.0
  %1057 = vmatpush1.msra.mxu0 0.0
  %1058 = vmatprep.subr.mxu0 0.0
  %1059 = vmatpush1.msra.mxu0 0.0
  %1060 = vmatprep.subr.mxu0 0.0
  %1061 = vmatpush1.msra.mxu0 0.0
  %1062 = vmatprep.subr.mxu0 0.0
  %1063 = vmatpush1.msra.mxu0 0.0
  %1064 = vmatprep.subr.mxu0 0.0
  %1065 = vmatpush1.msra.mxu0 0.0
  %1066 = vmatprep.subr.mxu0 0.0
  %1067 = vmatpush1.msra.mxu0 0.0
  %1068 = vmatprep.subr.mxu0 0.0
  %1069 = vmatpush1.msra.mxu0 0.0
  %1070 = vmatprep.subr.mxu0 0.0
  %1071 = vmatpush1.msra.mxu0 0.0
  %1072 = vmatprep.subr.mxu0 0.0
  %1073 = vmatpush1.msra.mxu0 0.0
  %1074 = vmatprep.subr.mxu0 0.0
  %1075 = vmatpush1.msra.mxu0 0.0
  %1076 = vmatprep.subr.mxu0 0.0
  %1077 = vmatpush1.msra.mxu0 0.0
  %1078 = vmatprep.subr.mxu0 0.0
  %1079 = vmatpush1.msra.mxu0 0.0
  %1080 = vmatprep.subr.mxu0 0.0
  %1081 = vmatpush1.msra.mxu0 0.0
  %1082 = vmatprep.subr.mxu0 0.0
  %1083 = vmatpush1.msra.mxu0 0.0
  %1084 = vmatprep.subr.mxu0 0.0
  %1085 = vmatpush1.msra.mxu0 0.0
  %1086 = vmatprep.subr.mxu0 0.0
  %1087 = vmatpush1.msra.mxu0 0.0
  %1088 = vmatprep.subr.mxu0 0.0
  %1089 = vmatpush1.msra.mxu0 0.0
  %1090 = vmatprep.subr.mxu0 0.0
  %1091 = vmatpush1.msra.mxu0 0.0
  %1092 = vmatprep.subr.mxu0 0.0
  %1093 = vmatpush1.msra.mxu0 0.0
  %1094 = vmatprep.subr.mxu0 0.0
  %1095 = vmatpush1.msra.mxu0 0.0
  %1096 = vmatprep.subr.mxu0 0.0
  %1097 = vmatpush1.msra.mxu0 0.0
  %1098 = vmatprep.subr.mxu0 0.0
  %1099 = vmatpush1.msra.mxu0 0.0
  %1100 = vmatprep.subr.mxu0 0.0
  %1101 = vmatpush1.msra.mxu0 0.0
  %1102 = vmatprep.subr.mxu0 0.0
  %1103 = vmatpush1.msra.mxu0 0.0
  %1104 = vmatprep.subr.mxu0 0.0
  %1105 = vmatpush1.msra.mxu0 0.0
  %1106 = vmatprep.subr.mxu0 0.0
  %1107 = vmatpush1.msra.mxu0 0.0
  %1108 = vmatprep.subr.mxu0 0.0
  %1109 = vmatpush1.msra.mxu0 0.0
  %1110 = vmatprep.subr.mxu0 0.0
  %1111 = vmatpush1.msra.mxu0 0.0
  %1112 = vmatprep.subr.mxu0 0.0
  %1113 = vmatpush1.msra.mxu0 0.0
  %1114 = vmatprep.subr.mxu0 0.0
  %1115 = vmatpush1.msra.mxu0 0.0
  %1116 = vmatprep.mubr.f32.mxu0 0.0
  %1117 = vmatmul.mubr.f32.gmra.mrb[0].mxu0 %v1050
  %v1118 = vpop.f32.mrb[0].mxu0
  %v1119 = vadd.f32 %v58, %v1118
  %v1120 = vpop.f32.mrb[0].mxu0
  %1121 = vdwg.mxu0
  %1122 = vmatprep.subr.mxu0 0.0
  %1123 = vmatpush1.msra.mxu0 %v28
  %1124 = vmatprep.subr.mxu0 0.0
  %1125 = vmatpush1.msra.mxu0 %v29
  %1126 = vmatprep.subr.mxu0 0.0
  %1127 = vmatpush1.msra.mxu0 %v30
  %1128 = vmatprep.subr.mxu0 0.0
  %1129 = vmatpush1.msra.mxu0 %v31
  %1130 = vmatprep.subr.mxu0 0.0
  %1131 = vmatpush1.msra.mxu0 %v32
  %1132 = vmatprep.subr.mxu0 0.0
  %1133 = vmatpush1.msra.mxu0 %v33
  %1134 = vmatprep.subr.mxu0 0.0
  %1135 = vmatpush1.msra.mxu0 %v34
  %1136 = vmatprep.subr.mxu0 0.0
  %1137 = vmatpush1.msra.mxu0 %v35
  %1138 = vmatprep.subr.mxu0 0.0
  %1139 = vmatpush1.msra.mxu0 %v36
  %1140 = vmatprep.subr.mxu0 0.0
  %1141 = vmatpush1.msra.mxu0 %v37
  %1142 = vmatprep.subr.mxu0 0.0
  %1143 = vmatpush1.msra.mxu0 %v38
  %1144 = vmatprep.subr.mxu0 0.0
  %1145 = vmatpush1.msra.mxu0 %v39
  %1146 = vmatprep.subr.mxu0 0.0
  %1147 = vmatpush1.msra.mxu0 %v40
  %1148 = vmatprep.subr.mxu0 0.0
  %1149 = vmatpush1.msra.mxu0 %v41
  %1150 = vmatprep.subr.mxu0 0.0
  %1151 = vmatpush1.msra.mxu0 %v42
  %1152 = vmatprep.subr.mxu0 0.0
  %1153 = vmatpush1.msra.mxu0 %v43
  %1154 = vmatprep.subr.mxu0 0.0
  %1155 = vmatpush1.msra.mxu0 0.0
  %1156 = vmatprep.subr.mxu0 0.0
  %1157 = vmatpush1.msra.mxu0 0.0
  %1158 = vmatprep.subr.mxu0 0.0
  %1159 = vmatpush1.msra.mxu0 0.0
  %1160 = vmatprep.subr.mxu0 0.0
  %1161 = vmatpush1.msra.mxu0 0.0
  %1162 = vmatprep.subr.mxu0 0.0
  %1163 = vmatpush1.msra.mxu0 0.0
  %1164 = vmatprep.subr.mxu0 0.0
  %1165 = vmatpush1.msra.mxu0 0.0
  %1166 = vmatprep.subr.mxu0 0.0
  %1167 = vmatpush1.msra.mxu0 0.0
  %1168 = vmatprep.subr.mxu0 0.0
  %1169 = vmatpush1.msra.mxu0 0.0
  %1170 = vmatprep.subr.mxu0 0.0
  %1171 = vmatpush1.msra.mxu0 0.0
  %1172 = vmatprep.subr.mxu0 0.0
  %1173 = vmatpush1.msra.mxu0 0.0
  %1174 = vmatprep.subr.mxu0 0.0
  %1175 = vmatpush1.msra.mxu0 0.0
  %1176 = vmatprep.subr.mxu0 0.0
  %1177 = vmatpush1.msra.mxu0 0.0
  %1178 = vmatprep.subr.mxu0 0.0
  %1179 = vmatpush1.msra.mxu0 0.0
  %1180 = vmatprep.subr.mxu0 0.0
  %1181 = vmatpush1.msra.mxu0 0.0
  %1182 = vmatprep.subr.mxu0 0.0
  %1183 = vmatpush1.msra.mxu0 0.0
  %1184 = vmatprep.subr.mxu0 0.0
  %1185 = vmatpush1.msra.mxu0 0.0
  %1186 = vmatprep.mubr.f32.mxu0 0.0
  %1187 = vmatmul.mubr.f32.gmra.mrb[0].mxu0 %v953
  %v1188 = vpop.f32.mrb[0].mxu0
  %v1189 = vadd.f32 0.0, %v1188
  %v1190 = vpop.f32.mrb[0].mxu0
  %1191 = vdwg.mxu0
  %v1192 = vadd.f32 %v1119, %v1189
  %v1193 = vmax.f32 %v1192, 0.0
  %v1195 = vcombine.high %v1193, %v1193
  %v1197 = vunpack.c.l.s4 1966171168
  %v1198 = vunpack.c.0.s8 %v1197
  %v1199 = vlaneseq
  %v1200 = vshrl.u32 %v1199, 7
  %v1201 = vsub.s32 %v1198, %v1200
  %v1202 = vrot.slane %v1193, %v1201
  %v1204 = vunpack.c.l.s4 1966171168
  %v1205 = vunpack.c.0.s8 %v1204
  %v1206 = vlaneseq
  %v1207 = vshrl.u32 %v1206, 7
  %v1208 = vsub.s32 %v1205, %v1207
  %v1209 = vrot.slane %v1195, %v1208
  %v1210 = vcombine.high %v1202, %v1202
  %v1211 = vcombine.high %v1209, %v1209
  %v1213 = vunpack.c.l.s4 1966171168
  %v1214 = vunpack.c.0.s8 %v1213
  %v1215 = vlaneseq
  %v1216 = vshrl.u32 %v1215, 7
  %v1217 = vsub.s32 %v1214, %v1216
  %v1218 = vrot.slane %v1202, %v1217
  %v1220 = vunpack.c.l.s4 1966171168
  %v1221 = vunpack.c.0.s8 %v1220
  %v1222 = vlaneseq
  %v1223 = vshrl.u32 %v1222, 7
  %v1224 = vsub.s32 %v1221, %v1223
  %v1225 = vrot.slane %v1209, %v1224
  %v1227 = vunpack.c.l.s4 1966171168
  %v1228 = vunpack.c.0.s8 %v1227
  %v1229 = vlaneseq
  %v1230 = vshrl.u32 %v1229, 7
  %v1231 = vsub.s32 %v1228, %v1230
  %v1232 = vrot.slane %v1210, %v1231
  %v1234 = vunpack.c.l.s4 1966171168
  %v1235 = vunpack.c.0.s8 %v1234
  %v1236 = vlaneseq
  %v1237 = vshrl.u32 %v1236, 7
  %v1238 = vsub.s32 %v1235, %v1237
  %v1239 = vrot.slane %v1211, %v1238
  %v1240 = vcombine.high %v1218, %v1218
  %v1241 = vcombine.high %v1225, %v1225
  %v1242 = vcombine.high %v1232, %v1232
  %v1243 = vcombine.high %v1239, %v1239
  %1252 = vst [vmem:[%s5 + $0x4] sm:$0x1] %v1218
  %1253 = vst [vmem:[%s5 + $0x14] sm:$0x1] %v1232
  %1254 = vst [vmem:[%s5 + $0x24] sm:$0x1] %v1240
  %1255 = vst [vmem:[%s5 + $0x34] sm:$0x1] %v1242
  %1256 = vst [vmem:[%s5 + $0x44] sm:$0x1] %v1225
  %1257 = vst [vmem:[%s5 + $0x54] sm:$0x1] %v1239
  %1258 = vst [vmem:[%s5 + $0x64] sm:$0x1] %v1241
  %1259 = vst [vmem:[%s5 + $0x74] sm:$0x1] %v1243
  %v1260 = vld [vmem:[%s0 + $0x5] sm:$0x1]
  %v1261 = vld [vmem:[%s0 + $0x15] sm:$0x1]
  %v1262 = vld [vmem:[%s0 + $0x25] sm:$0x1]
  %v1263 = vld [vmem:[%s0 + $0x35] sm:$0x1]
  %v1264 = vld [vmem:[%s0 + $0x45] sm:$0x1]
  %v1265 = vld [vmem:[%s0 + $0x55] sm:$0x1]
  %v1266 = vld [vmem:[%s0 + $0x65] sm:$0x1]
  %v1267 = vld [vmem:[%s0 + $0x75] sm:$0x1]
  %v1276 = vrot.slane %v1261, 7
  %v1277 = vsel %vm69, %v1276, %v1260
  %v1278 = vrot.slane %v1262, 6
  %v1279 = vsel %vm72, %v1278, %v1277
  %v1280 = vrot.slane %v1263, 5
  %v1281 = vsel %vm75, %v1280, %v1279
  %v1282 = vrot.slane %v1264, 4
  %v1283 = vsel %vm78, %v1282, %v1281
  %v1284 = vrot.slane %v1265, 3
  %v1285 = vsel %vm81, %v1284, %v1283
  %v1286 = vrot.slane %v1266, 2
  %v1287 = vsel %vm84, %v1286, %v1285
  %v1288 = vrot.slane %v1267, 1
  %v1289 = vsel %vm87, %v1288, %v1287
  %v1290 = vsel %vm89, %v1289, 0
  %1292 = vmatprep.subr.mxu0 0.0
  %1293 = vmatpush1.msra.mxu0 %v26
  %1294 = vmatprep.subr.mxu0 0.0
  %1295 = vmatpush1.msra.mxu0 %v27
  %1296 = vmatprep.subr.mxu0 0.0
  %1297 = vmatpush1.msra.mxu0 0.0
  %1298 = vmatprep.subr.mxu0 0.0
  %1299 = vmatpush1.msra.mxu0 0.0
  %1300 = vmatprep.subr.mxu0 0.0
  %1301 = vmatpush1.msra.mxu0 0.0
  %1302 = vmatprep.subr.mxu0 0.0
  %1303 = vmatpush1.msra.mxu0 0.0
  %1304 = vmatprep.subr.mxu0 0.0
  %1305 = vmatpush1.msra.mxu0 0.0
  %1306 = vmatprep.subr.mxu0 0.0
  %1307 = vmatpush1.msra.mxu0 0.0
  %1308 = vmatprep.subr.mxu0 0.0
  %1309 = vmatpush1.msra.mxu0 0.0
  %1310 = vmatprep.subr.mxu0 0.0
  %1311 = vmatpush1.msra.mxu0 0.0
  %1312 = vmatprep.subr.mxu0 0.0
  %1313 = vmatpush1.msra.mxu0 0.0
  %1314 = vmatprep.subr.mxu0 0.0
  %1315 = vmatpush1.msra.mxu0 0.0
  %1316 = vmatprep.subr.mxu0 0.0
  %1317 = vmatpush1.msra.mxu0 0.0
  %1318 = vmatprep.subr.mxu0 0.0
  %1319 = vmatpush1.msra.mxu0 0.0
  %1320 = vmatprep.subr.mxu0 0.0
  %1321 = vmatpush1.msra.mxu0 0.0
  %1322 = vmatprep.subr.mxu0 0.0
  %1323 = vmatpush1.msra.mxu0 0.0
  %1324 = vmatprep.subr.mxu0 0.0
  %1325 = vmatpush1.msra.mxu0 0.0
  %1326 = vmatprep.subr.mxu0 0.0
  %1327 = vmatpush1.msra.mxu0 0.0
  %1328 = vmatprep.subr.mxu0 0.0
  %1329 = vmatpush1.msra.mxu0 0.0
  %1330 = vmatprep.subr.mxu0 0.0
  %1331 = vmatpush1.msra.mxu0 0.0
  %1332 = vmatprep.subr.mxu0 0.0
  %1333 = vmatpush1.msra.mxu0 0.0
  %1334 = vmatprep.subr.mxu0 0.0
  %1335 = vmatpush1.msra.mxu0 0.0
  %1336 = vmatprep.subr.mxu0 0.0
  %1337 = vmatpush1.msra.mxu0 0.0
  %1338 = vmatprep.subr.mxu0 0.0
  %1339 = vmatpush1.msra.mxu0 0.0
  %1340 = vmatprep.subr.mxu0 0.0
  %1341 = vmatpush1.msra.mxu0 0.0
  %1342 = vmatprep.subr.mxu0 0.0
  %1343 = vmatpush1.msra.mxu0 0.0
  %1344 = vmatprep.subr.mxu0 0.0
  %1345 = vmatpush1.msra.mxu0 0.0
  %1346 = vmatprep.subr.mxu0 0.0
  %1347 = vmatpush1.msra.mxu0 0.0
  %1348 = vmatprep.subr.mxu0 0.0
  %1349 = vmatpush1.msra.mxu0 0.0
  %1350 = vmatprep.subr.mxu0 0.0
  %1351 = vmatpush1.msra.mxu0 0.0
  %1352 = vmatprep.subr.mxu0 0.0
  %1353 = vmatpush1.msra.mxu0 0.0
  %1354 = vmatprep.subr.mxu0 0.0
  %1355 = vmatpush1.msra.mxu0 0.0
  %1356 = vmatprep.mubr.f32.mxu0 0.0
  %1357 = vmatmul.mubr.f32.gmra.mrb[0].mxu0 %v1290
  %v1358 = vpop.f32.mrb[0].mxu0
  %v1359 = vadd.f32 %v58, %v1358
  %v1360 = vpop.f32.mrb[0].mxu0
  %1361 = vdwg.mxu0
  %1362 = vmatprep.subr.mxu0 0.0
  %1363 = vmatpush1.msra.mxu0 %v28
  %1364 = vmatprep.subr.mxu0 0.0
  %1365 = vmatpush1.msra.mxu0 %v29
  %1366 = vmatprep.subr.mxu0 0.0
  %1367 = vmatpush1.msra.mxu0 %v30
  %1368 = vmatprep.subr.mxu0 0.0
  %1369 = vmatpush1.msra.mxu0 %v31
  %1370 = vmatprep.subr.mxu0 0.0
  %1371 = vmatpush1.msra.mxu0 %v32
  %1372 = vmatprep.subr.mxu0 0.0
  %1373 = vmatpush1.msra.mxu0 %v33
  %1374 = vmatprep.subr.mxu0 0.0
  %1375 = vmatpush1.msra.mxu0 %v34
  %1376 = vmatprep.subr.mxu0 0.0
  %1377 = vmatpush1.msra.mxu0 %v35
  %1378 = vmatprep.subr.mxu0 0.0
  %1379 = vmatpush1.msra.mxu0 %v36
  %1380 = vmatprep.subr.mxu0 0.0
  %1381 = vmatpush1.msra.mxu0 %v37
  %1382 = vmatprep.subr.mxu0 0.0
  %1383 = vmatpush1.msra.mxu0 %v38
  %1384 = vmatprep.subr.mxu0 0.0
  %1385 = vmatpush1.msra.mxu0 %v39
  %1386 = vmatprep.subr.mxu0 0.0
  %1387 = vmatpush1.msra.mxu0 %v40
  %1388 = vmatprep.subr.mxu0 0.0
  %1389 = vmatpush1.msra.mxu0 %v41
  %1390 = vmatprep.subr.mxu0 0.0
  %1391 = vmatpush1.msra.mxu0 %v42
  %1392 = vmatprep.subr.mxu0 0.0
  %1393 = vmatpush1.msra.mxu0 %v43
  %1394 = vmatprep.subr.mxu0 0.0
  %1395 = vmatpush1.msra.mxu0 0.0
  %1396 = vmatprep.subr.mxu0 0.0
  %1397 = vmatpush1.msra.mxu0 0.0
  %1398 = vmatprep.subr.mxu0 0.0
  %1399 = vmatpush1.msra.mxu0 0.0
  %1400 = vmatprep.subr.mxu0 0.0
  %1401 = vmatpush1.msra.mxu0 0.0
  %1402 = vmatprep.subr.mxu0 0.0
  %1403 = vmatpush1.msra.mxu0 0.0
  %1404 = vmatprep.subr.mxu0 0.0
  %1405 = vmatpush1.msra.mxu0 0.0
  %1406 = vmatprep.subr.mxu0 0.0
  %1407 = vmatpush1.msra.mxu0 0.0
  %1408 = vmatprep.subr.mxu0 0.0
  %1409 = vmatpush1.msra.mxu0 0.0
  %1410 = vmatprep.subr.mxu0 0.0
  %1411 = vmatpush1.msra.mxu0 0.0
  %1412 = vmatprep.subr.mxu0 0.0
  %1413 = vmatpush1.msra.mxu0 0.0
  %1414 = vmatprep.subr.mxu0 0.0
  %1415 = vmatpush1.msra.mxu0 0.0
  %1416 = vmatprep.subr.mxu0 0.0
  %1417 = vmatpush1.msra.mxu0 0.0
  %1418 = vmatprep.subr.mxu0 0.0
  %1419 = vmatpush1.msra.mxu0 0.0
  %1420 = vmatprep.subr.mxu0 0.0
  %1421 = vmatpush1.msra.mxu0 0.0
  %1422 = vmatprep.subr.mxu0 0.0
  %1423 = vmatpush1.msra.mxu0 0.0
  %1424 = vmatprep.subr.mxu0 0.0
  %1425 = vmatpush1.msra.mxu0 0.0
  %1426 = vmatprep.mubr.f32.mxu0 0.0
  %1427 = vmatmul.mubr.f32.gmra.mrb[0].mxu0 %v1193
  %v1428 = vpop.f32.mrb[0].mxu0
  %v1429 = vadd.f32 0.0, %v1428
  %v1430 = vpop.f32.mrb[0].mxu0
  %1431 = vdwg.mxu0
  %v1432 = vadd.f32 %v1359, %v1429
  %v1433 = vmax.f32 %v1432, 0.0
  %v1435 = vcombine.high %v1433, %v1433
  %v1437 = vunpack.c.l.s4 1966171168
  %v1438 = vunpack.c.0.s8 %v1437
  %v1439 = vlaneseq
  %v1440 = vshrl.u32 %v1439, 7
  %v1441 = vsub.s32 %v1438, %v1440
  %v1442 = vrot.slane %v1433, %v1441
  %v1444 = vunpack.c.l.s4 1966171168
  %v1445 = vunpack.c.0.s8 %v1444
  %v1446 = vlaneseq
  %v1447 = vshrl.u32 %v1446, 7
  %v1448 = vsub.s32 %v1445, %v1447
  %v1449 = vrot.slane %v1435, %v1448
  %v1450 = vcombine.high %v1442, %v1442
  %v1451 = vcombine.high %v1449, %v1449
  %v1453 = vunpack.c.l.s4 1966171168
  %v1454 = vunpack.c.0.s8 %v1453
  %v1455 = vlaneseq
  %v1456 = vshrl.u32 %v1455, 7
  %v1457 = vsub.s32 %v1454, %v1456
  %v1458 = vrot.slane %v1442, %v1457
  %v1460 = vunpack.c.l.s4 1966171168
  %v1461 = vunpack.c.0.s8 %v1460
  %v1462 = vlaneseq
  %v1463 = vshrl.u32 %v1462, 7
  %v1464 = vsub.s32 %v1461, %v1463
  %v1465 = vrot.slane %v1449, %v1464
  %v1467 = vunpack.c.l.s4 1966171168
  %v1468 = vunpack.c.0.s8 %v1467
  %v1469 = vlaneseq
  %v1470 = vshrl.u32 %v1469, 7
  %v1471 = vsub.s32 %v1468, %v1470
  %v1472 = vrot.slane %v1450, %v1471
  %v1474 = vunpack.c.l.s4 1966171168
  %v1475 = vunpack.c.0.s8 %v1474
  %v1476 = vlaneseq
  %v1477 = vshrl.u32 %v1476, 7
  %v1478 = vsub.s32 %v1475, %v1477
  %v1479 = vrot.slane %v1451, %v1478
  %v1480 = vcombine.high %v1458, %v1458
  %v1481 = vcombine.high %v1465, %v1465
  %v1482 = vcombine.high %v1472, %v1472
  %v1483 = vcombine.high %v1479, %v1479
  %1492 = vst [vmem:[%s5 + $0x5] sm:$0x1] %v1458
  %1493 = vst [vmem:[%s5 + $0x15] sm:$0x1] %v1472
  %1494 = vst [vmem:[%s5 + $0x25] sm:$0x1] %v1480
  %1495 = vst [vmem:[%s5 + $0x35] sm:$0x1] %v1482
  %1496 = vst [vmem:[%s5 + $0x45] sm:$0x1] %v1465
  %1497 = vst [vmem:[%s5 + $0x55] sm:$0x1] %v1479
  %1498 = vst [vmem:[%s5 + $0x65] sm:$0x1] %v1481
  %1499 = vst [vmem:[%s5 + $0x75] sm:$0x1] %v1483
  %v1500 = vld [vmem:[%s0 + $0x6] sm:$0x1]
  %v1501 = vld [vmem:[%s0 + $0x16] sm:$0x1]
  %v1502 = vld [vmem:[%s0 + $0x26] sm:$0x1]
  %v1503 = vld [vmem:[%s0 + $0x36] sm:$0x1]
  %v1504 = vld [vmem:[%s0 + $0x46] sm:$0x1]
  %v1505 = vld [vmem:[%s0 + $0x56] sm:$0x1]
  %v1506 = vld [vmem:[%s0 + $0x66] sm:$0x1]
  %v1507 = vld [vmem:[%s0 + $0x76] sm:$0x1]
  %v1516 = vrot.slane %v1501, 7
  %v1517 = vsel %vm69, %v1516, %v1500
  %v1518 = vrot.slane %v1502, 6
  %v1519 = vsel %vm72, %v1518, %v1517
  %v1520 = vrot.slane %v1503, 5
  %v1521 = vsel %vm75, %v1520, %v1519
  %v1522 = vrot.slane %v1504, 4
  %v1523 = vsel %vm78, %v1522, %v1521
  %v1524 = vrot.slane %v1505, 3
  %v1525 = vsel %vm81, %v1524, %v1523
  %v1526 = vrot.slane %v1506, 2
  %v1527 = vsel %vm84, %v1526, %v1525
  %v1528 = vrot.slane %v1507, 1
  %v1529 = vsel %vm87, %v1528, %v1527
  %v1530 = vsel %vm89, %v1529, 0
  %1532 = vmatprep.subr.mxu0 0.0
  %1533 = vmatpush1.msra.mxu0 %v26
  %1534 = vmatprep.subr.mxu0 0.0
  %1535 = vmatpush1.msra.mxu0 %v27
  %1536 = vmatprep.subr.mxu0 0.0
  %1537 = vmatpush1.msra.mxu0 0.0
  %1538 = vmatprep.subr.mxu0 0.0
  %1539 = vmatpush1.msra.mxu0 0.0
  %1540 = vmatprep.subr.mxu0 0.0
  %1541 = vmatpush1.msra.mxu0 0.0
  %1542 = vmatprep.subr.mxu0 0.0
  %1543 = vmatpush1.msra.mxu0 0.0
  %1544 = vmatprep.subr.mxu0 0.0
  %1545 = vmatpush1.msra.mxu0 0.0
  %1546 = vmatprep.subr.mxu0 0.0
  %1547 = vmatpush1.msra.mxu0 0.0
  %1548 = vmatprep.subr.mxu0 0.0
  %1549 = vmatpush1.msra.mxu0 0.0
  %1550 = vmatprep.subr.mxu0 0.0
  %1551 = vmatpush1.msra.mxu0 0.0
  %1552 = vmatprep.subr.mxu0 0.0
  %1553 = vmatpush1.msra.mxu0 0.0
  %1554 = vmatprep.subr.mxu0 0.0
  %1555 = vmatpush1.msra.mxu0 0.0
  %1556 = vmatprep.subr.mxu0 0.0
  %1557 = vmatpush1.msra.mxu0 0.0
  %1558 = vmatprep.subr.mxu0 0.0
  %1559 = vmatpush1.msra.mxu0 0.0
  %1560 = vmatprep.subr.mxu0 0.0
  %1561 = vmatpush1.msra.mxu0 0.0
  %1562 = vmatprep.subr.mxu0 0.0
  %1563 = vmatpush1.msra.mxu0 0.0
  %1564 = vmatprep.subr.mxu0 0.0
  %1565 = vmatpush1.msra.mxu0 0.0
  %1566 = vmatprep.subr.mxu0 0.0
  %1567 = vmatpush1.msra.mxu0 0.0
  %1568 = vmatprep.subr.mxu0 0.0
  %1569 = vmatpush1.msra.mxu0 0.0
  %1570 = vmatprep.subr.mxu0 0.0
  %1571 = vmatpush1.msra.mxu0 0.0
  %1572 = vmatprep.subr.mxu0 0.0
  %1573 = vmatpush1.msra.mxu0 0.0
  %1574 = vmatprep.subr.mxu0 0.0
  %1575 = vmatpush1.msra.mxu0 0.0
  %1576 = vmatprep.subr.mxu0 0.0
  %1577 = vmatpush1.msra.mxu0 0.0
  %1578 = vmatprep.subr.mxu0 0.0
  %1579 = vmatpush1.msra.mxu0 0.0
  %1580 = vmatprep.subr.mxu0 0.0
  %1581 = vmatpush1.msra.mxu0 0.0
  %1582 = vmatprep.subr.mxu0 0.0
  %1583 = vmatpush1.msra.mxu0 0.0
  %1584 = vmatprep.subr.mxu0 0.0
  %1585 = vmatpush1.msra.mxu0 0.0
  %1586 = vmatprep.subr.mxu0 0.0
  %1587 = vmatpush1.msra.mxu0 0.0
  %1588 = vmatprep.subr.mxu0 0.0
  %1589 = vmatpush1.msra.mxu0 0.0
  %1590 = vmatprep.subr.mxu0 0.0
  %1591 = vmatpush1.msra.mxu0 0.0
  %1592 = vmatprep.subr.mxu0 0.0
  %1593 = vmatpush1.msra.mxu0 0.0
  %1594 = vmatprep.subr.mxu0 0.0
  %1595 = vmatpush1.msra.mxu0 0.0
  %1596 = vmatprep.mubr.f32.mxu0 0.0
  %1597 = vmatmul.mubr.f32.gmra.mrb[0].mxu0 %v1530
  %v1598 = vpop.f32.mrb[0].mxu0
  %v1599 = vadd.f32 %v58, %v1598
  %v1600 = vpop.f32.mrb[0].mxu0
  %1601 = vdwg.mxu0
  %1602 = vmatprep.subr.mxu0 0.0
  %1603 = vmatpush1.msra.mxu0 %v28
  %1604 = vmatprep.subr.mxu0 0.0
  %1605 = vmatpush1.msra.mxu0 %v29
  %1606 = vmatprep.subr.mxu0 0.0
  %1607 = vmatpush1.msra.mxu0 %v30
  %1608 = vmatprep.subr.mxu0 0.0
  %1609 = vmatpush1.msra.mxu0 %v31
  %1610 = vmatprep.subr.mxu0 0.0
  %1611 = vmatpush1.msra.mxu0 %v32
  %1612 = vmatprep.subr.mxu0 0.0
  %1613 = vmatpush1.msra.mxu0 %v33
  %1614 = vmatprep.subr.mxu0 0.0
  %1615 = vmatpush1.msra.mxu0 %v34
  %1616 = vmatprep.subr.mxu0 0.0
  %1617 = vmatpush1.msra.mxu0 %v35
  %1618 = vmatprep.subr.mxu0 0.0
  %1619 = vmatpush1.msra.mxu0 %v36
  %1620 = vmatprep.subr.mxu0 0.0
  %1621 = vmatpush1.msra.mxu0 %v37
  %1622 = vmatprep.subr.mxu0 0.0
  %1623 = vmatpush1.msra.mxu0 %v38
  %1624 = vmatprep.subr.mxu0 0.0
  %1625 = vmatpush1.msra.mxu0 %v39
  %1626 = vmatprep.subr.mxu0 0.0
  %1627 = vmatpush1.msra.mxu0 %v40
  %1628 = vmatprep.subr.mxu0 0.0
  %1629 = vmatpush1.msra.mxu0 %v41
  %1630 = vmatprep.subr.mxu0 0.0
  %1631 = vmatpush1.msra.mxu0 %v42
  %1632 = vmatprep.subr.mxu0 0.0
  %1633 = vmatpush1.msra.mxu0 %v43
  %1634 = vmatprep.subr.mxu0 0.0
  %1635 = vmatpush1.msra.mxu0 0.0
  %1636 = vmatprep.subr.mxu0 0.0
  %1637 = vmatpush1.msra.mxu0 0.0
  %1638 = vmatprep.subr.mxu0 0.0
  %1639 = vmatpush1.msra.mxu0 0.0
  %1640 = vmatprep.subr.mxu0 0.0
  %1641 = vmatpush1.msra.mxu0 0.0
  %1642 = vmatprep.subr.mxu0 0.0
  %1643 = vmatpush1.msra.mxu0 0.0
  %1644 = vmatprep.subr.mxu0 0.0
  %1645 = vmatpush1.msra.mxu0 0.0
  %1646 = vmatprep.subr.mxu0 0.0
  %1647 = vmatpush1.msra.mxu0 0.0
  %1648 = vmatprep.subr.mxu0 0.0
  %1649 = vmatpush1.msra.mxu0 0.0
  %1650 = vmatprep.subr.mxu0 0.0
  %1651 = vmatpush1.msra.mxu0 0.0
  %1652 = vmatprep.subr.mxu0 0.0
  %1653 = vmatpush1.msra.mxu0 0.0
  %1654 = vmatprep.subr.mxu0 0.0
  %1655 = vmatpush1.msra.mxu0 0.0
  %1656 = vmatprep.subr.mxu0 0.0
  %1657 = vmatpush1.msra.mxu0 0.0
  %1658 = vmatprep.subr.mxu0 0.0
  %1659 = vmatpush1.msra.mxu0 0.0
  %1660 = vmatprep.subr.mxu0 0.0
  %1661 = vmatpush1.msra.mxu0 0.0
  %1662 = vmatprep.subr.mxu0 0.0
  %1663 = vmatpush1.msra.mxu0 0.0
  %1664 = vmatprep.subr.mxu0 0.0
  %1665 = vmatpush1.msra.mxu0 0.0
  %1666 = vmatprep.mubr.f32.mxu0 0.0
  %1667 = vmatmul.mubr.f32.gmra.mrb[0].mxu0 %v1433
  %v1668 = vpop.f32.mrb[0].mxu0
  %v1669 = vadd.f32 0.0, %v1668
  %v1670 = vpop.f32.mrb[0].mxu0
  %1671 = vdwg.mxu0
  %v1672 = vadd.f32 %v1599, %v1669
  %v1673 = vmax.f32 %v1672, 0.0
  %v1675 = vcombine.high %v1673, %v1673
  %v1677 = vunpack.c.l.s4 1966171168
  %v1678 = vunpack.c.0.s8 %v1677
  %v1679 = vlaneseq
  %v1680 = vshrl.u32 %v1679, 7
  %v1681 = vsub.s32 %v1678, %v1680
  %v1682 = vrot.slane %v1673, %v1681
  %v1684 = vunpack.c.l.s4 1966171168
  %v1685 = vunpack.c.0.s8 %v1684
  %v1686 = vlaneseq
  %v1687 = vshrl.u32 %v1686, 7
  %v1688 = vsub.s32 %v1685, %v1687
  %v1689 = vrot.slane %v1675, %v1688
  %v1690 = vcombine.high %v1682, %v1682
  %v1691 = vcombine.high %v1689, %v1689
  %v1693 = vunpack.c.l.s4 1966171168
  %v1694 = vunpack.c.0.s8 %v1693
  %v1695 = vlaneseq
  %v1696 = vshrl.u32 %v1695, 7
  %v1697 = vsub.s32 %v1694, %v1696
  %v1698 = vrot.slane %v1682, %v1697
  %v1700 = vunpack.c.l.s4 1966171168
  %v1701 = vunpack.c.0.s8 %v1700
  %v1702 = vlaneseq
  %v1703 = vshrl.u32 %v1702, 7
  %v1704 = vsub.s32 %v1701, %v1703
  %v1705 = vrot.slane %v1689, %v1704
  %v1707 = vunpack.c.l.s4 1966171168
  %v1708 = vunpack.c.0.s8 %v1707
  %v1709 = vlaneseq
  %v1710 = vshrl.u32 %v1709, 7
  %v1711 = vsub.s32 %v1708, %v1710
  %v1712 = vrot.slane %v1690, %v1711
  %v1714 = vunpack.c.l.s4 1966171168
  %v1715 = vunpack.c.0.s8 %v1714
  %v1716 = vlaneseq
  %v1717 = vshrl.u32 %v1716, 7
  %v1718 = vsub.s32 %v1715, %v1717
  %v1719 = vrot.slane %v1691, %v1718
  %v1720 = vcombine.high %v1698, %v1698
  %v1721 = vcombine.high %v1705, %v1705
  %v1722 = vcombine.high %v1712, %v1712
  %v1723 = vcombine.high %v1719, %v1719
  %1732 = vst [vmem:[%s5 + $0x6] sm:$0x1] %v1698
  %1733 = vst [vmem:[%s5 + $0x16] sm:$0x1] %v1712
  %1734 = vst [vmem:[%s5 + $0x26] sm:$0x1] %v1720
  %1735 = vst [vmem:[%s5 + $0x36] sm:$0x1] %v1722
  %1736 = vst [vmem:[%s5 + $0x46] sm:$0x1] %v1705
  %1737 = vst [vmem:[%s5 + $0x56] sm:$0x1] %v1719
  %1738 = vst [vmem:[%s5 + $0x66] sm:$0x1] %v1721
  %1739 = vst [vmem:[%s5 + $0x76] sm:$0x1] %v1723
  %v1740 = vld [vmem:[%s0 + $0x7] sm:$0x1]
  %v1741 = vld [vmem:[%s0 + $0x17] sm:$0x1]
  %v1742 = vld [vmem:[%s0 + $0x27] sm:$0x1]
  %v1743 = vld [vmem:[%s0 + $0x37] sm:$0x1]
  %v1744 = vld [vmem:[%s0 + $0x47] sm:$0x1]
  %v1745 = vld [vmem:[%s0 + $0x57] sm:$0x1]
  %v1746 = vld [vmem:[%s0 + $0x67] sm:$0x1]
  %v1747 = vld [vmem:[%s0 + $0x77] sm:$0x1]
  %v1756 = vrot.slane %v1741, 7
  %v1757 = vsel %vm69, %v1756, %v1740
  %v1758 = vrot.slane %v1742, 6
  %v1759 = vsel %vm72, %v1758, %v1757
  %v1760 = vrot.slane %v1743, 5
  %v1761 = vsel %vm75, %v1760, %v1759
  %v1762 = vrot.slane %v1744, 4
  %v1763 = vsel %vm78, %v1762, %v1761
  %v1764 = vrot.slane %v1745, 3
  %v1765 = vsel %vm81, %v1764, %v1763
  %v1766 = vrot.slane %v1746, 2
  %v1767 = vsel %vm84, %v1766, %v1765
  %v1768 = vrot.slane %v1747, 1
  %v1769 = vsel %vm87, %v1768, %v1767
  %v1770 = vsel %vm89, %v1769, 0
  %1772 = vmatprep.subr.mxu0 0.0
  %1773 = vmatpush1.msra.mxu0 %v26
  %1774 = vmatprep.subr.mxu0 0.0
  %1775 = vmatpush1.msra.mxu0 %v27
  %1776 = vmatprep.subr.mxu0 0.0
  %1777 = vmatpush1.msra.mxu0 0.0
  %1778 = vmatprep.subr.mxu0 0.0
  %1779 = vmatpush1.msra.mxu0 0.0
  %1780 = vmatprep.subr.mxu0 0.0
  %1781 = vmatpush1.msra.mxu0 0.0
  %1782 = vmatprep.subr.mxu0 0.0
  %1783 = vmatpush1.msra.mxu0 0.0
  %1784 = vmatprep.subr.mxu0 0.0
  %1785 = vmatpush1.msra.mxu0 0.0
  %1786 = vmatprep.subr.mxu0 0.0
  %1787 = vmatpush1.msra.mxu0 0.0
  %1788 = vmatprep.subr.mxu0 0.0
  %1789 = vmatpush1.msra.mxu0 0.0
  %1790 = vmatprep.subr.mxu0 0.0
  %1791 = vmatpush1.msra.mxu0 0.0
  %1792 = vmatprep.subr.mxu0 0.0
  %1793 = vmatpush1.msra.mxu0 0.0
  %1794 = vmatprep.subr.mxu0 0.0
  %1795 = vmatpush1.msra.mxu0 0.0
  %1796 = vmatprep.subr.mxu0 0.0
  %1797 = vmatpush1.msra.mxu0 0.0
  %1798 = vmatprep.subr.mxu0 0.0
  %1799 = vmatpush1.msra.mxu0 0.0
  %1800 = vmatprep.subr.mxu0 0.0
  %1801 = vmatpush1.msra.mxu0 0.0
  %1802 = vmatprep.subr.mxu0 0.0
  %1803 = vmatpush1.msra.mxu0 0.0
  %1804 = vmatprep.subr.mxu0 0.0
  %1805 = vmatpush1.msra.mxu0 0.0
  %1806 = vmatprep.subr.mxu0 0.0
  %1807 = vmatpush1.msra.mxu0 0.0
  %1808 = vmatprep.subr.mxu0 0.0
  %1809 = vmatpush1.msra.mxu0 0.0
  %1810 = vmatprep.subr.mxu0 0.0
  %1811 = vmatpush1.msra.mxu0 0.0
  %1812 = vmatprep.subr.mxu0 0.0
  %1813 = vmatpush1.msra.mxu0 0.0
  %1814 = vmatprep.subr.mxu0 0.0
  %1815 = vmatpush1.msra.mxu0 0.0
  %1816 = vmatprep.subr.mxu0 0.0
  %1817 = vmatpush1.msra.mxu0 0.0
  %1818 = vmatprep.subr.mxu0 0.0
  %1819 = vmatpush1.msra.mxu0 0.0
  %1820 = vmatprep.subr.mxu0 0.0
  %1821 = vmatpush1.msra.mxu0 0.0
  %1822 = vmatprep.subr.mxu0 0.0
  %1823 = vmatpush1.msra.mxu0 0.0
  %1824 = vmatprep.subr.mxu0 0.0
  %1825 = vmatpush1.msra.mxu0 0.0
  %1826 = vmatprep.subr.mxu0 0.0
  %1827 = vmatpush1.msra.mxu0 0.0
  %1828 = vmatprep.subr.mxu0 0.0
  %1829 = vmatpush1.msra.mxu0 0.0
  %1830 = vmatprep.subr.mxu0 0.0
  %1831 = vmatpush1.msra.mxu0 0.0
  %1832 = vmatprep.subr.mxu0 0.0
  %1833 = vmatpush1.msra.mxu0 0.0
  %1834 = vmatprep.subr.mxu0 0.0
  %1835 = vmatpush1.msra.mxu0 0.0
  %1836 = vmatprep.mubr.f32.mxu0 0.0
  %1837 = vmatmul.mubr.f32.gmra.mrb[0].mxu0 %v1770
  %v1838 = vpop.f32.mrb[0].mxu0
  %v1839 = vadd.f32 %v58, %v1838
  %v1840 = vpop.f32.mrb[0].mxu0
  %1841 = vdwg.mxu0
  %1842 = vmatprep.subr.mxu0 0.0
  %1843 = vmatpush1.msra.mxu0 %v28
  %1844 = vmatprep.subr.mxu0 0.0
  %1845 = vmatpush1.msra.mxu0 %v29
  %1846 = vmatprep.subr.mxu0 0.0
  %1847 = vmatpush1.msra.mxu0 %v30
  %1848 = vmatprep.subr.mxu0 0.0
  %1849 = vmatpush1.msra.mxu0 %v31
  %1850 = vmatprep.subr.mxu0 0.0
  %1851 = vmatpush1.msra.mxu0 %v32
  %1852 = vmatprep.subr.mxu0 0.0
  %1853 = vmatpush1.msra.mxu0 %v33
  %1854 = vmatprep.subr.mxu0 0.0
  %1855 = vmatpush1.msra.mxu0 %v34
  %1856 = vmatprep.subr.mxu0 0.0
  %1857 = vmatpush1.msra.mxu0 %v35
  %1858 = vmatprep.subr.mxu0 0.0
  %1859 = vmatpush1.msra.mxu0 %v36
  %1860 = vmatprep.subr.mxu0 0.0
  %1861 = vmatpush1.msra.mxu0 %v37
  %1862 = vmatprep.subr.mxu0 0.0
  %1863 = vmatpush1.msra.mxu0 %v38
  %1864 = vmatprep.subr.mxu0 0.0
  %1865 = vmatpush1.msra.mxu0 %v39
  %1866 = vmatprep.subr.mxu0 0.0
  %1867 = vmatpush1.msra.mxu0 %v40
  %1868 = vmatprep.subr.mxu0 0.0
  %1869 = vmatpush1.msra.mxu0 %v41
  %1870 = vmatprep.subr.mxu0 0.0
  %1871 = vmatpush1.msra.mxu0 %v42
  %1872 = vmatprep.subr.mxu0 0.0
  %1873 = vmatpush1.msra.mxu0 %v43
  %1874 = vmatprep.subr.mxu0 0.0
  %1875 = vmatpush1.msra.mxu0 0.0
  %1876 = vmatprep.subr.mxu0 0.0
  %1877 = vmatpush1.msra.mxu0 0.0
  %1878 = vmatprep.subr.mxu0 0.0
  %1879 = vmatpush1.msra.mxu0 0.0
  %1880 = vmatprep.subr.mxu0 0.0
  %1881 = vmatpush1.msra.mxu0 0.0
  %1882 = vmatprep.subr.mxu0 0.0
  %1883 = vmatpush1.msra.mxu0 0.0
  %1884 = vmatprep.subr.mxu0 0.0
  %1885 = vmatpush1.msra.mxu0 0.0
  %1886 = vmatprep.subr.mxu0 0.0
  %1887 = vmatpush1.msra.mxu0 0.0
  %1888 = vmatprep.subr.mxu0 0.0
  %1889 = vmatpush1.msra.mxu0 0.0
  %1890 = vmatprep.subr.mxu0 0.0
  %1891 = vmatpush1.msra.mxu0 0.0
  %1892 = vmatprep.subr.mxu0 0.0
  %1893 = vmatpush1.msra.mxu0 0.0
  %1894 = vmatprep.subr.mxu0 0.0
  %1895 = vmatpush1.msra.mxu0 0.0
  %1896 = vmatprep.subr.mxu0 0.0
  %1897 = vmatpush1.msra.mxu0 0.0
  %1898 = vmatprep.subr.mxu0 0.0
  %1899 = vmatpush1.msra.mxu0 0.0
  %1900 = vmatprep.subr.mxu0 0.0
  %1901 = vmatpush1.msra.mxu0 0.0
  %1902 = vmatprep.subr.mxu0 0.0
  %1903 = vmatpush1.msra.mxu0 0.0
  %1904 = vmatprep.subr.mxu0 0.0
  %1905 = vmatpush1.msra.mxu0 0.0
  %1906 = vmatprep.mubr.f32.mxu0 0.0
  %1907 = vmatmul.mubr.f32.gmra.mrb[0].mxu0 %v1673
  %v1908 = vpop.f32.mrb[0].mxu0
  %v1909 = vadd.f32 0.0, %v1908
  %v1910 = vpop.f32.mrb[0].mxu0
  %1911 = vdwg.mxu0
  %v1912 = vadd.f32 %v1839, %v1909
  %v1913 = vmax.f32 %v1912, 0.0
  %v1915 = vcombine.high %v1913, %v1913
  %v1917 = vunpack.c.l.s4 1966171168
  %v1918 = vunpack.c.0.s8 %v1917
  %v1919 = vlaneseq
  %v1920 = vshrl.u32 %v1919, 7
  %v1921 = vsub.s32 %v1918, %v1920
  %v1922 = vrot.slane %v1913, %v1921
  %v1924 = vunpack.c.l.s4 1966171168
  %v1925 = vunpack.c.0.s8 %v1924
  %v1926 = vlaneseq
  %v1927 = vshrl.u32 %v1926, 7
  %v1928 = vsub.s32 %v1925, %v1927
  %v1929 = vrot.slane %v1915, %v1928
  %v1930 = vcombine.high %v1922, %v1922
  %v1931 = vcombine.high %v1929, %v1929
  %v1933 = vunpack.c.l.s4 1966171168
  %v1934 = vunpack.c.0.s8 %v1933
  %v1935 = vlaneseq
  %v1936 = vshrl.u32 %v1935, 7
  %v1937 = vsub.s32 %v1934, %v1936
  %v1938 = vrot.slane %v1922, %v1937
  %v1940 = vunpack.c.l.s4 1966171168
  %v1941 = vunpack.c.0.s8 %v1940
  %v1942 = vlaneseq
  %v1943 = vshrl.u32 %v1942, 7
  %v1944 = vsub.s32 %v1941, %v1943
  %v1945 = vrot.slane %v1929, %v1944
  %v1947 = vunpack.c.l.s4 1966171168
  %v1948 = vunpack.c.0.s8 %v1947
  %v1949 = vlaneseq
  %v1950 = vshrl.u32 %v1949, 7
  %v1951 = vsub.s32 %v1948, %v1950
  %v1952 = vrot.slane %v1930, %v1951
  %v1954 = vunpack.c.l.s4 1966171168
  %v1955 = vunpack.c.0.s8 %v1954
  %v1956 = vlaneseq
  %v1957 = vshrl.u32 %v1956, 7
  %v1958 = vsub.s32 %v1955, %v1957
  %v1959 = vrot.slane %v1931, %v1958
  %v1960 = vcombine.high %v1938, %v1938
  %v1961 = vcombine.high %v1945, %v1945
  %v1962 = vcombine.high %v1952, %v1952
  %v1963 = vcombine.high %v1959, %v1959
  %1972 = vst [vmem:[%s5 + $0x7] sm:$0x1] %v1938
  %1973 = vst [vmem:[%s5 + $0x17] sm:$0x1] %v1952
  %1974 = vst [vmem:[%s5 + $0x27] sm:$0x1] %v1960
  %1975 = vst [vmem:[%s5 + $0x37] sm:$0x1] %v1962
  %1976 = vst [vmem:[%s5 + $0x47] sm:$0x1] %v1945
  %1977 = vst [vmem:[%s5 + $0x57] sm:$0x1] %v1959
  %1978 = vst [vmem:[%s5 + $0x67] sm:$0x1] %v1961
  %1979 = vst [vmem:[%s5 + $0x77] sm:$0x1] %v1963
  %v1980 = vld [vmem:[%s0 + $0x8] sm:$0x1]
  %v1981 = vld [vmem:[%s0 + $0x18] sm:$0x1]
  %v1982 = vld [vmem:[%s0 + $0x28] sm:$0x1]
  %v1983 = vld [vmem:[%s0 + $0x38] sm:$0x1]
  %v1984 = vld [vmem:[%s0 + $0x48] sm:$0x1]
  %v1985 = vld [vmem:[%s0 + $0x58] sm:$0x1]
  %v1986 = vld [vmem:[%s0 + $0x68] sm:$0x1]
  %v1987 = vld [vmem:[%s0 + $0x78] sm:$0x1]
  %v1996 = vrot.slane %v1981, 7
  %v1997 = vsel %vm69, %v1996, %v1980
  %v1998 = vrot.slane %v1982, 6
  %v1999 = vsel %vm72, %v1998, %v1997
  %v2000 = vrot.slane %v1983, 5
  %v2001 = vsel %vm75, %v2000, %v1999
  %v2002 = vrot.slane %v1984, 4
  %v2003 = vsel %vm78, %v2002, %v2001
  %v2004 = vrot.slane %v1985, 3
  %v2005 = vsel %vm81, %v2004, %v2003
  %v2006 = vrot.slane %v1986, 2
  %v2007 = vsel %vm84, %v2006, %v2005
  %v2008 = vrot.slane %v1987, 1
  %v2009 = vsel %vm87, %v2008, %v2007
  %v2010 = vsel %vm89, %v2009, 0
  %2012 = vmatprep.subr.mxu0 0.0
  %2013 = vmatpush1.msra.mxu0 %v26
  %2014 = vmatprep.subr.mxu0 0.0
  %2015 = vmatpush1.msra.mxu0 %v27
  %2016 = vmatprep.subr.mxu0 0.0
  %2017 = vmatpush1.msra.mxu0 0.0
  %2018 = vmatprep.subr.mxu0 0.0
  %2019 = vmatpush1.msra.mxu0 0.0
  %2020 = vmatprep.subr.mxu0 0.0
  %2021 = vmatpush1.msra.mxu0 0.0
  %2022 = vmatprep.subr.mxu0 0.0
  %2023 = vmatpush1.msra.mxu0 0.0
  %2024 = vmatprep.subr.mxu0 0.0
  %2025 = vmatpush1.msra.mxu0 0.0
  %2026 = vmatprep.subr.mxu0 0.0
  %2027 = vmatpush1.msra.mxu0 0.0
  %2028 = vmatprep.subr.mxu0 0.0
  %2029 = vmatpush1.msra.mxu0 0.0
  %2030 = vmatprep.subr.mxu0 0.0
  %2031 = vmatpush1.msra.mxu0 0.0
  %2032 = vmatprep.subr.mxu0 0.0
  %2033 = vmatpush1.msra.mxu0 0.0
  %2034 = vmatprep.subr.mxu0 0.0
  %2035 = vmatpush1.msra.mxu0 0.0
  %2036 = vmatprep.subr.mxu0 0.0
  %2037 = vmatpush1.msra.mxu0 0.0
  %2038 = vmatprep.subr.mxu0 0.0
  %2039 = vmatpush1.msra.mxu0 0.0
  %2040 = vmatprep.subr.mxu0 0.0
  %2041 = vmatpush1.msra.mxu0 0.0
  %2042 = vmatprep.subr.mxu0 0.0
  %2043 = vmatpush1.msra.mxu0 0.0
  %2044 = vmatprep.subr.mxu0 0.0
  %2045 = vmatpush1.msra.mxu0 0.0
  %2046 = vmatprep.subr.mxu0 0.0
  %2047 = vmatpush1.msra.mxu0 0.0
  %2048 = vmatprep.subr.mxu0 0.0
  %2049 = vmatpush1.msra.mxu0 0.0
  %2050 = vmatprep.subr.mxu0 0.0
  %2051 = vmatpush1.msra.mxu0 0.0
  %2052 = vmatprep.subr.mxu0 0.0
  %2053 = vmatpush1.msra.mxu0 0.0
  %2054 = vmatprep.subr.mxu0 0.0
  %2055 = vmatpush1.msra.mxu0 0.0
  %2056 = vmatprep.subr.mxu0 0.0
  %2057 = vmatpush1.msra.mxu0 0.0
  %2058 = vmatprep.subr.mxu0 0.0
  %2059 = vmatpush1.msra.mxu0 0.0
  %2060 = vmatprep.subr.mxu0 0.0
  %2061 = vmatpush1.msra.mxu0 0.0
  %2062 = vmatprep.subr.mxu0 0.0
  %2063 = vmatpush1.msra.mxu0 0.0
  %2064 = vmatprep.subr.mxu0 0.0
  %2065 = vmatpush1.msra.mxu0 0.0
  %2066 = vmatprep.subr.mxu0 0.0
  %2067 = vmatpush1.msra.mxu0 0.0
  %2068 = vmatprep.subr.mxu0 0.0
  %2069 = vmatpush1.msra.mxu0 0.0
  %2070 = vmatprep.subr.mxu0 0.0
  %2071 = vmatpush1.msra.mxu0 0.0
  %2072 = vmatprep.subr.mxu0 0.0
  %2073 = vmatpush1.msra.mxu0 0.0
  %2074 = vmatprep.subr.mxu0 0.0
  %2075 = vmatpush1.msra.mxu0 0.0
  %2076 = vmatprep.mubr.f32.mxu0 0.0
  %2077 = vmatmul.mubr.f32.gmra.mrb[0].mxu0 %v2010
  %v2078 = vpop.f32.mrb[0].mxu0
  %v2079 = vadd.f32 %v58, %v2078
  %v2080 = vpop.f32.mrb[0].mxu0
  %2081 = vdwg.mxu0
  %2082 = vmatprep.subr.mxu0 0.0
  %2083 = vmatpush1.msra.mxu0 %v28
  %2084 = vmatprep.subr.mxu0 0.0
  %2085 = vmatpush1.msra.mxu0 %v29
  %2086 = vmatprep.subr.mxu0 0.0
  %2087 = vmatpush1.msra.mxu0 %v30
  %2088 = vmatprep.subr.mxu0 0.0
  %2089 = vmatpush1.msra.mxu0 %v31
  %2090 = vmatprep.subr.mxu0 0.0
  %2091 = vmatpush1.msra.mxu0 %v32
  %2092 = vmatprep.subr.mxu0 0.0
  %2093 = vmatpush1.msra.mxu0 %v33
  %2094 = vmatprep.subr.mxu0 0.0
  %2095 = vmatpush1.msra.mxu0 %v34
  %2096 = vmatprep.subr.mxu0 0.0
  %2097 = vmatpush1.msra.mxu0 %v35
  %2098 = vmatprep.subr.mxu0 0.0
  %2099 = vmatpush1.msra.mxu0 %v36
  %2100 = vmatprep.subr.mxu0 0.0
  %2101 = vmatpush1.msra.mxu0 %v37
  %2102 = vmatprep.subr.mxu0 0.0
  %2103 = vmatpush1.msra.mxu0 %v38
  %2104 = vmatprep.subr.mxu0 0.0
  %2105 = vmatpush1.msra.mxu0 %v39
  %2106 = vmatprep.subr.mxu0 0.0
  %2107 = vmatpush1.msra.mxu0 %v40
  %2108 = vmatprep.subr.mxu0 0.0
  %2109 = vmatpush1.msra.mxu0 %v41
  %2110 = vmatprep.subr.mxu0 0.0
  %2111 = vmatpush1.msra.mxu0 %v42
  %2112 = vmatprep.subr.mxu0 0.0
  %2113 = vmatpush1.msra.mxu0 %v43
  %2114 = vmatprep.subr.mxu0 0.0
  %2115 = vmatpush1.msra.mxu0 0.0
  %2116 = vmatprep.subr.mxu0 0.0
  %2117 = vmatpush1.msra.mxu0 0.0
  %2118 = vmatprep.subr.mxu0 0.0
  %2119 = vmatpush1.msra.mxu0 0.0
  %2120 = vmatprep.subr.mxu0 0.0
  %2121 = vmatpush1.msra.mxu0 0.0
  %2122 = vmatprep.subr.mxu0 0.0
  %2123 = vmatpush1.msra.mxu0 0.0
  %2124 = vmatprep.subr.mxu0 0.0
  %2125 = vmatpush1.msra.mxu0 0.0
  %2126 = vmatprep.subr.mxu0 0.0
  %2127 = vmatpush1.msra.mxu0 0.0
  %2128 = vmatprep.subr.mxu0 0.0
  %2129 = vmatpush1.msra.mxu0 0.0
  %2130 = vmatprep.subr.mxu0 0.0
  %2131 = vmatpush1.msra.mxu0 0.0
  %2132 = vmatprep.subr.mxu0 0.0
  %2133 = vmatpush1.msra.mxu0 0.0
  %2134 = vmatprep.subr.mxu0 0.0
  %2135 = vmatpush1.msra.mxu0 0.0
  %2136 = vmatprep.subr.mxu0 0.0
  %2137 = vmatpush1.msra.mxu0 0.0
  %2138 = vmatprep.subr.mxu0 0.0
  %2139 = vmatpush1.msra.mxu0 0.0
  %2140 = vmatprep.subr.mxu0 0.0
  %2141 = vmatpush1.msra.mxu0 0.0
  %2142 = vmatprep.subr.mxu0 0.0
  %2143 = vmatpush1.msra.mxu0 0.0
  %2144 = vmatprep.subr.mxu0 0.0
  %2145 = vmatpush1.msra.mxu0 0.0
  %2146 = vmatprep.mubr.f32.mxu0 0.0
  %2147 = vmatmul.mubr.f32.gmra.mrb[0].mxu0 %v1913
  %v2148 = vpop.f32.mrb[0].mxu0
  %v2149 = vadd.f32 0.0, %v2148
  %v2150 = vpop.f32.mrb[0].mxu0
  %2151 = vdwg.mxu0
  %v2152 = vadd.f32 %v2079, %v2149
  %v2153 = vmax.f32 %v2152, 0.0
  %v2155 = vcombine.high %v2153, %v2153
  %v2157 = vunpack.c.l.s4 1966171168
  %v2158 = vunpack.c.0.s8 %v2157
  %v2159 = vlaneseq
  %v2160 = vshrl.u32 %v2159, 7
  %v2161 = vsub.s32 %v2158, %v2160
  %v2162 = vrot.slane %v2153, %v2161
  %v2164 = vunpack.c.l.s4 1966171168
  %v2165 = vunpack.c.0.s8 %v2164
  %v2166 = vlaneseq
  %v2167 = vshrl.u32 %v2166, 7
  %v2168 = vsub.s32 %v2165, %v2167
  %v2169 = vrot.slane %v2155, %v2168
  %v2170 = vcombine.high %v2162, %v2162
  %v2171 = vcombine.high %v2169, %v2169
  %v2173 = vunpack.c.l.s4 1966171168
  %v2174 = vunpack.c.0.s8 %v2173
  %v2175 = vlaneseq
  %v2176 = vshrl.u32 %v2175, 7
  %v2177 = vsub.s32 %v2174, %v2176
  %v2178 = vrot.slane %v2162, %v2177
  %v2180 = vunpack.c.l.s4 1966171168
  %v2181 = vunpack.c.0.s8 %v2180
  %v2182 = vlaneseq
  %v2183 = vshrl.u32 %v2182, 7
  %v2184 = vsub.s32 %v2181, %v2183
  %v2185 = vrot.slane %v2169, %v2184
  %v2187 = vunpack.c.l.s4 1966171168
  %v2188 = vunpack.c.0.s8 %v2187
  %v2189 = vlaneseq
  %v2190 = vshrl.u32 %v2189, 7
  %v2191 = vsub.s32 %v2188, %v2190
  %v2192 = vrot.slane %v2170, %v2191
  %v2194 = vunpack.c.l.s4 1966171168
  %v2195 = vunpack.c.0.s8 %v2194
  %v2196 = vlaneseq
  %v2197 = vshrl.u32 %v2196, 7
  %v2198 = vsub.s32 %v2195, %v2197
  %v2199 = vrot.slane %v2171, %v2198
  %v2200 = vcombine.high %v2178, %v2178
  %v2201 = vcombine.high %v2185, %v2185
  %v2202 = vcombine.high %v2192, %v2192
  %v2203 = vcombine.high %v2199, %v2199
  %2212 = vst [vmem:[%s5 + $0x8] sm:$0x1] %v2178
  %2213 = vst [vmem:[%s5 + $0x18] sm:$0x1] %v2192
  %2214 = vst [vmem:[%s5 + $0x28] sm:$0x1] %v2200
  %2215 = vst [vmem:[%s5 + $0x38] sm:$0x1] %v2202
  %2216 = vst [vmem:[%s5 + $0x48] sm:$0x1] %v2185
  %2217 = vst [vmem:[%s5 + $0x58] sm:$0x1] %v2199
  %2218 = vst [vmem:[%s5 + $0x68] sm:$0x1] %v2201
  %2219 = vst [vmem:[%s5 + $0x78] sm:$0x1] %v2203
  %v2220 = vld [vmem:[%s0 + $0x9] sm:$0x1]
  %v2221 = vld [vmem:[%s0 + $0x19] sm:$0x1]
  %v2222 = vld [vmem:[%s0 + $0x29] sm:$0x1]
  %v2223 = vld [vmem:[%s0 + $0x39] sm:$0x1]
  %v2224 = vld [vmem:[%s0 + $0x49] sm:$0x1]
  %v2225 = vld [vmem:[%s0 + $0x59] sm:$0x1]
  %v2226 = vld [vmem:[%s0 + $0x69] sm:$0x1]
  %v2227 = vld [vmem:[%s0 + $0x79] sm:$0x1]
  %v2236 = vrot.slane %v2221, 7
  %v2237 = vsel %vm69, %v2236, %v2220
  %v2238 = vrot.slane %v2222, 6
  %v2239 = vsel %vm72, %v2238, %v2237
  %v2240 = vrot.slane %v2223, 5
  %v2241 = vsel %vm75, %v2240, %v2239
  %v2242 = vrot.slane %v2224, 4
  %v2243 = vsel %vm78, %v2242, %v2241
  %v2244 = vrot.slane %v2225, 3
  %v2245 = vsel %vm81, %v2244, %v2243
  %v2246 = vrot.slane %v2226, 2
  %v2247 = vsel %vm84, %v2246, %v2245
  %v2248 = vrot.slane %v2227, 1
  %v2249 = vsel %vm87, %v2248, %v2247
  %v2250 = vsel %vm89, %v2249, 0
  %2252 = vmatprep.subr.mxu0 0.0
  %2253 = vmatpush1.msra.mxu0 %v26
  %2254 = vmatprep.subr.mxu0 0.0
  %2255 = vmatpush1.msra.mxu0 %v27
  %2256 = vmatprep.subr.mxu0 0.0
  %2257 = vmatpush1.msra.mxu0 0.0
  %2258 = vmatprep.subr.mxu0 0.0
  %2259 = vmatpush1.msra.mxu0 0.0
  %2260 = vmatprep.subr.mxu0 0.0
  %2261 = vmatpush1.msra.mxu0 0.0
  %2262 = vmatprep.subr.mxu0 0.0
  %2263 = vmatpush1.msra.mxu0 0.0
  %2264 = vmatprep.subr.mxu0 0.0
  %2265 = vmatpush1.msra.mxu0 0.0
  %2266 = vmatprep.subr.mxu0 0.0
  %2267 = vmatpush1.msra.mxu0 0.0
  %2268 = vmatprep.subr.mxu0 0.0
  %2269 = vmatpush1.msra.mxu0 0.0
  %2270 = vmatprep.subr.mxu0 0.0
  %2271 = vmatpush1.msra.mxu0 0.0
  %2272 = vmatprep.subr.mxu0 0.0
  %2273 = vmatpush1.msra.mxu0 0.0
  %2274 = vmatprep.subr.mxu0 0.0
  %2275 = vmatpush1.msra.mxu0 0.0
  %2276 = vmatprep.subr.mxu0 0.0
  %2277 = vmatpush1.msra.mxu0 0.0
  %2278 = vmatprep.subr.mxu0 0.0
  %2279 = vmatpush1.msra.mxu0 0.0
  %2280 = vmatprep.subr.mxu0 0.0
  %2281 = vmatpush1.msra.mxu0 0.0
  %2282 = vmatprep.subr.mxu0 0.0
  %2283 = vmatpush1.msra.mxu0 0.0
  %2284 = vmatprep.subr.mxu0 0.0
  %2285 = vmatpush1.msra.mxu0 0.0
  %2286 = vmatprep.subr.mxu0 0.0
  %2287 = vmatpush1.msra.mxu0 0.0
  %2288 = vmatprep.subr.mxu0 0.0
  %2289 = vmatpush1.msra.mxu0 0.0
  %2290 = vmatprep.subr.mxu0 0.0
  %2291 = vmatpush1.msra.mxu0 0.0
  %2292 = vmatprep.subr.mxu0 0.0
  %2293 = vmatpush1.msra.mxu0 0.0
  %2294 = vmatprep.subr.mxu0 0.0
  %2295 = vmatpush1.msra.mxu0 0.0
  %2296 = vmatprep.subr.mxu0 0.0
  %2297 = vmatpush1.msra.mxu0 0.0
  %2298 = vmatprep.subr.mxu0 0.0
  %2299 = vmatpush1.msra.mxu0 0.0
  %2300 = vmatprep.subr.mxu0 0.0
  %2301 = vmatpush1.msra.mxu0 0.0
  %2302 = vmatprep.subr.mxu0 0.0
  %2303 = vmatpush1.msra.mxu0 0.0
  %2304 = vmatprep.subr.mxu0 0.0
  %2305 = vmatpush1.msra.mxu0 0.0
  %2306 = vmatprep.subr.mxu0 0.0
  %2307 = vmatpush1.msra.mxu0 0.0
  %2308 = vmatprep.subr.mxu0 0.0
  %2309 = vmatpush1.msra.mxu0 0.0
  %2310 = vmatprep.subr.mxu0 0.0
  %2311 = vmatpush1.msra.mxu0 0.0
  %2312 = vmatprep.subr.mxu0 0.0
  %2313 = vmatpush1.msra.mxu0 0.0
  %2314 = vmatprep.subr.mxu0 0.0
  %2315 = vmatpush1.msra.mxu0 0.0
  %2316 = vmatprep.mubr.f32.mxu0 0.0
  %2317 = vmatmul.mubr.f32.gmra.mrb[0].mxu0 %v2250
  %v2318 = vpop.f32.mrb[0].mxu0
  %v2319 = vadd.f32 %v58, %v2318
  %v2320 = vpop.f32.mrb[0].mxu0
  %2321 = vdwg.mxu0
  %2322 = vmatprep.subr.mxu0 0.0
  %2323 = vmatpush1.msra.mxu0 %v28
  %2324 = vmatprep.subr.mxu0 0.0
  %2325 = vmatpush1.msra.mxu0 %v29
  %2326 = vmatprep.subr.mxu0 0.0
  %2327 = vmatpush1.msra.mxu0 %v30
  %2328 = vmatprep.subr.mxu0 0.0
  %2329 = vmatpush1.msra.mxu0 %v31
  %2330 = vmatprep.subr.mxu0 0.0
  %2331 = vmatpush1.msra.mxu0 %v32
  %2332 = vmatprep.subr.mxu0 0.0
  %2333 = vmatpush1.msra.mxu0 %v33
  %2334 = vmatprep.subr.mxu0 0.0
  %2335 = vmatpush1.msra.mxu0 %v34
  %2336 = vmatprep.subr.mxu0 0.0
  %2337 = vmatpush1.msra.mxu0 %v35
  %2338 = vmatprep.subr.mxu0 0.0
  %2339 = vmatpush1.msra.mxu0 %v36
  %2340 = vmatprep.subr.mxu0 0.0
  %2341 = vmatpush1.msra.mxu0 %v37
  %2342 = vmatprep.subr.mxu0 0.0
  %2343 = vmatpush1.msra.mxu0 %v38
  %2344 = vmatprep.subr.mxu0 0.0
  %2345 = vmatpush1.msra.mxu0 %v39
  %2346 = vmatprep.subr.mxu0 0.0
  %2347 = vmatpush1.msra.mxu0 %v40
  %2348 = vmatprep.subr.mxu0 0.0
  %2349 = vmatpush1.msra.mxu0 %v41
  %2350 = vmatprep.subr.mxu0 0.0
  %2351 = vmatpush1.msra.mxu0 %v42
  %2352 = vmatprep.subr.mxu0 0.0
  %2353 = vmatpush1.msra.mxu0 %v43
  %2354 = vmatprep.subr.mxu0 0.0
  %2355 = vmatpush1.msra.mxu0 0.0
  %2356 = vmatprep.subr.mxu0 0.0
  %2357 = vmatpush1.msra.mxu0 0.0
  %2358 = vmatprep.subr.mxu0 0.0
  %2359 = vmatpush1.msra.mxu0 0.0
  %2360 = vmatprep.subr.mxu0 0.0
  %2361 = vmatpush1.msra.mxu0 0.0
  %2362 = vmatprep.subr.mxu0 0.0
  %2363 = vmatpush1.msra.mxu0 0.0
  %2364 = vmatprep.subr.mxu0 0.0
  %2365 = vmatpush1.msra.mxu0 0.0
  %2366 = vmatprep.subr.mxu0 0.0
  %2367 = vmatpush1.msra.mxu0 0.0
  %2368 = vmatprep.subr.mxu0 0.0
  %2369 = vmatpush1.msra.mxu0 0.0
  %2370 = vmatprep.subr.mxu0 0.0
  %2371 = vmatpush1.msra.mxu0 0.0
  %2372 = vmatprep.subr.mxu0 0.0
  %2373 = vmatpush1.msra.mxu0 0.0
  %2374 = vmatprep.subr.mxu0 0.0
  %2375 = vmatpush1.msra.mxu0 0.0
  %2376 = vmatprep.subr.mxu0 0.0
  %2377 = vmatpush1.msra.mxu0 0.0
  %2378 = vmatprep.subr.mxu0 0.0
  %2379 = vmatpush1.msra.mxu0 0.0
  %2380 = vmatprep.subr.mxu0 0.0
  %2381 = vmatpush1.msra.mxu0 0.0
  %2382 = vmatprep.subr.mxu0 0.0
  %2383 = vmatpush1.msra.mxu0 0.0
  %2384 = vmatprep.subr.mxu0 0.0
  %2385 = vmatpush1.msra.mxu0 0.0
  %2386 = vmatprep.mubr.f32.mxu0 0.0
  %2387 = vmatmul.mubr.f32.gmra.mrb[0].mxu0 %v2153
  %v2388 = vpop.f32.mrb[0].mxu0
  %v2389 = vadd.f32 0.0, %v2388
  %v2390 = vpop.f32.mrb[0].mxu0
  %2391 = vdwg.mxu0
  %v2392 = vadd.f32 %v2319, %v2389
  %v2393 = vmax.f32 %v2392, 0.0
  %v2395 = vcombine.high %v2393, %v2393
  %v2397 = vunpack.c.l.s4 1966171168
  %v2398 = vunpack.c.0.s8 %v2397
  %v2399 = vlaneseq
  %v2400 = vshrl.u32 %v2399, 7
  %v2401 = vsub.s32 %v2398, %v2400
  %v2402 = vrot.slane %v2393, %v2401
  %v2404 = vunpack.c.l.s4 1966171168
  %v2405 = vunpack.c.0.s8 %v2404
  %v2406 = vlaneseq
  %v2407 = vshrl.u32 %v2406, 7
  %v2408 = vsub.s32 %v2405, %v2407
  %v2409 = vrot.slane %v2395, %v2408
  %v2410 = vcombine.high %v2402, %v2402
  %v2411 = vcombine.high %v2409, %v2409
  %v2413 = vunpack.c.l.s4 1966171168
  %v2414 = vunpack.c.0.s8 %v2413
  %v2415 = vlaneseq
  %v2416 = vshrl.u32 %v2415, 7
  %v2417 = vsub.s32 %v2414, %v2416
  %v2418 = vrot.slane %v2402, %v2417
  %v2420 = vunpack.c.l.s4 1966171168
  %v2421 = vunpack.c.0.s8 %v2420
  %v2422 = vlaneseq
  %v2423 = vshrl.u32 %v2422, 7
  %v2424 = vsub.s32 %v2421, %v2423
  %v2425 = vrot.slane %v2409, %v2424
  %v2427 = vunpack.c.l.s4 1966171168
  %v2428 = vunpack.c.0.s8 %v2427
  %v2429 = vlaneseq
  %v2430 = vshrl.u32 %v2429, 7
  %v2431 = vsub.s32 %v2428, %v2430
  %v2432 = vrot.slane %v2410, %v2431
  %v2434 = vunpack.c.l.s4 1966171168
  %v2435 = vunpack.c.0.s8 %v2434
  %v2436 = vlaneseq
  %v2437 = vshrl.u32 %v2436, 7
  %v2438 = vsub.s32 %v2435, %v2437
  %v2439 = vrot.slane %v2411, %v2438
  %v2440 = vcombine.high %v2418, %v2418
  %v2441 = vcombine.high %v2425, %v2425
  %v2442 = vcombine.high %v2432, %v2432
  %v2443 = vcombine.high %v2439, %v2439
  %2452 = vst [vmem:[%s5 + $0x9] sm:$0x1] %v2418
  %2453 = vst [vmem:[%s5 + $0x19] sm:$0x1] %v2432
  %2454 = vst [vmem:[%s5 + $0x29] sm:$0x1] %v2440
  %2455 = vst [vmem:[%s5 + $0x39] sm:$0x1] %v2442
  %2456 = vst [vmem:[%s5 + $0x49] sm:$0x1] %v2425
  %2457 = vst [vmem:[%s5 + $0x59] sm:$0x1] %v2439
  %2458 = vst [vmem:[%s5 + $0x69] sm:$0x1] %v2441
  %2459 = vst [vmem:[%s5 + $0x79] sm:$0x1] %v2443
  %v2460 = vld [vmem:[%s0 + $0xa] sm:$0x1]
  %v2461 = vld [vmem:[%s0 + $0x1a] sm:$0x1]
  %v2462 = vld [vmem:[%s0 + $0x2a] sm:$0x1]
  %v2463 = vld [vmem:[%s0 + $0x3a] sm:$0x1]
  %v2464 = vld [vmem:[%s0 + $0x4a] sm:$0x1]
  %v2465 = vld [vmem:[%s0 + $0x5a] sm:$0x1]
  %v2466 = vld [vmem:[%s0 + $0x6a] sm:$0x1]
  %v2467 = vld [vmem:[%s0 + $0x7a] sm:$0x1]
  %v2476 = vrot.slane %v2461, 7
  %v2477 = vsel %vm69, %v2476, %v2460
  %v2478 = vrot.slane %v2462, 6
  %v2479 = vsel %vm72, %v2478, %v2477
  %v2480 = vrot.slane %v2463, 5
  %v2481 = vsel %vm75, %v2480, %v2479
  %v2482 = vrot.slane %v2464, 4
  %v2483 = vsel %vm78, %v2482, %v2481
  %v2484 = vrot.slane %v2465, 3
  %v2485 = vsel %vm81, %v2484, %v2483
  %v2486 = vrot.slane %v2466, 2
  %v2487 = vsel %vm84, %v2486, %v2485
  %v2488 = vrot.slane %v2467, 1
  %v2489 = vsel %vm87, %v2488, %v2487
  %v2490 = vsel %vm89, %v2489, 0
  %2492 = vmatprep.subr.mxu0 0.0
  %2493 = vmatpush1.msra.mxu0 %v26
  %2494 = vmatprep.subr.mxu0 0.0
  %2495 = vmatpush1.msra.mxu0 %v27
  %2496 = vmatprep.subr.mxu0 0.0
  %2497 = vmatpush1.msra.mxu0 0.0
  %2498 = vmatprep.subr.mxu0 0.0
  %2499 = vmatpush1.msra.mxu0 0.0
  %2500 = vmatprep.subr.mxu0 0.0
  %2501 = vmatpush1.msra.mxu0 0.0
  %2502 = vmatprep.subr.mxu0 0.0
  %2503 = vmatpush1.msra.mxu0 0.0
  %2504 = vmatprep.subr.mxu0 0.0
  %2505 = vmatpush1.msra.mxu0 0.0
  %2506 = vmatprep.subr.mxu0 0.0
  %2507 = vmatpush1.msra.mxu0 0.0
  %2508 = vmatprep.subr.mxu0 0.0
  %2509 = vmatpush1.msra.mxu0 0.0
  %2510 = vmatprep.subr.mxu0 0.0
  %2511 = vmatpush1.msra.mxu0 0.0
  %2512 = vmatprep.subr.mxu0 0.0
  %2513 = vmatpush1.msra.mxu0 0.0
  %2514 = vmatprep.subr.mxu0 0.0
  %2515 = vmatpush1.msra.mxu0 0.0
  %2516 = vmatprep.subr.mxu0 0.0
  %2517 = vmatpush1.msra.mxu0 0.0
  %2518 = vmatprep.subr.mxu0 0.0
  %2519 = vmatpush1.msra.mxu0 0.0
  %2520 = vmatprep.subr.mxu0 0.0
  %2521 = vmatpush1.msra.mxu0 0.0
  %2522 = vmatprep.subr.mxu0 0.0
  %2523 = vmatpush1.msra.mxu0 0.0
  %2524 = vmatprep.subr.mxu0 0.0
  %2525 = vmatpush1.msra.mxu0 0.0
  %2526 = vmatprep.subr.mxu0 0.0
  %2527 = vmatpush1.msra.mxu0 0.0
  %2528 = vmatprep.subr.mxu0 0.0
  %2529 = vmatpush1.msra.mxu0 0.0
  %2530 = vmatprep.subr.mxu0 0.0
  %2531 = vmatpush1.msra.mxu0 0.0
  %2532 = vmatprep.subr.mxu0 0.0
  %2533 = vmatpush1.msra.mxu0 0.0
  %2534 = vmatprep.subr.mxu0 0.0
  %2535 = vmatpush1.msra.mxu0 0.0
  %2536 = vmatprep.subr.mxu0 0.0
  %2537 = vmatpush1.msra.mxu0 0.0
  %2538 = vmatprep.subr.mxu0 0.0
  %2539 = vmatpush1.msra.mxu0 0.0
  %2540 = vmatprep.subr.mxu0 0.0
  %2541 = vmatpush1.msra.mxu0 0.0
  %2542 = vmatprep.subr.mxu0 0.0
  %2543 = vmatpush1.msra.mxu0 0.0
  %2544 = vmatprep.subr.mxu0 0.0
  %2545 = vmatpush1.msra.mxu0 0.0
  %2546 = vmatprep.subr.mxu0 0.0
  %2547 = vmatpush1.msra.mxu0 0.0
  %2548 = vmatprep.subr.mxu0 0.0
  %2549 = vmatpush1.msra.mxu0 0.0
  %2550 = vmatprep.subr.mxu0 0.0
  %2551 = vmatpush1.msra.mxu0 0.0
  %2552 = vmatprep.subr.mxu0 0.0
  %2553 = vmatpush1.msra.mxu0 0.0
  %2554 = vmatprep.subr.mxu0 0.0
  %2555 = vmatpush1.msra.mxu0 0.0
  %2556 = vmatprep.mubr.f32.mxu0 0.0
  %2557 = vmatmul.mubr.f32.gmra.mrb[0].mxu0 %v2490
  %v2558 = vpop.f32.mrb[0].mxu0
  %v2559 = vadd.f32 %v58, %v2558
  %v2560 = vpop.f32.mrb[0].mxu0
  %2561 = vdwg.mxu0
  %2562 = vmatprep.subr.mxu0 0.0
  %2563 = vmatpush1.msra.mxu0 %v28
  %2564 = vmatprep.subr.mxu0 0.0
  %2565 = vmatpush1.msra.mxu0 %v29
  %2566 = vmatprep.subr.mxu0 0.0
  %2567 = vmatpush1.msra.mxu0 %v30
  %2568 = vmatprep.subr.mxu0 0.0
  %2569 = vmatpush1.msra.mxu0 %v31
  %2570 = vmatprep.subr.mxu0 0.0
  %2571 = vmatpush1.msra.mxu0 %v32
  %2572 = vmatprep.subr.mxu0 0.0
  %2573 = vmatpush1.msra.mxu0 %v33
  %2574 = vmatprep.subr.mxu0 0.0
  %2575 = vmatpush1.msra.mxu0 %v34
  %2576 = vmatprep.subr.mxu0 0.0
  %2577 = vmatpush1.msra.mxu0 %v35
  %2578 = vmatprep.subr.mxu0 0.0
  %2579 = vmatpush1.msra.mxu0 %v36
  %2580 = vmatprep.subr.mxu0 0.0
  %2581 = vmatpush1.msra.mxu0 %v37
  %2582 = vmatprep.subr.mxu0 0.0
  %2583 = vmatpush1.msra.mxu0 %v38
  %2584 = vmatprep.subr.mxu0 0.0
  %2585 = vmatpush1.msra.mxu0 %v39
  %2586 = vmatprep.subr.mxu0 0.0
  %2587 = vmatpush1.msra.mxu0 %v40
  %2588 = vmatprep.subr.mxu0 0.0
  %2589 = vmatpush1.msra.mxu0 %v41
  %2590 = vmatprep.subr.mxu0 0.0
  %2591 = vmatpush1.msra.mxu0 %v42
  %2592 = vmatprep.subr.mxu0 0.0
  %2593 = vmatpush1.msra.mxu0 %v43
  %2594 = vmatprep.subr.mxu0 0.0
  %2595 = vmatpush1.msra.mxu0 0.0
  %2596 = vmatprep.subr.mxu0 0.0
  %2597 = vmatpush1.msra.mxu0 0.0
  %2598 = vmatprep.subr.mxu0 0.0
  %2599 = vmatpush1.msra.mxu0 0.0
  %2600 = vmatprep.subr.mxu0 0.0
  %2601 = vmatpush1.msra.mxu0 0.0
  %2602 = vmatprep.subr.mxu0 0.0
  %2603 = vmatpush1.msra.mxu0 0.0
  %2604 = vmatprep.subr.mxu0 0.0
  %2605 = vmatpush1.msra.mxu0 0.0
  %2606 = vmatprep.subr.mxu0 0.0
  %2607 = vmatpush1.msra.mxu0 0.0
  %2608 = vmatprep.subr.mxu0 0.0
  %2609 = vmatpush1.msra.mxu0 0.0
  %2610 = vmatprep.subr.mxu0 0.0
  %2611 = vmatpush1.msra.mxu0 0.0
  %2612 = vmatprep.subr.mxu0 0.0
  %2613 = vmatpush1.msra.mxu0 0.0
  %2614 = vmatprep.subr.mxu0 0.0
  %2615 = vmatpush1.msra.mxu0 0.0
  %2616 = vmatprep.subr.mxu0 0.0
  %2617 = vmatpush1.msra.mxu0 0.0
  %2618 = vmatprep.subr.mxu0 0.0
  %2619 = vmatpush1.msra.mxu0 0.0
  %2620 = vmatprep.subr.mxu0 0.0
  %2621 = vmatpush1.msra.mxu0 0.0
  %2622 = vmatprep.subr.mxu0 0.0
  %2623 = vmatpush1.msra.mxu0 0.0
  %2624 = vmatprep.subr.mxu0 0.0
  %2625 = vmatpush1.msra.mxu0 0.0
  %2626 = vmatprep.mubr.f32.mxu0 0.0
  %2627 = vmatmul.mubr.f32.gmra.mrb[0].mxu0 %v2393
  %v2628 = vpop.f32.mrb[0].mxu0
  %v2629 = vadd.f32 0.0, %v2628
  %v2630 = vpop.f32.mrb[0].mxu0
  %2631 = vdwg.mxu0
  %v2632 = vadd.f32 %v2559, %v2629
  %v2633 = vmax.f32 %v2632, 0.0
  %v2635 = vcombine.high %v2633, %v2633
  %v2637 = vunpack.c.l.s4 1966171168
  %v2638 = vunpack.c.0.s8 %v2637
  %v2639 = vlaneseq
  %v2640 = vshrl.u32 %v2639, 7
  %v2641 = vsub.s32 %v2638, %v2640
  %v2642 = vrot.slane %v2633, %v2641
  %v2644 = vunpack.c.l.s4 1966171168
  %v2645 = vunpack.c.0.s8 %v2644
  %v2646 = vlaneseq
  %v2647 = vshrl.u32 %v2646, 7
  %v2648 = vsub.s32 %v2645, %v2647
  %v2649 = vrot.slane %v2635, %v2648
  %v2650 = vcombine.high %v2642, %v2642
  %v2651 = vcombine.high %v2649, %v2649
  %v2653 = vunpack.c.l.s4 1966171168
  %v2654 = vunpack.c.0.s8 %v2653
  %v2655 = vlaneseq
  %v2656 = vshrl.u32 %v2655, 7
  %v2657 = vsub.s32 %v2654, %v2656
  %v2658 = vrot.slane %v2642, %v2657
  %v2660 = vunpack.c.l.s4 1966171168
  %v2661 = vunpack.c.0.s8 %v2660
  %v2662 = vlaneseq
  %v2663 = vshrl.u32 %v2662, 7
  %v2664 = vsub.s32 %v2661, %v2663
  %v2665 = vrot.slane %v2649, %v2664
  %v2667 = vunpack.c.l.s4 1966171168
  %v2668 = vunpack.c.0.s8 %v2667
  %v2669 = vlaneseq
  %v2670 = vshrl.u32 %v2669, 7
  %v2671 = vsub.s32 %v2668, %v2670
  %v2672 = vrot.slane %v2650, %v2671
  %v2674 = vunpack.c.l.s4 1966171168
  %v2675 = vunpack.c.0.s8 %v2674
  %v2676 = vlaneseq
  %v2677 = vshrl.u32 %v2676, 7
  %v2678 = vsub.s32 %v2675, %v2677
  %v2679 = vrot.slane %v2651, %v2678
  %v2680 = vcombine.high %v2658, %v2658
  %v2681 = vcombine.high %v2665, %v2665
  %v2682 = vcombine.high %v2672, %v2672
  %v2683 = vcombine.high %v2679, %v2679
  %2692 = vst [vmem:[%s5 + $0xa] sm:$0x1] %v2658
  %2693 = vst [vmem:[%s5 + $0x1a] sm:$0x1] %v2672
  %2694 = vst [vmem:[%s5 + $0x2a] sm:$0x1] %v2680
  %2695 = vst [vmem:[%s5 + $0x3a] sm:$0x1] %v2682
  %2696 = vst [vmem:[%s5 + $0x4a] sm:$0x1] %v2665
  %2697 = vst [vmem:[%s5 + $0x5a] sm:$0x1] %v2679
  %2698 = vst [vmem:[%s5 + $0x6a] sm:$0x1] %v2681
  %2699 = vst [vmem:[%s5 + $0x7a] sm:$0x1] %v2683
  %v2700 = vld [vmem:[%s0 + $0xb] sm:$0x1]
  %v2701 = vld [vmem:[%s0 + $0x1b] sm:$0x1]
  %v2702 = vld [vmem:[%s0 + $0x2b] sm:$0x1]
  %v2703 = vld [vmem:[%s0 + $0x3b] sm:$0x1]
  %v2704 = vld [vmem:[%s0 + $0x4b] sm:$0x1]
  %v2705 = vld [vmem:[%s0 + $0x5b] sm:$0x1]
  %v2706 = vld [vmem:[%s0 + $0x6b] sm:$0x1]
  %v2707 = vld [vmem:[%s0 + $0x7b] sm:$0x1]
  %v2716 = vrot.slane %v2701, 7
  %v2717 = vsel %vm69, %v2716, %v2700
  %v2718 = vrot.slane %v2702, 6
  %v2719 = vsel %vm72, %v2718, %v2717
  %v2720 = vrot.slane %v2703, 5
  %v2721 = vsel %vm75, %v2720, %v2719
  %v2722 = vrot.slane %v2704, 4
  %v2723 = vsel %vm78, %v2722, %v2721
  %v2724 = vrot.slane %v2705, 3
  %v2725 = vsel %vm81, %v2724, %v2723
  %v2726 = vrot.slane %v2706, 2
  %v2727 = vsel %vm84, %v2726, %v2725
  %v2728 = vrot.slane %v2707, 1
  %v2729 = vsel %vm87, %v2728, %v2727
  %v2730 = vsel %vm89, %v2729, 0
  %2732 = vmatprep.subr.mxu0 0.0
  %2733 = vmatpush1.msra.mxu0 %v26
  %2734 = vmatprep.subr.mxu0 0.0
  %2735 = vmatpush1.msra.mxu0 %v27
  %2736 = vmatprep.subr.mxu0 0.0
  %2737 = vmatpush1.msra.mxu0 0.0
  %2738 = vmatprep.subr.mxu0 0.0
  %2739 = vmatpush1.msra.mxu0 0.0
  %2740 = vmatprep.subr.mxu0 0.0
  %2741 = vmatpush1.msra.mxu0 0.0
  %2742 = vmatprep.subr.mxu0 0.0
  %2743 = vmatpush1.msra.mxu0 0.0
  %2744 = vmatprep.subr.mxu0 0.0
  %2745 = vmatpush1.msra.mxu0 0.0
  %2746 = vmatprep.subr.mxu0 0.0
  %2747 = vmatpush1.msra.mxu0 0.0
  %2748 = vmatprep.subr.mxu0 0.0
  %2749 = vmatpush1.msra.mxu0 0.0
  %2750 = vmatprep.subr.mxu0 0.0
  %2751 = vmatpush1.msra.mxu0 0.0
  %2752 = vmatprep.subr.mxu0 0.0
  %2753 = vmatpush1.msra.mxu0 0.0
  %2754 = vmatprep.subr.mxu0 0.0
  %2755 = vmatpush1.msra.mxu0 0.0
  %2756 = vmatprep.subr.mxu0 0.0
  %2757 = vmatpush1.msra.mxu0 0.0
  %2758 = vmatprep.subr.mxu0 0.0
  %2759 = vmatpush1.msra.mxu0 0.0
  %2760 = vmatprep.subr.mxu0 0.0
  %2761 = vmatpush1.msra.mxu0 0.0
  %2762 = vmatprep.subr.mxu0 0.0
  %2763 = vmatpush1.msra.mxu0 0.0
  %2764 = vmatprep.subr.mxu0 0.0
  %2765 = vmatpush1.msra.mxu0 0.0
  %2766 = vmatprep.subr.mxu0 0.0
  %2767 = vmatpush1.msra.mxu0 0.0
  %2768 = vmatprep.subr.mxu0 0.0
  %2769 = vmatpush1.msra.mxu0 0.0
  %2770 = vmatprep.subr.mxu0 0.0
  %2771 = vmatpush1.msra.mxu0 0.0
  %2772 = vmatprep.subr.mxu0 0.0
  %2773 = vmatpush1.msra.mxu0 0.0
  %2774 = vmatprep.subr.mxu0 0.0
  %2775 = vmatpush1.msra.mxu0 0.0
  %2776 = vmatprep.subr.mxu0 0.0
  %2777 = vmatpush1.msra.mxu0 0.0
  %2778 = vmatprep.subr.mxu0 0.0
  %2779 = vmatpush1.msra.mxu0 0.0
  %2780 = vmatprep.subr.mxu0 0.0
  %2781 = vmatpush1.msra.mxu0 0.0
  %2782 = vmatprep.subr.mxu0 0.0
  %2783 = vmatpush1.msra.mxu0 0.0
  %2784 = vmatprep.subr.mxu0 0.0
  %2785 = vmatpush1.msra.mxu0 0.0
  %2786 = vmatprep.subr.mxu0 0.0
  %2787 = vmatpush1.msra.mxu0 0.0
  %2788 = vmatprep.subr.mxu0 0.0
  %2789 = vmatpush1.msra.mxu0 0.0
  %2790 = vmatprep.subr.mxu0 0.0
  %2791 = vmatpush1.msra.mxu0 0.0
  %2792 = vmatprep.subr.mxu0 0.0
  %2793 = vmatpush1.msra.mxu0 0.0
  %2794 = vmatprep.subr.mxu0 0.0
  %2795 = vmatpush1.msra.mxu0 0.0
  %2796 = vmatprep.mubr.f32.mxu0 0.0
  %2797 = vmatmul.mubr.f32.gmra.mrb[0].mxu0 %v2730
  %v2798 = vpop.f32.mrb[0].mxu0
  %v2799 = vadd.f32 %v58, %v2798
  %v2800 = vpop.f32.mrb[0].mxu0
  %2801 = vdwg.mxu0
  %2802 = vmatprep.subr.mxu0 0.0
  %2803 = vmatpush1.msra.mxu0 %v28
  %2804 = vmatprep.subr.mxu0 0.0
  %2805 = vmatpush1.msra.mxu0 %v29
  %2806 = vmatprep.subr.mxu0 0.0
  %2807 = vmatpush1.msra.mxu0 %v30
  %2808 = vmatprep.subr.mxu0 0.0
  %2809 = vmatpush1.msra.mxu0 %v31
  %2810 = vmatprep.subr.mxu0 0.0
  %2811 = vmatpush1.msra.mxu0 %v32
  %2812 = vmatprep.subr.mxu0 0.0
  %2813 = vmatpush1.msra.mxu0 %v33
  %2814 = vmatprep.subr.mxu0 0.0
  %2815 = vmatpush1.msra.mxu0 %v34
  %2816 = vmatprep.subr.mxu0 0.0
  %2817 = vmatpush1.msra.mxu0 %v35
  %2818 = vmatprep.subr.mxu0 0.0
  %2819 = vmatpush1.msra.mxu0 %v36
  %2820 = vmatprep.subr.mxu0 0.0
  %2821 = vmatpush1.msra.mxu0 %v37
  %2822 = vmatprep.subr.mxu0 0.0
  %2823 = vmatpush1.msra.mxu0 %v38
  %2824 = vmatprep.subr.mxu0 0.0
  %2825 = vmatpush1.msra.mxu0 %v39
  %2826 = vmatprep.subr.mxu0 0.0
  %2827 = vmatpush1.msra.mxu0 %v40
  %2828 = vmatprep.subr.mxu0 0.0
  %2829 = vmatpush1.msra.mxu0 %v41
  %2830 = vmatprep.subr.mxu0 0.0
  %2831 = vmatpush1.msra.mxu0 %v42
  %2832 = vmatprep.subr.mxu0 0.0
  %2833 = vmatpush1.msra.mxu0 %v43
  %2834 = vmatprep.subr.mxu0 0.0
  %2835 = vmatpush1.msra.mxu0 0.0
  %2836 = vmatprep.subr.mxu0 0.0
  %2837 = vmatpush1.msra.mxu0 0.0
  %2838 = vmatprep.subr.mxu0 0.0
  %2839 = vmatpush1.msra.mxu0 0.0
  %2840 = vmatprep.subr.mxu0 0.0
  %2841 = vmatpush1.msra.mxu0 0.0
  %2842 = vmatprep.subr.mxu0 0.0
  %2843 = vmatpush1.msra.mxu0 0.0
  %2844 = vmatprep.subr.mxu0 0.0
  %2845 = vmatpush1.msra.mxu0 0.0
  %2846 = vmatprep.subr.mxu0 0.0
  %2847 = vmatpush1.msra.mxu0 0.0
  %2848 = vmatprep.subr.mxu0 0.0
  %2849 = vmatpush1.msra.mxu0 0.0
  %2850 = vmatprep.subr.mxu0 0.0
  %2851 = vmatpush1.msra.mxu0 0.0
  %2852 = vmatprep.subr.mxu0 0.0
  %2853 = vmatpush1.msra.mxu0 0.0
  %2854 = vmatprep.subr.mxu0 0.0
  %2855 = vmatpush1.msra.mxu0 0.0
  %2856 = vmatprep.subr.mxu0 0.0
  %2857 = vmatpush1.msra.mxu0 0.0
  %2858 = vmatprep.subr.mxu0 0.0
  %2859 = vmatpush1.msra.mxu0 0.0
  %2860 = vmatprep.subr.mxu0 0.0
  %2861 = vmatpush1.msra.mxu0 0.0
  %2862 = vmatprep.subr.mxu0 0.0
  %2863 = vmatpush1.msra.mxu0 0.0
  %2864 = vmatprep.subr.mxu0 0.0
  %2865 = vmatpush1.msra.mxu0 0.0
  %2866 = vmatprep.mubr.f32.mxu0 0.0
  %2867 = vmatmul.mubr.f32.gmra.mrb[0].mxu0 %v2633
  %v2868 = vpop.f32.mrb[0].mxu0
  %v2869 = vadd.f32 0.0, %v2868
  %v2870 = vpop.f32.mrb[0].mxu0
  %2871 = vdwg.mxu0
  %v2872 = vadd.f32 %v2799, %v2869
  %v2873 = vmax.f32 %v2872, 0.0
  %v2875 = vcombine.high %v2873, %v2873
  %v2877 = vunpack.c.l.s4 1966171168
  %v2878 = vunpack.c.0.s8 %v2877
  %v2879 = vlaneseq
  %v2880 = vshrl.u32 %v2879, 7
  %v2881 = vsub.s32 %v2878, %v2880
  %v2882 = vrot.slane %v2873, %v2881
  %v2884 = vunpack.c.l.s4 1966171168
  %v2885 = vunpack.c.0.s8 %v2884
  %v2886 = vlaneseq
  %v2887 = vshrl.u32 %v2886, 7
  %v2888 = vsub.s32 %v2885, %v2887
  %v2889 = vrot.slane %v2875, %v2888
  %v2890 = vcombine.high %v2882, %v2882
  %v2891 = vcombine.high %v2889, %v2889
  %v2893 = vunpack.c.l.s4 1966171168
  %v2894 = vunpack.c.0.s8 %v2893
  %v2895 = vlaneseq
  %v2896 = vshrl.u32 %v2895, 7
  %v2897 = vsub.s32 %v2894, %v2896
  %v2898 = vrot.slane %v2882, %v2897
  %v2900 = vunpack.c.l.s4 1966171168
  %v2901 = vunpack.c.0.s8 %v2900
  %v2902 = vlaneseq
  %v2903 = vshrl.u32 %v2902, 7
  %v2904 = vsub.s32 %v2901, %v2903
  %v2905 = vrot.slane %v2889, %v2904
  %v2907 = vunpack.c.l.s4 1966171168
  %v2908 = vunpack.c.0.s8 %v2907
  %v2909 = vlaneseq
  %v2910 = vshrl.u32 %v2909, 7
  %v2911 = vsub.s32 %v2908, %v2910
  %v2912 = vrot.slane %v2890, %v2911
  %v2914 = vunpack.c.l.s4 1966171168
  %v2915 = vunpack.c.0.s8 %v2914
  %v2916 = vlaneseq
  %v2917 = vshrl.u32 %v2916, 7
  %v2918 = vsub.s32 %v2915, %v2917
  %v2919 = vrot.slane %v2891, %v2918
  %v2920 = vcombine.high %v2898, %v2898
  %v2921 = vcombine.high %v2905, %v2905
  %v2922 = vcombine.high %v2912, %v2912
  %v2923 = vcombine.high %v2919, %v2919
  %2932 = vst [vmem:[%s5 + $0xb] sm:$0x1] %v2898
  %2933 = vst [vmem:[%s5 + $0x1b] sm:$0x1] %v2912
  %2934 = vst [vmem:[%s5 + $0x2b] sm:$0x1] %v2920
  %2935 = vst [vmem:[%s5 + $0x3b] sm:$0x1] %v2922
  %2936 = vst [vmem:[%s5 + $0x4b] sm:$0x1] %v2905
  %2937 = vst [vmem:[%s5 + $0x5b] sm:$0x1] %v2919
  %2938 = vst [vmem:[%s5 + $0x6b] sm:$0x1] %v2921
  %2939 = vst [vmem:[%s5 + $0x7b] sm:$0x1] %v2923
  %v2940 = vld [vmem:[%s0 + $0xc] sm:$0x1]
  %v2941 = vld [vmem:[%s0 + $0x1c] sm:$0x1]
  %v2942 = vld [vmem:[%s0 + $0x2c] sm:$0x1]
  %v2943 = vld [vmem:[%s0 + $0x3c] sm:$0x1]
  %v2944 = vld [vmem:[%s0 + $0x4c] sm:$0x1]
  %v2945 = vld [vmem:[%s0 + $0x5c] sm:$0x1]
  %v2946 = vld [vmem:[%s0 + $0x6c] sm:$0x1]
  %v2947 = vld [vmem:[%s0 + $0x7c] sm:$0x1]
  %v2956 = vrot.slane %v2941, 7
  %v2957 = vsel %vm69, %v2956, %v2940
  %v2958 = vrot.slane %v2942, 6
  %v2959 = vsel %vm72, %v2958, %v2957
  %v2960 = vrot.slane %v2943, 5
  %v2961 = vsel %vm75, %v2960, %v2959
  %v2962 = vrot.slane %v2944, 4
  %v2963 = vsel %vm78, %v2962, %v2961
  %v2964 = vrot.slane %v2945, 3
  %v2965 = vsel %vm81, %v2964, %v2963
  %v2966 = vrot.slane %v2946, 2
  %v2967 = vsel %vm84, %v2966, %v2965
  %v2968 = vrot.slane %v2947, 1
  %v2969 = vsel %vm87, %v2968, %v2967
  %v2970 = vsel %vm89, %v2969, 0
  %2972 = vmatprep.subr.mxu0 0.0
  %2973 = vmatpush1.msra.mxu0 %v26
  %2974 = vmatprep.subr.mxu0 0.0
  %2975 = vmatpush1.msra.mxu0 %v27
  %2976 = vmatprep.subr.mxu0 0.0
  %2977 = vmatpush1.msra.mxu0 0.0
  %2978 = vmatprep.subr.mxu0 0.0
  %2979 = vmatpush1.msra.mxu0 0.0
  %2980 = vmatprep.subr.mxu0 0.0
  %2981 = vmatpush1.msra.mxu0 0.0
  %2982 = vmatprep.subr.mxu0 0.0
  %2983 = vmatpush1.msra.mxu0 0.0
  %2984 = vmatprep.subr.mxu0 0.0
  %2985 = vmatpush1.msra.mxu0 0.0
  %2986 = vmatprep.subr.mxu0 0.0
  %2987 = vmatpush1.msra.mxu0 0.0
  %2988 = vmatprep.subr.mxu0 0.0
  %2989 = vmatpush1.msra.mxu0 0.0
  %2990 = vmatprep.subr.mxu0 0.0
  %2991 = vmatpush1.msra.mxu0 0.0
  %2992 = vmatprep.subr.mxu0 0.0
  %2993 = vmatpush1.msra.mxu0 0.0
  %2994 = vmatprep.subr.mxu0 0.0
  %2995 = vmatpush1.msra.mxu0 0.0
  %2996 = vmatprep.subr.mxu0 0.0
  %2997 = vmatpush1.msra.mxu0 0.0
  %2998 = vmatprep.subr.mxu0 0.0
  %2999 = vmatpush1.msra.mxu0 0.0
  %3000 = vmatprep.subr.mxu0 0.0
  %3001 = vmatpush1.msra.mxu0 0.0
  %3002 = vmatprep.subr.mxu0 0.0
  %3003 = vmatpush1.msra.mxu0 0.0
  %3004 = vmatprep.subr.mxu0 0.0
  %3005 = vmatpush1.msra.mxu0 0.0
  %3006 = vmatprep.subr.mxu0 0.0
  %3007 = vmatpush1.msra.mxu0 0.0
  %3008 = vmatprep.subr.mxu0 0.0
  %3009 = vmatpush1.msra.mxu0 0.0
  %3010 = vmatprep.subr.mxu0 0.0
  %3011 = vmatpush1.msra.mxu0 0.0
  %3012 = vmatprep.subr.mxu0 0.0
  %3013 = vmatpush1.msra.mxu0 0.0
  %3014 = vmatprep.subr.mxu0 0.0
  %3015 = vmatpush1.msra.mxu0 0.0
  %3016 = vmatprep.subr.mxu0 0.0
  %3017 = vmatpush1.msra.mxu0 0.0
  %3018 = vmatprep.subr.mxu0 0.0
  %3019 = vmatpush1.msra.mxu0 0.0
  %3020 = vmatprep.subr.mxu0 0.0
  %3021 = vmatpush1.msra.mxu0 0.0
  %3022 = vmatprep.subr.mxu0 0.0
  %3023 = vmatpush1.msra.mxu0 0.0
  %3024 = vmatprep.subr.mxu0 0.0
  %3025 = vmatpush1.msra.mxu0 0.0
  %3026 = vmatprep.subr.mxu0 0.0
  %3027 = vmatpush1.msra.mxu0 0.0
  %3028 = vmatprep.subr.mxu0 0.0
  %3029 = vmatpush1.msra.mxu0 0.0
  %3030 = vmatprep.subr.mxu0 0.0
  %3031 = vmatpush1.msra.mxu0 0.0
  %3032 = vmatprep.subr.mxu0 0.0
  %3033 = vmatpush1.msra.mxu0 0.0
  %3034 = vmatprep.subr.mxu0 0.0
  %3035 = vmatpush1.msra.mxu0 0.0
  %3036 = vmatprep.mubr.f32.mxu0 0.0
  %3037 = vmatmul.mubr.f32.gmra.mrb[0].mxu0 %v2970
  %v3038 = vpop.f32.mrb[0].mxu0
  %v3039 = vadd.f32 %v58, %v3038
  %v3040 = vpop.f32.mrb[0].mxu0
  %3041 = vdwg.mxu0
  %3042 = vmatprep.subr.mxu0 0.0
  %3043 = vmatpush1.msra.mxu0 %v28
  %3044 = vmatprep.subr.mxu0 0.0
  %3045 = vmatpush1.msra.mxu0 %v29
  %3046 = vmatprep.subr.mxu0 0.0
  %3047 = vmatpush1.msra.mxu0 %v30
  %3048 = vmatprep.subr.mxu0 0.0
  %3049 = vmatpush1.msra.mxu0 %v31
  %3050 = vmatprep.subr.mxu0 0.0
  %3051 = vmatpush1.msra.mxu0 %v32
  %3052 = vmatprep.subr.mxu0 0.0
  %3053 = vmatpush1.msra.mxu0 %v33
  %3054 = vmatprep.subr.mxu0 0.0
  %3055 = vmatpush1.msra.mxu0 %v34
  %3056 = vmatprep.subr.mxu0 0.0
  %3057 = vmatpush1.msra.mxu0 %v35
  %3058 = vmatprep.subr.mxu0 0.0
  %3059 = vmatpush1.msra.mxu0 %v36
  %3060 = vmatprep.subr.mxu0 0.0
  %3061 = vmatpush1.msra.mxu0 %v37
  %3062 = vmatprep.subr.mxu0 0.0
  %3063 = vmatpush1.msra.mxu0 %v38
  %3064 = vmatprep.subr.mxu0 0.0
  %3065 = vmatpush1.msra.mxu0 %v39
  %3066 = vmatprep.subr.mxu0 0.0
  %3067 = vmatpush1.msra.mxu0 %v40
  %3068 = vmatprep.subr.mxu0 0.0
  %3069 = vmatpush1.msra.mxu0 %v41
  %3070 = vmatprep.subr.mxu0 0.0
  %3071 = vmatpush1.msra.mxu0 %v42
  %3072 = vmatprep.subr.mxu0 0.0
  %3073 = vmatpush1.msra.mxu0 %v43
  %3074 = vmatprep.subr.mxu0 0.0
  %3075 = vmatpush1.msra.mxu0 0.0
  %3076 = vmatprep.subr.mxu0 0.0
  %3077 = vmatpush1.msra.mxu0 0.0
  %3078 = vmatprep.subr.mxu0 0.0
  %3079 = vmatpush1.msra.mxu0 0.0
  %3080 = vmatprep.subr.mxu0 0.0
  %3081 = vmatpush1.msra.mxu0 0.0
  %3082 = vmatprep.subr.mxu0 0.0
  %3083 = vmatpush1.msra.mxu0 0.0
  %3084 = vmatprep.subr.mxu0 0.0
  %3085 = vmatpush1.msra.mxu0 0.0
  %3086 = vmatprep.subr.mxu0 0.0
  %3087 = vmatpush1.msra.mxu0 0.0
  %3088 = vmatprep.subr.mxu0 0.0
  %3089 = vmatpush1.msra.mxu0 0.0
  %3090 = vmatprep.subr.mxu0 0.0
  %3091 = vmatpush1.msra.mxu0 0.0
  %3092 = vmatprep.subr.mxu0 0.0
  %3093 = vmatpush1.msra.mxu0 0.0
  %3094 = vmatprep.subr.mxu0 0.0
  %3095 = vmatpush1.msra.mxu0 0.0
  %3096 = vmatprep.subr.mxu0 0.0
  %3097 = vmatpush1.msra.mxu0 0.0
  %3098 = vmatprep.subr.mxu0 0.0
  %3099 = vmatpush1.msra.mxu0 0.0
  %3100 = vmatprep.subr.mxu0 0.0
  %3101 = vmatpush1.msra.mxu0 0.0
  %3102 = vmatprep.subr.mxu0 0.0
  %3103 = vmatpush1.msra.mxu0 0.0
  %3104 = vmatprep.subr.mxu0 0.0
  %3105 = vmatpush1.msra.mxu0 0.0
  %3106 = vmatprep.mubr.f32.mxu0 0.0
  %3107 = vmatmul.mubr.f32.gmra.mrb[0].mxu0 %v2873
  %v3108 = vpop.f32.mrb[0].mxu0
  %v3109 = vadd.f32 0.0, %v3108
  %v3110 = vpop.f32.mrb[0].mxu0
  %3111 = vdwg.mxu0
  %v3112 = vadd.f32 %v3039, %v3109
  %v3113 = vmax.f32 %v3112, 0.0
  %v3115 = vcombine.high %v3113, %v3113
  %v3117 = vunpack.c.l.s4 1966171168
  %v3118 = vunpack.c.0.s8 %v3117
  %v3119 = vlaneseq
  %v3120 = vshrl.u32 %v3119, 7
  %v3121 = vsub.s32 %v3118, %v3120
  %v3122 = vrot.slane %v3113, %v3121
  %v3124 = vunpack.c.l.s4 1966171168
  %v3125 = vunpack.c.0.s8 %v3124
  %v3126 = vlaneseq
  %v3127 = vshrl.u32 %v3126, 7
  %v3128 = vsub.s32 %v3125, %v3127
  %v3129 = vrot.slane %v3115, %v3128
  %v3130 = vcombine.high %v3122, %v3122
  %v3131 = vcombine.high %v3129, %v3129
  %v3133 = vunpack.c.l.s4 1966171168
  %v3134 = vunpack.c.0.s8 %v3133
  %v3135 = vlaneseq
  %v3136 = vshrl.u32 %v3135, 7
  %v3137 = vsub.s32 %v3134, %v3136
  %v3138 = vrot.slane %v3122, %v3137
  %v3140 = vunpack.c.l.s4 1966171168
  %v3141 = vunpack.c.0.s8 %v3140
  %v3142 = vlaneseq
  %v3143 = vshrl.u32 %v3142, 7
  %v3144 = vsub.s32 %v3141, %v3143
  %v3145 = vrot.slane %v3129, %v3144
  %v3147 = vunpack.c.l.s4 1966171168
  %v3148 = vunpack.c.0.s8 %v3147
  %v3149 = vlaneseq
  %v3150 = vshrl.u32 %v3149, 7
  %v3151 = vsub.s32 %v3148, %v3150
  %v3152 = vrot.slane %v3130, %v3151
  %v3154 = vunpack.c.l.s4 1966171168
  %v3155 = vunpack.c.0.s8 %v3154
  %v3156 = vlaneseq
  %v3157 = vshrl.u32 %v3156, 7
  %v3158 = vsub.s32 %v3155, %v3157
  %v3159 = vrot.slane %v3131, %v3158
  %v3160 = vcombine.high %v3138, %v3138
  %v3161 = vcombine.high %v3145, %v3145
  %v3162 = vcombine.high %v3152, %v3152
  %v3163 = vcombine.high %v3159, %v3159
  %3172 = vst [vmem:[%s5 + $0xc] sm:$0x1] %v3138
  %3173 = vst [vmem:[%s5 + $0x1c] sm:$0x1] %v3152
  %3174 = vst [vmem:[%s5 + $0x2c] sm:$0x1] %v3160
  %3175 = vst [vmem:[%s5 + $0x3c] sm:$0x1] %v3162
  %3176 = vst [vmem:[%s5 + $0x4c] sm:$0x1] %v3145
  %3177 = vst [vmem:[%s5 + $0x5c] sm:$0x1] %v3159
  %3178 = vst [vmem:[%s5 + $0x6c] sm:$0x1] %v3161
  %3179 = vst [vmem:[%s5 + $0x7c] sm:$0x1] %v3163
  %v3180 = vld [vmem:[%s0 + $0xd] sm:$0x1]
  %v3181 = vld [vmem:[%s0 + $0x1d] sm:$0x1]
  %v3182 = vld [vmem:[%s0 + $0x2d] sm:$0x1]
  %v3183 = vld [vmem:[%s0 + $0x3d] sm:$0x1]
  %v3184 = vld [vmem:[%s0 + $0x4d] sm:$0x1]
  %v3185 = vld [vmem:[%s0 + $0x5d] sm:$0x1]
  %v3186 = vld [vmem:[%s0 + $0x6d] sm:$0x1]
  %v3187 = vld [vmem:[%s0 + $0x7d] sm:$0x1]
  %v3196 = vrot.slane %v3181, 7
  %v3197 = vsel %vm69, %v3196, %v3180
  %v3198 = vrot.slane %v3182, 6
  %v3199 = vsel %vm72, %v3198, %v3197
  %v3200 = vrot.slane %v3183, 5
  %v3201 = vsel %vm75, %v3200, %v3199
  %v3202 = vrot.slane %v3184, 4
  %v3203 = vsel %vm78, %v3202, %v3201
  %v3204 = vrot.slane %v3185, 3
  %v3205 = vsel %vm81, %v3204, %v3203
  %v3206 = vrot.slane %v3186, 2
  %v3207 = vsel %vm84, %v3206, %v3205
  %v3208 = vrot.slane %v3187, 1
  %v3209 = vsel %vm87, %v3208, %v3207
  %v3210 = vsel %vm89, %v3209, 0
  %3212 = vmatprep.subr.mxu0 0.0
  %3213 = vmatpush1.msra.mxu0 %v26
  %3214 = vmatprep.subr.mxu0 0.0
  %3215 = vmatpush1.msra.mxu0 %v27
  %3216 = vmatprep.subr.mxu0 0.0
  %3217 = vmatpush1.msra.mxu0 0.0
  %3218 = vmatprep.subr.mxu0 0.0
  %3219 = vmatpush1.msra.mxu0 0.0
  %3220 = vmatprep.subr.mxu0 0.0
  %3221 = vmatpush1.msra.mxu0 0.0
  %3222 = vmatprep.subr.mxu0 0.0
  %3223 = vmatpush1.msra.mxu0 0.0
  %3224 = vmatprep.subr.mxu0 0.0
  %3225 = vmatpush1.msra.mxu0 0.0
  %3226 = vmatprep.subr.mxu0 0.0
  %3227 = vmatpush1.msra.mxu0 0.0
  %3228 = vmatprep.subr.mxu0 0.0
  %3229 = vmatpush1.msra.mxu0 0.0
  %3230 = vmatprep.subr.mxu0 0.0
  %3231 = vmatpush1.msra.mxu0 0.0
  %3232 = vmatprep.subr.mxu0 0.0
  %3233 = vmatpush1.msra.mxu0 0.0
  %3234 = vmatprep.subr.mxu0 0.0
  %3235 = vmatpush1.msra.mxu0 0.0
  %3236 = vmatprep.subr.mxu0 0.0
  %3237 = vmatpush1.msra.mxu0 0.0
  %3238 = vmatprep.subr.mxu0 0.0
  %3239 = vmatpush1.msra.mxu0 0.0
  %3240 = vmatprep.subr.mxu0 0.0
  %3241 = vmatpush1.msra.mxu0 0.0
  %3242 = vmatprep.subr.mxu0 0.0
  %3243 = vmatpush1.msra.mxu0 0.0
  %3244 = vmatprep.subr.mxu0 0.0
  %3245 = vmatpush1.msra.mxu0 0.0
  %3246 = vmatprep.subr.mxu0 0.0
  %3247 = vmatpush1.msra.mxu0 0.0
  %3248 = vmatprep.subr.mxu0 0.0
  %3249 = vmatpush1.msra.mxu0 0.0
  %3250 = vmatprep.subr.mxu0 0.0
  %3251 = vmatpush1.msra.mxu0 0.0
  %3252 = vmatprep.subr.mxu0 0.0
  %3253 = vmatpush1.msra.mxu0 0.0
  %3254 = vmatprep.subr.mxu0 0.0
  %3255 = vmatpush1.msra.mxu0 0.0
  %3256 = vmatprep.subr.mxu0 0.0
  %3257 = vmatpush1.msra.mxu0 0.0
  %3258 = vmatprep.subr.mxu0 0.0
  %3259 = vmatpush1.msra.mxu0 0.0
  %3260 = vmatprep.subr.mxu0 0.0
  %3261 = vmatpush1.msra.mxu0 0.0
  %3262 = vmatprep.subr.mxu0 0.0
  %3263 = vmatpush1.msra.mxu0 0.0
  %3264 = vmatprep.subr.mxu0 0.0
  %3265 = vmatpush1.msra.mxu0 0.0
  %3266 = vmatprep.subr.mxu0 0.0
  %3267 = vmatpush1.msra.mxu0 0.0
  %3268 = vmatprep.subr.mxu0 0.0
  %3269 = vmatpush1.msra.mxu0 0.0
  %3270 = vmatprep.subr.mxu0 0.0
  %3271 = vmatpush1.msra.mxu0 0.0
  %3272 = vmatprep.subr.mxu0 0.0
  %3273 = vmatpush1.msra.mxu0 0.0
  %3274 = vmatprep.subr.mxu0 0.0
  %3275 = vmatpush1.msra.mxu0 0.0
  %3276 = vmatprep.mubr.f32.mxu0 0.0
  %3277 = vmatmul.mubr.f32.gmra.mrb[0].mxu0 %v3210
  %v3278 = vpop.f32.mrb[0].mxu0
  %v3279 = vadd.f32 %v58, %v3278
  %v3280 = vpop.f32.mrb[0].mxu0
  %3281 = vdwg.mxu0
  %3282 = vmatprep.subr.mxu0 0.0
  %3283 = vmatpush1.msra.mxu0 %v28
  %3284 = vmatprep.subr.mxu0 0.0
  %3285 = vmatpush1.msra.mxu0 %v29
  %3286 = vmatprep.subr.mxu0 0.0
  %3287 = vmatpush1.msra.mxu0 %v30
  %3288 = vmatprep.subr.mxu0 0.0
  %3289 = vmatpush1.msra.mxu0 %v31
  %3290 = vmatprep.subr.mxu0 0.0
  %3291 = vmatpush1.msra.mxu0 %v32
  %3292 = vmatprep.subr.mxu0 0.0
  %3293 = vmatpush1.msra.mxu0 %v33
  %3294 = vmatprep.subr.mxu0 0.0
  %3295 = vmatpush1.msra.mxu0 %v34
  %3296 = vmatprep.subr.mxu0 0.0
  %3297 = vmatpush1.msra.mxu0 %v35
  %3298 = vmatprep.subr.mxu0 0.0
  %3299 = vmatpush1.msra.mxu0 %v36
  %3300 = vmatprep.subr.mxu0 0.0
  %3301 = vmatpush1.msra.mxu0 %v37
  %3302 = vmatprep.subr.mxu0 0.0
  %3303 = vmatpush1.msra.mxu0 %v38
  %3304 = vmatprep.subr.mxu0 0.0
  %3305 = vmatpush1.msra.mxu0 %v39
  %3306 = vmatprep.subr.mxu0 0.0
  %3307 = vmatpush1.msra.mxu0 %v40
  %3308 = vmatprep.subr.mxu0 0.0
  %3309 = vmatpush1.msra.mxu0 %v41
  %3310 = vmatprep.subr.mxu0 0.0
  %3311 = vmatpush1.msra.mxu0 %v42
  %3312 = vmatprep.subr.mxu0 0.0
  %3313 = vmatpush1.msra.mxu0 %v43
  %3314 = vmatprep.subr.mxu0 0.0
  %3315 = vmatpush1.msra.mxu0 0.0
  %3316 = vmatprep.subr.mxu0 0.0
  %3317 = vmatpush1.msra.mxu0 0.0
  %3318 = vmatprep.subr.mxu0 0.0
  %3319 = vmatpush1.msra.mxu0 0.0
  %3320 = vmatprep.subr.mxu0 0.0
  %3321 = vmatpush1.msra.mxu0 0.0
  %3322 = vmatprep.subr.mxu0 0.0
  %3323 = vmatpush1.msra.mxu0 0.0
  %3324 = vmatprep.subr.mxu0 0.0
  %3325 = vmatpush1.msra.mxu0 0.0
  %3326 = vmatprep.subr.mxu0 0.0
  %3327 = vmatpush1.msra.mxu0 0.0
  %3328 = vmatprep.subr.mxu0 0.0
  %3329 = vmatpush1.msra.mxu0 0.0
  %3330 = vmatprep.subr.mxu0 0.0
  %3331 = vmatpush1.msra.mxu0 0.0
  %3332 = vmatprep.subr.mxu0 0.0
  %3333 = vmatpush1.msra.mxu0 0.0
  %3334 = vmatprep.subr.mxu0 0.0
  %3335 = vmatpush1.msra.mxu0 0.0
  %3336 = vmatprep.subr.mxu0 0.0
  %3337 = vmatpush1.msra.mxu0 0.0
  %3338 = vmatprep.subr.mxu0 0.0
  %3339 = vmatpush1.msra.mxu0 0.0
  %3340 = vmatprep.subr.mxu0 0.0
  %3341 = vmatpush1.msra.mxu0 0.0
  %3342 = vmatprep.subr.mxu0 0.0
  %3343 = vmatpush1.msra.mxu0 0.0
  %3344 = vmatprep.subr.mxu0 0.0
  %3345 = vmatpush1.msra.mxu0 0.0
  %3346 = vmatprep.mubr.f32.mxu0 0.0
  %3347 = vmatmul.mubr.f32.gmra.mrb[0].mxu0 %v3113
  %v3348 = vpop.f32.mrb[0].mxu0
  %v3349 = vadd.f32 0.0, %v3348
  %v3350 = vpop.f32.mrb[0].mxu0
  %3351 = vdwg.mxu0
  %v3352 = vadd.f32 %v3279, %v3349
  %v3353 = vmax.f32 %v3352, 0.0
  %v3355 = vcombine.high %v3353, %v3353
  %v3357 = vunpack.c.l.s4 1966171168
  %v3358 = vunpack.c.0.s8 %v3357
  %v3359 = vlaneseq
  %v3360 = vshrl.u32 %v3359, 7
  %v3361 = vsub.s32 %v3358, %v3360
  %v3362 = vrot.slane %v3353, %v3361
  %v3364 = vunpack.c.l.s4 1966171168
  %v3365 = vunpack.c.0.s8 %v3364
  %v3366 = vlaneseq
  %v3367 = vshrl.u32 %v3366, 7
  %v3368 = vsub.s32 %v3365, %v3367
  %v3369 = vrot.slane %v3355, %v3368
  %v3370 = vcombine.high %v3362, %v3362
  %v3371 = vcombine.high %v3369, %v3369
  %v3373 = vunpack.c.l.s4 1966171168
  %v3374 = vunpack.c.0.s8 %v3373
  %v3375 = vlaneseq
  %v3376 = vshrl.u32 %v3375, 7
  %v3377 = vsub.s32 %v3374, %v3376
  %v3378 = vrot.slane %v3362, %v3377
  %v3380 = vunpack.c.l.s4 1966171168
  %v3381 = vunpack.c.0.s8 %v3380
  %v3382 = vlaneseq
  %v3383 = vshrl.u32 %v3382, 7
  %v3384 = vsub.s32 %v3381, %v3383
  %v3385 = vrot.slane %v3369, %v3384
  %v3387 = vunpack.c.l.s4 1966171168
  %v3388 = vunpack.c.0.s8 %v3387
  %v3389 = vlaneseq
  %v3390 = vshrl.u32 %v3389, 7
  %v3391 = vsub.s32 %v3388, %v3390
  %v3392 = vrot.slane %v3370, %v3391
  %v3394 = vunpack.c.l.s4 1966171168
  %v3395 = vunpack.c.0.s8 %v3394
  %v3396 = vlaneseq
  %v3397 = vshrl.u32 %v3396, 7
  %v3398 = vsub.s32 %v3395, %v3397
  %v3399 = vrot.slane %v3371, %v3398
  %v3400 = vcombine.high %v3378, %v3378
  %v3401 = vcombine.high %v3385, %v3385
  %v3402 = vcombine.high %v3392, %v3392
  %v3403 = vcombine.high %v3399, %v3399
  %3412 = vst [vmem:[%s5 + $0xd] sm:$0x1] %v3378
  %3413 = vst [vmem:[%s5 + $0x1d] sm:$0x1] %v3392
  %3414 = vst [vmem:[%s5 + $0x2d] sm:$0x1] %v3400
  %3415 = vst [vmem:[%s5 + $0x3d] sm:$0x1] %v3402
  %3416 = vst [vmem:[%s5 + $0x4d] sm:$0x1] %v3385
  %3417 = vst [vmem:[%s5 + $0x5d] sm:$0x1] %v3399
  %3418 = vst [vmem:[%s5 + $0x6d] sm:$0x1] %v3401
  %3419 = vst [vmem:[%s5 + $0x7d] sm:$0x1] %v3403
  %v3420 = vld [vmem:[%s0 + $0xe] sm:$0x1]
  %v3421 = vld [vmem:[%s0 + $0x1e] sm:$0x1]
  %v3422 = vld [vmem:[%s0 + $0x2e] sm:$0x1]
  %v3423 = vld [vmem:[%s0 + $0x3e] sm:$0x1]
  %v3424 = vld [vmem:[%s0 + $0x4e] sm:$0x1]
  %v3425 = vld [vmem:[%s0 + $0x5e] sm:$0x1]
  %v3426 = vld [vmem:[%s0 + $0x6e] sm:$0x1]
  %v3427 = vld [vmem:[%s0 + $0x7e] sm:$0x1]
  %v3436 = vrot.slane %v3421, 7
  %v3437 = vsel %vm69, %v3436, %v3420
  %v3438 = vrot.slane %v3422, 6
  %v3439 = vsel %vm72, %v3438, %v3437
  %v3440 = vrot.slane %v3423, 5
  %v3441 = vsel %vm75, %v3440, %v3439
  %v3442 = vrot.slane %v3424, 4
  %v3443 = vsel %vm78, %v3442, %v3441
  %v3444 = vrot.slane %v3425, 3
  %v3445 = vsel %vm81, %v3444, %v3443
  %v3446 = vrot.slane %v3426, 2
  %v3447 = vsel %vm84, %v3446, %v3445
  %v3448 = vrot.slane %v3427, 1
  %v3449 = vsel %vm87, %v3448, %v3447
  %v3450 = vsel %vm89, %v3449, 0
  %3452 = vmatprep.subr.mxu0 0.0
  %3453 = vmatpush1.msra.mxu0 %v26
  %3454 = vmatprep.subr.mxu0 0.0
  %3455 = vmatpush1.msra.mxu0 %v27
  %3456 = vmatprep.subr.mxu0 0.0
  %3457 = vmatpush1.msra.mxu0 0.0
  %3458 = vmatprep.subr.mxu0 0.0
  %3459 = vmatpush1.msra.mxu0 0.0
  %3460 = vmatprep.subr.mxu0 0.0
  %3461 = vmatpush1.msra.mxu0 0.0
  %3462 = vmatprep.subr.mxu0 0.0
  %3463 = vmatpush1.msra.mxu0 0.0
  %3464 = vmatprep.subr.mxu0 0.0
  %3465 = vmatpush1.msra.mxu0 0.0
  %3466 = vmatprep.subr.mxu0 0.0
  %3467 = vmatpush1.msra.mxu0 0.0
  %3468 = vmatprep.subr.mxu0 0.0
  %3469 = vmatpush1.msra.mxu0 0.0
  %3470 = vmatprep.subr.mxu0 0.0
  %3471 = vmatpush1.msra.mxu0 0.0
  %3472 = vmatprep.subr.mxu0 0.0
  %3473 = vmatpush1.msra.mxu0 0.0
  %3474 = vmatprep.subr.mxu0 0.0
  %3475 = vmatpush1.msra.mxu0 0.0
  %3476 = vmatprep.subr.mxu0 0.0
  %3477 = vmatpush1.msra.mxu0 0.0
  %3478 = vmatprep.subr.mxu0 0.0
  %3479 = vmatpush1.msra.mxu0 0.0
  %3480 = vmatprep.subr.mxu0 0.0
  %3481 = vmatpush1.msra.mxu0 0.0
  %3482 = vmatprep.subr.mxu0 0.0
  %3483 = vmatpush1.msra.mxu0 0.0
  %3484 = vmatprep.subr.mxu0 0.0
  %3485 = vmatpush1.msra.mxu0 0.0
  %3486 = vmatprep.subr.mxu0 0.0
  %3487 = vmatpush1.msra.mxu0 0.0
  %3488 = vmatprep.subr.mxu0 0.0
  %3489 = vmatpush1.msra.mxu0 0.0
  %3490 = vmatprep.subr.mxu0 0.0
  %3491 = vmatpush1.msra.mxu0 0.0
  %3492 = vmatprep.subr.mxu0 0.0
  %3493 = vmatpush1.msra.mxu0 0.0
  %3494 = vmatprep.subr.mxu0 0.0
  %3495 = vmatpush1.msra.mxu0 0.0
  %3496 = vmatprep.subr.mxu0 0.0
  %3497 = vmatpush1.msra.mxu0 0.0
  %3498 = vmatprep.subr.mxu0 0.0
  %3499 = vmatpush1.msra.mxu0 0.0
  %3500 = vmatprep.subr.mxu0 0.0
  %3501 = vmatpush1.msra.mxu0 0.0
  %3502 = vmatprep.subr.mxu0 0.0
  %3503 = vmatpush1.msra.mxu0 0.0
  %3504 = vmatprep.subr.mxu0 0.0
  %3505 = vmatpush1.msra.mxu0 0.0
  %3506 = vmatprep.subr.mxu0 0.0
  %3507 = vmatpush1.msra.mxu0 0.0
  %3508 = vmatprep.subr.mxu0 0.0
  %3509 = vmatpush1.msra.mxu0 0.0
  %3510 = vmatprep.subr.mxu0 0.0
  %3511 = vmatpush1.msra.mxu0 0.0
  %3512 = vmatprep.subr.mxu0 0.0
  %3513 = vmatpush1.msra.mxu0 0.0
  %3514 = vmatprep.subr.mxu0 0.0
  %3515 = vmatpush1.msra.mxu0 0.0
  %3516 = vmatprep.mubr.f32.mxu0 0.0
  %3517 = vmatmul.mubr.f32.gmra.mrb[0].mxu0 %v3450
  %v3518 = vpop.f32.mrb[0].mxu0
  %v3519 = vadd.f32 %v58, %v3518
  %v3520 = vpop.f32.mrb[0].mxu0
  %3521 = vdwg.mxu0
  %3522 = vmatprep.subr.mxu0 0.0
  %3523 = vmatpush1.msra.mxu0 %v28
  %3524 = vmatprep.subr.mxu0 0.0
  %3525 = vmatpush1.msra.mxu0 %v29
  %3526 = vmatprep.subr.mxu0 0.0
  %3527 = vmatpush1.msra.mxu0 %v30
  %3528 = vmatprep.subr.mxu0 0.0
  %3529 = vmatpush1.msra.mxu0 %v31
  %3530 = vmatprep.subr.mxu0 0.0
  %3531 = vmatpush1.msra.mxu0 %v32
  %3532 = vmatprep.subr.mxu0 0.0
  %3533 = vmatpush1.msra.mxu0 %v33
  %3534 = vmatprep.subr.mxu0 0.0
  %3535 = vmatpush1.msra.mxu0 %v34
  %3536 = vmatprep.subr.mxu0 0.0
  %3537 = vmatpush1.msra.mxu0 %v35
  %3538 = vmatprep.subr.mxu0 0.0
  %3539 = vmatpush1.msra.mxu0 %v36
  %3540 = vmatprep.subr.mxu0 0.0
  %3541 = vmatpush1.msra.mxu0 %v37
  %3542 = vmatprep.subr.mxu0 0.0
  %3543 = vmatpush1.msra.mxu0 %v38
  %3544 = vmatprep.subr.mxu0 0.0
  %3545 = vmatpush1.msra.mxu0 %v39
  %3546 = vmatprep.subr.mxu0 0.0
  %3547 = vmatpush1.msra.mxu0 %v40
  %3548 = vmatprep.subr.mxu0 0.0
  %3549 = vmatpush1.msra.mxu0 %v41
  %3550 = vmatprep.subr.mxu0 0.0
  %3551 = vmatpush1.msra.mxu0 %v42
  %3552 = vmatprep.subr.mxu0 0.0
  %3553 = vmatpush1.msra.mxu0 %v43
  %3554 = vmatprep.subr.mxu0 0.0
  %3555 = vmatpush1.msra.mxu0 0.0
  %3556 = vmatprep.subr.mxu0 0.0
  %3557 = vmatpush1.msra.mxu0 0.0
  %3558 = vmatprep.subr.mxu0 0.0
  %3559 = vmatpush1.msra.mxu0 0.0
  %3560 = vmatprep.subr.mxu0 0.0
  %3561 = vmatpush1.msra.mxu0 0.0
  %3562 = vmatprep.subr.mxu0 0.0
  %3563 = vmatpush1.msra.mxu0 0.0
  %3564 = vmatprep.subr.mxu0 0.0
  %3565 = vmatpush1.msra.mxu0 0.0
  %3566 = vmatprep.subr.mxu0 0.0
  %3567 = vmatpush1.msra.mxu0 0.0
  %3568 = vmatprep.subr.mxu0 0.0
  %3569 = vmatpush1.msra.mxu0 0.0
  %3570 = vmatprep.subr.mxu0 0.0
  %3571 = vmatpush1.msra.mxu0 0.0
  %3572 = vmatprep.subr.mxu0 0.0
  %3573 = vmatpush1.msra.mxu0 0.0
  %3574 = vmatprep.subr.mxu0 0.0
  %3575 = vmatpush1.msra.mxu0 0.0
  %3576 = vmatprep.subr.mxu0 0.0
  %3577 = vmatpush1.msra.mxu0 0.0
  %3578 = vmatprep.subr.mxu0 0.0
  %3579 = vmatpush1.msra.mxu0 0.0
  %3580 = vmatprep.subr.mxu0 0.0
  %3581 = vmatpush1.msra.mxu0 0.0
  %3582 = vmatprep.subr.mxu0 0.0
  %3583 = vmatpush1.msra.mxu0 0.0
  %3584 = vmatprep.subr.mxu0 0.0
  %3585 = vmatpush1.msra.mxu0 0.0
  %3586 = vmatprep.mubr.f32.mxu0 0.0
  %3587 = vmatmul.mubr.f32.gmra.mrb[0].mxu0 %v3353
  %v3588 = vpop.f32.mrb[0].mxu0
  %v3589 = vadd.f32 0.0, %v3588
  %v3590 = vpop.f32.mrb[0].mxu0
  %3591 = vdwg.mxu0
  %v3592 = vadd.f32 %v3519, %v3589
  %v3593 = vmax.f32 %v3592, 0.0
  %v3595 = vcombine.high %v3593, %v3593
  %v3597 = vunpack.c.l.s4 1966171168
  %v3598 = vunpack.c.0.s8 %v3597
  %v3599 = vlaneseq
  %v3600 = vshrl.u32 %v3599, 7
  %v3601 = vsub.s32 %v3598, %v3600
  %v3602 = vrot.slane %v3593, %v3601
  %v3604 = vunpack.c.l.s4 1966171168
  %v3605 = vunpack.c.0.s8 %v3604
  %v3606 = vlaneseq
  %v3607 = vshrl.u32 %v3606, 7
  %v3608 = vsub.s32 %v3605, %v3607
  %v3609 = vrot.slane %v3595, %v3608
  %v3610 = vcombine.high %v3602, %v3602
  %v3611 = vcombine.high %v3609, %v3609
  %v3613 = vunpack.c.l.s4 1966171168
  %v3614 = vunpack.c.0.s8 %v3613
  %v3615 = vlaneseq
  %v3616 = vshrl.u32 %v3615, 7
  %v3617 = vsub.s32 %v3614, %v3616
  %v3618 = vrot.slane %v3602, %v3617
  %v3620 = vunpack.c.l.s4 1966171168
  %v3621 = vunpack.c.0.s8 %v3620
  %v3622 = vlaneseq
  %v3623 = vshrl.u32 %v3622, 7
  %v3624 = vsub.s32 %v3621, %v3623
  %v3625 = vrot.slane %v3609, %v3624
  %v3627 = vunpack.c.l.s4 1966171168
  %v3628 = vunpack.c.0.s8 %v3627
  %v3629 = vlaneseq
  %v3630 = vshrl.u32 %v3629, 7
  %v3631 = vsub.s32 %v3628, %v3630
  %v3632 = vrot.slane %v3610, %v3631
  %v3634 = vunpack.c.l.s4 1966171168
  %v3635 = vunpack.c.0.s8 %v3634
  %v3636 = vlaneseq
  %v3637 = vshrl.u32 %v3636, 7
  %v3638 = vsub.s32 %v3635, %v3637
  %v3639 = vrot.slane %v3611, %v3638
  %v3640 = vcombine.high %v3618, %v3618
  %v3641 = vcombine.high %v3625, %v3625
  %v3642 = vcombine.high %v3632, %v3632
  %v3643 = vcombine.high %v3639, %v3639
  %3652 = vst [vmem:[%s5 + $0xe] sm:$0x1] %v3618
  %3653 = vst [vmem:[%s5 + $0x1e] sm:$0x1] %v3632
  %3654 = vst [vmem:[%s5 + $0x2e] sm:$0x1] %v3640
  %3655 = vst [vmem:[%s5 + $0x3e] sm:$0x1] %v3642
  %3656 = vst [vmem:[%s5 + $0x4e] sm:$0x1] %v3625
  %3657 = vst [vmem:[%s5 + $0x5e] sm:$0x1] %v3639
  %3658 = vst [vmem:[%s5 + $0x6e] sm:$0x1] %v3641
  %3659 = vst [vmem:[%s5 + $0x7e] sm:$0x1] %v3643
  %v3660 = vld [vmem:[%s0 + $0xf] sm:$0x1]
  %v3661 = vld [vmem:[%s0 + $0x1f] sm:$0x1]
  %v3662 = vld [vmem:[%s0 + $0x2f] sm:$0x1]
  %v3663 = vld [vmem:[%s0 + $0x3f] sm:$0x1]
  %v3664 = vld [vmem:[%s0 + $0x4f] sm:$0x1]
  %v3665 = vld [vmem:[%s0 + $0x5f] sm:$0x1]
  %v3666 = vld [vmem:[%s0 + $0x6f] sm:$0x1]
  %v3667 = vld [vmem:[%s0 + $0x7f] sm:$0x1]
  %v3676 = vrot.slane %v3661, 7
  %v3677 = vsel %vm69, %v3676, %v3660
  %v3678 = vrot.slane %v3662, 6
  %v3679 = vsel %vm72, %v3678, %v3677
  %v3680 = vrot.slane %v3663, 5
  %v3681 = vsel %vm75, %v3680, %v3679
  %v3682 = vrot.slane %v3664, 4
  %v3683 = vsel %vm78, %v3682, %v3681
  %v3684 = vrot.slane %v3665, 3
  %v3685 = vsel %vm81, %v3684, %v3683
  %v3686 = vrot.slane %v3666, 2
  %v3687 = vsel %vm84, %v3686, %v3685
  %v3688 = vrot.slane %v3667, 1
  %v3689 = vsel %vm87, %v3688, %v3687
  %v3690 = vsel %vm89, %v3689, 0
  %3692 = vmatprep.subr.mxu0 0.0
  %3693 = vmatpush1.msra.mxu0 %v26
  %3694 = vmatprep.subr.mxu0 0.0
  %3695 = vmatpush1.msra.mxu0 %v27
  %3696 = vmatprep.subr.mxu0 0.0
  %3697 = vmatpush1.msra.mxu0 0.0
  %3698 = vmatprep.subr.mxu0 0.0
  %3699 = vmatpush1.msra.mxu0 0.0
  %3700 = vmatprep.subr.mxu0 0.0
  %3701 = vmatpush1.msra.mxu0 0.0
  %3702 = vmatprep.subr.mxu0 0.0
  %3703 = vmatpush1.msra.mxu0 0.0
  %3704 = vmatprep.subr.mxu0 0.0
  %3705 = vmatpush1.msra.mxu0 0.0
  %3706 = vmatprep.subr.mxu0 0.0
  %3707 = vmatpush1.msra.mxu0 0.0
  %3708 = vmatprep.subr.mxu0 0.0
  %3709 = vmatpush1.msra.mxu0 0.0
  %3710 = vmatprep.subr.mxu0 0.0
  %3711 = vmatpush1.msra.mxu0 0.0
  %3712 = vmatprep.subr.mxu0 0.0
  %3713 = vmatpush1.msra.mxu0 0.0
  %3714 = vmatprep.subr.mxu0 0.0
  %3715 = vmatpush1.msra.mxu0 0.0
  %3716 = vmatprep.subr.mxu0 0.0
  %3717 = vmatpush1.msra.mxu0 0.0
  %3718 = vmatprep.subr.mxu0 0.0
  %3719 = vmatpush1.msra.mxu0 0.0
  %3720 = vmatprep.subr.mxu0 0.0
  %3721 = vmatpush1.msra.mxu0 0.0
  %3722 = vmatprep.subr.mxu0 0.0
  %3723 = vmatpush1.msra.mxu0 0.0
  %3724 = vmatprep.subr.mxu0 0.0
  %3725 = vmatpush1.msra.mxu0 0.0
  %3726 = vmatprep.subr.mxu0 0.0
  %3727 = vmatpush1.msra.mxu0 0.0
  %3728 = vmatprep.subr.mxu0 0.0
  %3729 = vmatpush1.msra.mxu0 0.0
  %3730 = vmatprep.subr.mxu0 0.0
  %3731 = vmatpush1.msra.mxu0 0.0
  %3732 = vmatprep.subr.mxu0 0.0
  %3733 = vmatpush1.msra.mxu0 0.0
  %3734 = vmatprep.subr.mxu0 0.0
  %3735 = vmatpush1.msra.mxu0 0.0
  %3736 = vmatprep.subr.mxu0 0.0
  %3737 = vmatpush1.msra.mxu0 0.0
  %3738 = vmatprep.subr.mxu0 0.0
  %3739 = vmatpush1.msra.mxu0 0.0
  %3740 = vmatprep.subr.mxu0 0.0
  %3741 = vmatpush1.msra.mxu0 0.0
  %3742 = vmatprep.subr.mxu0 0.0
  %3743 = vmatpush1.msra.mxu0 0.0
  %3744 = vmatprep.subr.mxu0 0.0
  %3745 = vmatpush1.msra.mxu0 0.0
  %3746 = vmatprep.subr.mxu0 0.0
  %3747 = vmatpush1.msra.mxu0 0.0
  %3748 = vmatprep.subr.mxu0 0.0
  %3749 = vmatpush1.msra.mxu0 0.0
  %3750 = vmatprep.subr.mxu0 0.0
  %3751 = vmatpush1.msra.mxu0 0.0
  %3752 = vmatprep.subr.mxu0 0.0
  %3753 = vmatpush1.msra.mxu0 0.0
  %3754 = vmatprep.subr.mxu0 0.0
  %3755 = vmatpush1.msra.mxu0 0.0
  %3756 = vmatprep.mubr.f32.mxu0 0.0
  %3757 = vmatmul.mubr.f32.gmra.mrb[0].mxu0 %v3690
  %v3758 = vpop.f32.mrb[0].mxu0
  %v3759 = vadd.f32 %v58, %v3758
  %v3760 = vpop.f32.mrb[0].mxu0
  %3761 = vdwg.mxu0
  %3762 = vmatprep.subr.mxu0 0.0
  %3763 = vmatpush1.msra.mxu0 %v28
  %3764 = vmatprep.subr.mxu0 0.0
  %3765 = vmatpush1.msra.mxu0 %v29
  %3766 = vmatprep.subr.mxu0 0.0
  %3767 = vmatpush1.msra.mxu0 %v30
  %3768 = vmatprep.subr.mxu0 0.0
  %3769 = vmatpush1.msra.mxu0 %v31
  %3770 = vmatprep.subr.mxu0 0.0
  %3771 = vmatpush1.msra.mxu0 %v32
  %3772 = vmatprep.subr.mxu0 0.0
  %3773 = vmatpush1.msra.mxu0 %v33
  %3774 = vmatprep.subr.mxu0 0.0
  %3775 = vmatpush1.msra.mxu0 %v34
  %3776 = vmatprep.subr.mxu0 0.0
  %3777 = vmatpush1.msra.mxu0 %v35
  %3778 = vmatprep.subr.mxu0 0.0
  %3779 = vmatpush1.msra.mxu0 %v36
  %3780 = vmatprep.subr.mxu0 0.0
  %3781 = vmatpush1.msra.mxu0 %v37
  %3782 = vmatprep.subr.mxu0 0.0
  %3783 = vmatpush1.msra.mxu0 %v38
  %3784 = vmatprep.subr.mxu0 0.0
  %3785 = vmatpush1.msra.mxu0 %v39
  %3786 = vmatprep.subr.mxu0 0.0
  %3787 = vmatpush1.msra.mxu0 %v40
  %3788 = vmatprep.subr.mxu0 0.0
  %3789 = vmatpush1.msra.mxu0 %v41
  %3790 = vmatprep.subr.mxu0 0.0
  %3791 = vmatpush1.msra.mxu0 %v42
  %3792 = vmatprep.subr.mxu0 0.0
  %3793 = vmatpush1.msra.mxu0 %v43
  %3794 = vmatprep.subr.mxu0 0.0
  %3795 = vmatpush1.msra.mxu0 0.0
  %3796 = vmatprep.subr.mxu0 0.0
  %3797 = vmatpush1.msra.mxu0 0.0
  %3798 = vmatprep.subr.mxu0 0.0
  %3799 = vmatpush1.msra.mxu0 0.0
  %3800 = vmatprep.subr.mxu0 0.0
  %3801 = vmatpush1.msra.mxu0 0.0
  %3802 = vmatprep.subr.mxu0 0.0
  %3803 = vmatpush1.msra.mxu0 0.0
  %3804 = vmatprep.subr.mxu0 0.0
  %3805 = vmatpush1.msra.mxu0 0.0
  %3806 = vmatprep.subr.mxu0 0.0
  %3807 = vmatpush1.msra.mxu0 0.0
  %3808 = vmatprep.subr.mxu0 0.0
  %3809 = vmatpush1.msra.mxu0 0.0
  %3810 = vmatprep.subr.mxu0 0.0
  %3811 = vmatpush1.msra.mxu0 0.0
  %3812 = vmatprep.subr.mxu0 0.0
  %3813 = vmatpush1.msra.mxu0 0.0
  %3814 = vmatprep.subr.mxu0 0.0
  %3815 = vmatpush1.msra.mxu0 0.0
  %3816 = vmatprep.subr.mxu0 0.0
  %3817 = vmatpush1.msra.mxu0 0.0
  %3818 = vmatprep.subr.mxu0 0.0
  %3819 = vmatpush1.msra.mxu0 0.0
  %3820 = vmatprep.subr.mxu0 0.0
  %3821 = vmatpush1.msra.mxu0 0.0
  %3822 = vmatprep.subr.mxu0 0.0
  %3823 = vmatpush1.msra.mxu0 0.0
  %3824 = vmatprep.subr.mxu0 0.0
  %3825 = vmatpush1.msra.mxu0 0.0
  %3826 = vmatprep.mubr.f32.mxu0 0.0
  %3827 = vmatmul.mubr.f32.gmra.mrb[0].mxu0 %v3593
  %v3828 = vpop.f32.mrb[0].mxu0
  %v3829 = vadd.f32 0.0, %v3828
  %v3830 = vpop.f32.mrb[0].mxu0
  %3831 = vdwg.mxu0
  %v3832 = vadd.f32 %v3759, %v3829
  %v3833 = vmax.f32 %v3832, 0.0
  %v3835 = vcombine.high %v3833, %v3833
  %v3837 = vunpack.c.l.s4 1966171168
  %v3838 = vunpack.c.0.s8 %v3837
  %v3839 = vlaneseq
  %v3840 = vshrl.u32 %v3839, 7
  %v3841 = vsub.s32 %v3838, %v3840
  %v3842 = vrot.slane %v3833, %v3841
  %v3844 = vunpack.c.l.s4 1966171168
  %v3845 = vunpack.c.0.s8 %v3844
  %v3846 = vlaneseq
  %v3847 = vshrl.u32 %v3846, 7
  %v3848 = vsub.s32 %v3845, %v3847
  %v3849 = vrot.slane %v3835, %v3848
  %v3850 = vcombine.high %v3842, %v3842
  %v3851 = vcombine.high %v3849, %v3849
  %v3853 = vunpack.c.l.s4 1966171168
  %v3854 = vunpack.c.0.s8 %v3853
  %v3855 = vlaneseq
  %v3856 = vshrl.u32 %v3855, 7
  %v3857 = vsub.s32 %v3854, %v3856
  %v3858 = vrot.slane %v3842, %v3857
  %v3860 = vunpack.c.l.s4 1966171168
  %v3861 = vunpack.c.0.s8 %v3860
  %v3862 = vlaneseq
  %v3863 = vshrl.u32 %v3862, 7
  %v3864 = vsub.s32 %v3861, %v3863
  %v3865 = vrot.slane %v3849, %v3864
  %v3867 = vunpack.c.l.s4 1966171168
  %v3868 = vunpack.c.0.s8 %v3867
  %v3869 = vlaneseq
  %v3870 = vshrl.u32 %v3869, 7
  %v3871 = vsub.s32 %v3868, %v3870
  %v3872 = vrot.slane %v3850, %v3871
  %v3874 = vunpack.c.l.s4 1966171168
  %v3875 = vunpack.c.0.s8 %v3874
  %v3876 = vlaneseq
  %v3877 = vshrl.u32 %v3876, 7
  %v3878 = vsub.s32 %v3875, %v3877
  %v3879 = vrot.slane %v3851, %v3878
  %v3880 = vcombine.high %v3858, %v3858
  %v3881 = vcombine.high %v3865, %v3865
  %v3882 = vcombine.high %v3872, %v3872
  %v3883 = vcombine.high %v3879, %v3879
  %3892 = vst [vmem:[%s5 + $0xf] sm:$0x1] %v3858
  %3893 = vst [vmem:[%s5 + $0x1f] sm:$0x1] %v3872
  %3894 = vst [vmem:[%s5 + $0x2f] sm:$0x1] %v3880
  %3895 = vst [vmem:[%s5 + $0x3f] sm:$0x1] %v3882
  %3896 = vst [vmem:[%s5 + $0x4f] sm:$0x1] %v3865
  %3897 = vst [vmem:[%s5 + $0x5f] sm:$0x1] %v3879
  %3898 = vst [vmem:[%s5 + $0x6f] sm:$0x1] %v3881
  %3899 = vst [vmem:[%s5 + $0x7f] sm:$0x1] %v3883
  %3900 = vst [vmem:[#allocation2] sm:$0xff] %v3833
  // Predicated region
  $region26: #{rnn_layer.1} parent=0 // pred_check
    _
  $region27: #{rnn_layer.1} parent=0 // pred_check_branch
    %3902 = sbr.rel (0) target = $region29
  $region28: #{rnn_layer.1} parent=0 // pred_region
    _
  $region29: #{rnn_layer.1} parent=0 // pred_fallthru
    _
  // Predicated region
  $region30: #{rnn_layer.1} parent=0 // pred_check
    _
  $region31: #{rnn_layer.1} parent=0 // pred_check_branch
    %3904 = sbr.rel (0) target = $region33
  $region32: #{rnn_layer.1} parent=0 // pred_region
    _
  $region33: #{rnn_layer.1} parent=0 // pred_fallthru
    _

</llo_original>
